<compile_context>
chip_gen: v5e
topology: v5e:2x2
jax: 0.10.0
libtpu: 0.0.40
codegen_flags: <defaults>
</compile_context>

<pallas_src>
import functools
import math

import jax
import jax.numpy as jnp
from jax import lax
from jax.experimental import pallas as pl
from jax.experimental.pallas import tpu as pltpu


# ----------------------------- call 1: fused projections ---------------------------------

def _proj_kernel(xd_ref, wqkv_ref, bqkv_ref, xe_ref, wkv_ref, bkv_ref, qkv_ref, kv_ref):
    qkv_ref[...] = jnp.dot(xd_ref[...], wqkv_ref[...],
                           preferred_element_type=jnp.float32) + bqkv_ref[...]
    kv_ref[...] = jnp.dot(xe_ref[...], wkv_ref[...],
                          preferred_element_type=jnp.float32) + bkv_ref[...]


def fused_projections(x_dec, w_qkv, b_qkv, x_enc, w_kv, b_kv):
    """Self-attn QKV projection and cross-attn KV projection in one pallas_call."""
    return pl.pallas_call(
        _proj_kernel,
        out_shape=(jax.ShapeDtypeStruct((x_dec.shape[0], w_qkv.shape[1]), jnp.float32),
                   jax.ShapeDtypeStruct((x_enc.shape[0], w_kv.shape[1]), jnp.float32)),
    )(x_dec, w_qkv, b_qkv, x_enc, w_kv, b_kv)


# ----------------------------- shared in-kernel helpers -----------------------------------

def _layernorm(x, gamma, beta, eps):
    mean = jnp.mean(x, axis=-1, keepdims=True)
    var = jnp.mean(jnp.square(x - mean), axis=-1, keepdims=True)
    return (x - mean) * lax.rsqrt(var + eps) * gamma + beta


def _attention_core(q_ref, k_ref, v_ref, m_ref, wc_ref, bc_ref, cat_ref, att_ref, *, scale):
    qh = q_ref[0]                      # (H, Sq, dh)
    kh = k_ref[0]                      # (H, Sk, dh)
    vh = v_ref[0]                      # (H, Sk, dh)
    H, _, dh = qh.shape
    Sk = kh.shape[1]

    # One head-batched dot_general for Q @ K^T (no per-head python matmul loop).
    score = lax.dot_general(qh, kh, (((2,), (2,)), ((0,), (0,))),
                            preferred_element_type=jnp.float32) * scale
    masked = m_ref[...] > 0.0                       # (1, Sq, Sk); broadcasts over heads
    score = jnp.where(masked, -1000000000.0, score)

    # Exact softmax for the *returned* attention maps (reference quirk: out uses raw score).
    e = jnp.exp(score - jnp.max(score, axis=-1, keepdims=True))
    attn = e / jnp.sum(e, axis=-1, keepdims=True)

    # Reference quirk: out = score @ v (pre-softmax, mask-filled scores), head-batched.
    out = lax.dot_general(score, vh, (((2,), (1,)), ((0,), (0,))),
                          preferred_element_type=jnp.float32)   # (H, Sq, dh)

    # concat (= transpose(1,2)+view) assembled lane-contiguously in VMEM scratch;
    # attention maps written lane-dense as (Sq, H*Sk).
    for h in range(H):
        cat_ref[:, h * dh:(h + 1) * dh] = out[h]
        att_ref[0, :, h * Sk:(h + 1) * Sk] = attn[h]

    # w_concat folded into ONE (Sq, D) @ (D, D) matmul (K = D, not H tiny K = d_head).
    return jnp.dot(cat_ref[...], wc_ref[...],
                   preferred_element_type=jnp.float32) + bc_ref[...]


# ----------------------------- call 2: self-attn + LN1 + cross-Q projection ---------------

def _self_block_kernel(q_ref, k_ref, v_ref, m_ref, wc_ref, bc_ref, res_ref,
                       g1_ref, be1_ref, wq2_ref, bq2_ref,
                       y_ref, q2_ref, att_ref, cat_ref, *, scale, eps):
    proj = _attention_core(q_ref, k_ref, v_ref, m_ref, wc_ref, bc_ref,
                           cat_ref, att_ref, scale=scale)
    y = _layernorm(proj + res_ref[0], g1_ref[...], be1_ref[...], eps)
    y_ref[0] = y
    # Cross-attention Q projection fused here; its quirky head split happens in the wrapper.
    q2_ref[0] = jnp.dot(y, wq2_ref[...], preferred_element_type=jnp.float32) + bq2_ref[...]


# ----------------------------- call 3: cross-attn + LN2 + FFN + LN3 -----------------------

def _cross_ffn_kernel(q_ref, k_ref, v_ref, m_ref, wc_ref, bc_ref, res_ref,
                      g2_ref, be2_ref, w1_ref, bf1_ref, w2_ref, bf2_ref, g3_ref, be3_ref,
                      y_ref, att_ref, cat_ref, *, scale, eps):
    proj = _attention_core(q_ref, k_ref, v_ref, m_ref, wc_ref, bc_ref,
                           cat_ref, att_ref, scale=scale)
    x = _layernorm(proj + res_ref[0], g2_ref[...], be2_ref[...], eps)       # norm2
    hid = jnp.maximum(
        jnp.dot(x, w1_ref[...], preferred_element_type=jnp.float32) + bf1_ref[...], 0.0)
    f = jnp.dot(hid, w2_ref[...], preferred_element_type=jnp.float32) + bf2_ref[...]
    y_ref[0] = _layernorm(f + x, g3_ref[...], be3_ref[...], eps)            # norm3


# ----------------------------- pallas_call wrappers ---------------------------------------

def _batch_spec(shape):
    nd = len(shape)
    return pl.BlockSpec((1,) + tuple(shape[1:]),
                        lambda b, _n=nd: (b,) + (0,) * (_n - 1))


def _full_spec(shape):
    nd = len(shape)
    return pl.BlockSpec(tuple(shape), lambda b, _n=nd: (0,) * _n)


def self_attn_block(qh, kh, vh, mask_f, wc, bc, residual, g1, be1, wq2, bq2, *,
                    scale, eps=1e-5):
    B, H, Sq, dh = qh.shape
    Sk = kh.shape[2]
    D = H * dh
    kernel = functools.partial(_self_block_kernel, scale=scale, eps=eps)
    return pl.pallas_call(
        kernel,
        grid_spec=pltpu.PrefetchScalarGridSpec(
            num_scalar_prefetch=0,
            grid=(B,),
            in_specs=[_batch_spec(qh.shape), _batch_spec(kh.shape), _batch_spec(vh.shape),
                      _batch_spec(mask_f.shape), _full_spec(wc.shape), _full_spec(bc.shape),
                      _batch_spec(residual.shape), _full_spec(g1.shape), _full_spec(be1.shape),
                      _full_spec(wq2.shape), _full_spec(bq2.shape)],
            out_specs=[pl.BlockSpec((1, Sq, D), lambda b: (b, 0, 0)),
                       pl.BlockSpec((1, Sq, D), lambda b: (b, 0, 0)),
                       pl.BlockSpec((1, Sq, H * Sk), lambda b: (b, 0, 0))],
            scratch_shapes=[pltpu.VMEM((Sq, D), jnp.float32)],
        ),
        out_shape=(jax.ShapeDtypeStruct((B, Sq, D), jnp.float32),
                   jax.ShapeDtypeStruct((B, Sq, D), jnp.float32),
                   jax.ShapeDtypeStruct((B, Sq, H * Sk), jnp.float32)),
        compiler_params=pltpu.CompilerParams(dimension_semantics=("parallel",)),
    )(qh, kh, vh, mask_f, wc, bc, residual, g1, be1, wq2, bq2)


def cross_ffn_block(qh, kh, vh, mask_f, wc, bc, residual, g2, be2,
                    w1, bf1, w2, bf2, g3, be3, *, scale, eps=1e-5):
    B, H, Sq, dh = qh.shape
    Sk = kh.shape[2]
    D = H * dh
    kernel = functools.partial(_cross_ffn_kernel, scale=scale, eps=eps)
    return pl.pallas_call(
        kernel,
        grid_spec=pltpu.PrefetchScalarGridSpec(
            num_scalar_prefetch=0,
            grid=(B,),
            in_specs=[_batch_spec(qh.shape), _batch_spec(kh.shape), _batch_spec(vh.shape),
                      _batch_spec(mask_f.shape), _full_spec(wc.shape), _full_spec(bc.shape),
                      _batch_spec(residual.shape), _full_spec(g2.shape), _full_spec(be2.shape),
                      _full_spec(w1.shape), _full_spec(bf1.shape),
                      _full_spec(w2.shape), _full_spec(bf2.shape),
                      _full_spec(g3.shape), _full_spec(be3.shape)],
            out_specs=[pl.BlockSpec((1, Sq, D), lambda b: (b, 0, 0)),
                       pl.BlockSpec((1, Sq, H * Sk), lambda b: (b, 0, 0))],
            scratch_shapes=[pltpu.VMEM((Sq, D), jnp.float32)],
        ),
        out_shape=(jax.ShapeDtypeStruct((B, Sq, D), jnp.float32),
                   jax.ShapeDtypeStruct((B, Sq, H * Sk), jnp.float32)),
        compiler_params=pltpu.CompilerParams(dimension_semantics=("parallel",)),
    )(qh, kh, vh, mask_f, wc, bc, residual, g2, be2, w1, bf1, w2, bf2, g3, be3)


# --------------------------------- decoder layer forward ---------------------------------

def decoder_layer_forward(fp, dec_in, enc_out, dec_self_mask, dec_enc_mask, *, n_head):
    """DecoderLayer.forward: returns (x, dec_self_attn_score, enc_dec_attn_score)."""
    B, Sd, D = dec_in.shape
    Se = enc_out.shape[1]
    dh = D // n_head
    scale = 1.0 / math.sqrt(dh)

    self_mask_f = dec_self_mask.astype(jnp.float32)
    enc_mask_f = dec_enc_mask.astype(jnp.float32)

    # ---- call 1: fused self-QKV + cross-KV projections -------------------------------
    qkv, kv2 = fused_projections(dec_in.reshape(B * Sd, D), fp['w_qkv'], fp['b_qkv'],
                                 enc_out.reshape(B * Se, D), fp['w_kv2'], fp['b_kv2'])
    # Quirky raw-view head split (matches tensor.view(B, n_head, S, d_head) in the source).
    qh = qkv[:, 0 * D:1 * D].reshape(B, n_head, Sd, dh)
    kh = qkv[:, 1 * D:2 * D].reshape(B, n_head, Sd, dh)
    vh = qkv[:, 2 * D:3 * D].reshape(B, n_head, Sd, dh)
    k2h = kv2[:, :D].reshape(B, n_head, Se, dh)
    v2h = kv2[:, D:].reshape(B, n_head, Se, dh)

    # ---- call 2: self-attn + out-proj + add&LN1 + cross-Q projection ------------------
    y1, q2_flat, self_dense = self_attn_block(
        qh, kh, vh, self_mask_f, fp['wc1'], fp['bc1'], dec_in, fp['g1'], fp['be1'],
        fp['wq2'], fp['bq2'], scale=scale)
    q2h = q2_flat.reshape(B, n_head, Sd, dh)

    # ---- call 3: cross-attn + add&LN2 + FFN + add&LN3 ---------------------------------
    y3, cross_dense = cross_ffn_block(
        q2h, k2h, v2h, enc_mask_f, fp['wc2'], fp['bc2'], y1, fp['g2'], fp['be2'],
        fp['w1'], fp['bf1'], fp['w2'], fp['bf2'], fp['g3'], fp['be3'], scale=scale)

    # Lane-dense (B, Sq, H*Sk) -> reference layout (B, H, Sq, Sk).
    self_score = jnp.transpose(self_dense.reshape(B, Sd, n_head, Sd), (0, 2, 1, 3))
    cross_score = jnp.transpose(cross_dense.reshape(B, Sd, n_head, Se), (0, 2, 1, 3))
    return y3, self_score, cross_score


# -------------------------------------- params -------------------------------------------

def init_params(key, *, d_model, ffn_hidden):
    keys = iter(jax.random.split(key, 64))

    def lin(d_in, d_out):
        return {'w': jax.random.normal(next(keys), (d_in, d_out), jnp.float32) * 0.05,
                'b': jax.random.normal(next(keys), (1, d_out), jnp.float32) * 0.05}

    def mha():
        return {'wq': lin(d_model, d_model), 'wk': lin(d_model, d_model),
                'wv': lin(d_model, d_model), 'wc': lin(d_model, d_model)}

    def ln():
        return {'g': jnp.ones((d_model,), jnp.float32),
                'b': jnp.zeros((d_model,), jnp.float32)}

    return {'self_attn': mha(), 'ln1': ln(),
            'cross_attn': mha(), 'ln2': ln(),
            'ffn1': lin(d_model, ffn_hidden), 'ffn2': lin(ffn_hidden, d_model),
            'ln3': ln()}


def prepare_params(params):
    """Weight fusion hoisted out of the jitted forward (done once)."""
    sa, ca = params['self_attn'], params['cross_attn']
    return {
        'w_qkv': jnp.concatenate([sa['wq']['w'], sa['wk']['w'], sa['wv']['w']], axis=1),
        'b_qkv': jnp.concatenate([sa['wq']['b'], sa['wk']['b'], sa['wv']['b']], axis=1),
        'wc1': sa['wc']['w'], 'bc1': sa['wc']['b'],
        'g1': params['ln1']['g'].reshape(1, -1), 'be1': params['ln1']['b'].reshape(1, -1),
        'wq2': ca['wq']['w'], 'bq2': ca['wq']['b'],
        'w_kv2': jnp.concatenate([ca['wk']['w'], ca['wv']['w']], axis=1),
        'b_kv2': jnp.concatenate([ca['wk']['b'], ca['wv']['b']], axis=1),
        'wc2': ca['wc']['w'], 'bc2': ca['wc']['b'],
        'g2': params['ln2']['g'].reshape(1, -1), 'be2': params['ln2']['b'].reshape(1, -1),
        'w1': params['ffn1']['w'], 'bf1': params['ffn1']['b'],
        'w2': params['ffn2']['w'], 'bf2': params['ffn2']['b'],
        'g3': params['ln3']['g'].reshape(1, -1), 'be3': params['ln3']['b'].reshape(1, -1),
    }


# --------------------------- pure-JAX reference (same quirky semantics) -------------------

def reference_forward(params, dec_in, enc_out, dec_self_mask, dec_enc_mask, *, n_head):
    B, Sd, D = dec_in.shape
    dh = D // n_head
    scale = 1.0 / math.sqrt(dh)

    def layernorm(x, p):
        mu = jnp.mean(x, axis=-1, keepdims=True)
        var = jnp.mean(jnp.square(x - mu), axis=-1, keepdims=True)
        return (x - mu) / jnp.sqrt(var + 1e-5) * p['g'] + p['b']

    def linear(x, p):
        return x @ p['w'] + p['b']

    def mha(p, xq, xk, xv, mask):
        q = linear(xq, p['wq']).reshape(B, n_head, -1, dh)   # raw .view split (quirk)
        k = linear(xk, p['wk']).reshape(B, n_head, -1, dh)
        v = linear(xv, p['wv']).reshape(B, n_head, -1, dh)
        score = jnp.einsum('bhqd,bhkd->bhqk', q, k) * scale
        score = jnp.where(mask[:, None], -1000000000.0, score)
        atten = jax.nn.softmax(score, axis=-1)
        out = jnp.einsum('bhqk,bhkd->bhqd', score, v)        # quirk: pre-softmax scores
        out = jnp.transpose(out, (0, 2, 1, 3)).reshape(B, -1, D)
        return linear(out, p['wc']), atten

    x1, self_sc = mha(params['self_attn'], dec_in, dec_in, dec_in, dec_self_mask)
    x = layernorm(x1 + dec_in, params['ln1'])
    x2, cross_sc = mha(params['cross_attn'], x, enc_out, enc_out, dec_enc_mask)
    x = layernorm(x2 + x, params['ln2'])
    f = jnp.maximum(linear(x, params['ffn1']), 0.0)
    f = linear(f, params['ffn2'])
    x = layernorm(f + x, params['ln3'])
    return x, self_sc, cross_sc


if __name__ == "__main__":
    B, S_dec, S_enc = 2, 8, 8
    d_model, n_head, ffn_hidden = 32, 4, 64

    root = jax.random.PRNGKey(0)
    pkey, dkey, ekey = jax.random.split(root, 3)
    params = init_params(pkey, d_model=d_model, ffn_hidden=ffn_hidden)

    dec_in = jax.random.normal(dkey, (B, S_dec, d_model), jnp.float32)
    enc_out = jax.random.normal(ekey, (B, S_enc, d_model), jnp.float32)

    # Decoder self-attention mask (True == masked): causal + padded last dec token (batch 1).
    causal = jnp.triu(jnp.ones((S_dec, S_dec), jnp.bool_), k=1)
    dec_pad = jnp.zeros((B, S_dec), jnp.bool_).at[1, -1].set(True)
    dec_self_mask = causal[None] | dec_pad[:, None, :]
    # Decoder-encoder mask: padded last encoder position for batch 0.
    enc_pad = jnp.zeros((B, S_enc), jnp.bool_).at[0, -1].set(True)
    dec_enc_mask = jnp.broadcast_to(enc_pad[:, None, :], (B, S_dec, S_enc))

    fused = prepare_params(params)   # weight concatenation done once, outside jit

    fwd = jax.jit(decoder_layer_forward, static_argnames=("n_head",))
    out, self_score, cross_score = fwd(fused, dec_in, enc_out,
                                       dec_self_mask, dec_enc_mask, n_head=n_head)
    jax.block_until_ready(out)

    assert out.shape == (B, S_dec, d_model)
    assert self_score.shape == (B, n_head, S_dec, S_dec)
    assert cross_score.shape == (B, n_head, S_dec, S_enc)
    assert bool(jnp.all(jnp.isfinite(out)))
    assert bool(jnp.all(jnp.isfinite(self_score)))
    assert bool(jnp.all(jnp.isfinite(cross_score)))

    # Cross-check against a pure-JAX reference with identical (quirky) semantics.
    ref_out, ref_self, ref_cross = reference_forward(
        params, dec_in, enc_out, dec_self_mask, dec_enc_mask, n_head=n_head)
    assert bool(jnp.allclose(out, ref_out, atol=5e-3, rtol=5e-3))
    assert bool(jnp.allclose(self_score, ref_self, atol=1e-3, rtol=1e-3))
    assert bool(jnp.allclose(cross_score, ref_cross, atol=1e-3, rtol=1e-3))
    print("KERNEL_OK")
</pallas_src>

<mosaic_0001>
module attributes {stable_mosaic.version = 11 : i64} {
  func.func @_proj_kernel(%arg0: memref<16x32xf32, #tpu.memory_space<vmem>>, %arg1: memref<32x96xf32, #tpu.memory_space<vmem>>, %arg2: memref<1x96xf32, #tpu.memory_space<vmem>>, %arg3: memref<16x32xf32, #tpu.memory_space<vmem>>, %arg4: memref<32x64xf32, #tpu.memory_space<vmem>>, %arg5: memref<1x64xf32, #tpu.memory_space<vmem>>, %arg6: memref<16x96xf32, #tpu.memory_space<vmem>>, %arg7: memref<16x64xf32, #tpu.memory_space<vmem>>) attributes {dimension_semantics = [], scalar_prefetch = 0 : i64, scratch_operands = 0 : i64, tpu.core_type = #tpu.core_type<tc>} {
    %c0 = arith.constant 0 : index
    %c0_0 = arith.constant 0 : index
    %0 = vector.load %arg0[%c0, %c0_0] : memref<16x32xf32, #tpu.memory_space<vmem>>, vector<16x32xf32>
    %c0_1 = arith.constant 0 : index
    %c0_2 = arith.constant 0 : index
    %1 = vector.load %arg1[%c0_1, %c0_2] : memref<32x96xf32, #tpu.memory_space<vmem>>, vector<32x96xf32>
    %cst = arith.constant dense<0.000000e+00> : vector<16x96xf32>
    %2 = tpu.matmul %0, %1, %cst {dimension_numbers = #tpu.dot_dimension_numbers<[1], [0], [0], [1], [0, 0, 1, 1], [], []>} : vector<16x32xf32>, vector<32x96xf32>, vector<16x96xf32> -> vector<16x96xf32>
    %c0_3 = arith.constant 0 : index
    %c0_4 = arith.constant 0 : index
    %3 = vector.load %arg2[%c0_3, %c0_4] : memref<1x96xf32, #tpu.memory_space<vmem>>, vector<1x96xf32>
    %4 = vector.broadcast %3 : vector<1x96xf32> to vector<16x96xf32>
    %5 = arith.addf %2, %4 : vector<16x96xf32>
    %c0_5 = arith.constant 0 : index
    %c0_6 = arith.constant 0 : index
    %6 = vector.load %arg6[%c0_5, %c0_6] : memref<16x96xf32, #tpu.memory_space<vmem>>, vector<16x96xf32>
    tpu.vector_store %arg6[%c0_5, %c0_6], %5 {strides = array<i32>} : memref<16x96xf32, #tpu.memory_space<vmem>>, vector<16x96xf32>,
    %c0_7 = arith.constant 0 : index
    %c0_8 = arith.constant 0 : index
    %7 = vector.load %arg3[%c0_7, %c0_8] : memref<16x32xf32, #tpu.memory_space<vmem>>, vector<16x32xf32>
    %c0_9 = arith.constant 0 : index
    %c0_10 = arith.constant 0 : index
    %8 = vector.load %arg4[%c0_9, %c0_10] : memref<32x64xf32, #tpu.memory_space<vmem>>, vector<32x64xf32>
    %cst_11 = arith.constant dense<0.000000e+00> : vector<16x64xf32>
    %9 = tpu.matmul %7, %8, %cst_11 {dimension_numbers = #tpu.dot_dimension_numbers<[1], [0], [0], [1], [0, 0, 1, 1], [], []>} : vector<16x32xf32>, vector<32x64xf32>, vector<16x64xf32> -> vector<16x64xf32>
    %c0_12 = arith.constant 0 : index
    %c0_13 = arith.constant 0 : index
    %10 = vector.load %arg5[%c0_12, %c0_13] : memref<1x64xf32, #tpu.memory_space<vmem>>, vector<1x64xf32>
    %11 = vector.broadcast %10 : vector<1x64xf32> to vector<16x64xf32>
    %12 = arith.addf %9, %11 : vector<16x64xf32>
    %c0_14 = arith.constant 0 : index
    %c0_15 = arith.constant 0 : index
    %13 = vector.load %arg7[%c0_14, %c0_15] : memref<16x64xf32, #tpu.memory_space<vmem>>, vector<16x64xf32>
    tpu.vector_store %arg7[%c0_14, %c0_15], %12 {strides = array<i32>} : memref<16x64xf32, #tpu.memory_space<vmem>>, vector<16x64xf32>,
    return
  }
}

module attributes {stable_mosaic.version = 11 : i64} {
  func.func @_self_block_kernel(%arg0: i32, %arg1: memref<1x4x8x8xf32, #tpu.memory_space<vmem>>, %arg2: memref<1x4x8x8xf32, #tpu.memory_space<vmem>>, %arg3: memref<1x4x8x8xf32, #tpu.memory_space<vmem>>, %arg4: memref<1x8x8xf32, #tpu.memory_space<vmem>>, %arg5: memref<32x32xf32, #tpu.memory_space<vmem>>, %arg6: memref<1x32xf32, #tpu.memory_space<vmem>>, %arg7: memref<1x8x32xf32, #tpu.memory_space<vmem>>, %arg8: memref<1x32xf32, #tpu.memory_space<vmem>>, %arg9: memref<1x32xf32, #tpu.memory_space<vmem>>, %arg10: memref<32x32xf32, #tpu.memory_space<vmem>>, %arg11: memref<1x32xf32, #tpu.memory_space<vmem>>, %arg12: memref<1x8x32xf32, #tpu.memory_space<vmem>>, %arg13: memref<1x8x32xf32, #tpu.memory_space<vmem>>, %arg14: memref<1x8x32xf32, #tpu.memory_space<vmem>>, %arg15: memref<8x32xf32, #tpu.memory_space<vmem>>) attributes {dimension_semantics = [#tpu.dimension_semantics<parallel>], iteration_bounds = array<i64: 2>, scalar_prefetch = 0 : i64, scratch_operands = 1 : i64, tpu.core_type = #tpu.core_type<tc>, window_params = [{transform_indices = @transform_0, window_bounds = array<i64: 1, 4, 8, 8>}, {transform_indices = @transform_1, window_bounds = array<i64: 1, 4, 8, 8>}, {transform_indices = @transform_2, window_bounds = array<i64: 1, 4, 8, 8>}, {transform_indices = @transform_3, window_bounds = array<i64: 1, 8, 8>}, {pipeline_mode = #tpu.pipeline_mode<synchronous>, transform_indices = @transform_4, window_bounds = array<i64: 32, 32>}, {pipeline_mode = #tpu.pipeline_mode<synchronous>, transform_indices = @transform_5, window_bounds = array<i64: 1, 32>}, {transform_indices = @transform_6, window_bounds = array<i64: 1, 8, 32>}, {pipeline_mode = #tpu.pipeline_mode<synchronous>, transform_indices = @transform_7, window_bounds = array<i64: 1, 32>}, {pipeline_mode = #tpu.pipeline_mode<synchronous>, transform_indices = @transform_8, window_bounds = array<i64: 1, 32>}, {pipeline_mode = #tpu.pipeline_mode<synchronous>, transform_indices = @transform_9, window_bounds = array<i64: 32, 32>}, {pipeline_mode = #tpu.pipeline_mode<synchronous>, transform_indices = @transform_10, window_bounds = array<i64: 1, 32>}, {transform_indices = @transform_11, window_bounds = array<i64: 1, 8, 32>}, {transform_indices = @transform_12, window_bounds = array<i64: 1, 8, 32>}, {transform_indices = @transform_13, window_bounds = array<i64: 1, 8, 32>}]} {
    %c0 = arith.constant 0 : index
    %c0_0 = arith.constant 0 : index
    %c0_1 = arith.constant 0 : index
    %c0_2 = arith.constant 0 : index
    %0 = vector.load %arg1[%c0, %c0_0, %c0_1, %c0_2] : memref<1x4x8x8xf32, #tpu.memory_space<vmem>>, vector<1x4x8x8xf32>
    %1 = vector.shape_cast %0 : vector<1x4x8x8xf32> to vector<4x8x8xf32>
    %c0_3 = arith.constant 0 : index
    %c0_4 = arith.constant 0 : index
    %c0_5 = arith.constant 0 : index
    %c0_6 = arith.constant 0 : index
    %2 = vector.load %arg2[%c0_3, %c0_4, %c0_5, %c0_6] : memref<1x4x8x8xf32, #tpu.memory_space<vmem>>, vector<1x4x8x8xf32>
    %3 = vector.shape_cast %2 : vector<1x4x8x8xf32> to vector<4x8x8xf32>
    %c0_7 = arith.constant 0 : index
    %c0_8 = arith.constant 0 : index
    %c0_9 = arith.constant 0 : index
    %c0_10 = arith.constant 0 : index
    %4 = vector.load %arg3[%c0_7, %c0_8, %c0_9, %c0_10] : memref<1x4x8x8xf32, #tpu.memory_space<vmem>>, vector<1x4x8x8xf32>
    %5 = vector.shape_cast %4 : vector<1x4x8x8xf32> to vector<4x8x8xf32>
    %cst = arith.constant dense<0.000000e+00> : vector<4x8x8xf32>
    %6 = tpu.matmul %1, %3, %cst {dimension_numbers = #tpu.dot_dimension_numbers<[2], [2], [1], [1], [0, 0, 0, 1, 1, 1], [0], [0]>} : vector<4x8x8xf32>, vector<4x8x8xf32>, vector<4x8x8xf32> -> vector<4x8x8xf32>
    %cst_11 = arith.constant 0.353553385 : f32
    %7 = vector.broadcast %cst_11 : f32 to vector<4x8x8xf32>
    %8 = arith.mulf %6, %7 : vector<4x8x8xf32>
    %c0_12 = arith.constant 0 : index
    %c0_13 = arith.constant 0 : index
    %c0_14 = arith.constant 0 : index
    %9 = vector.load %arg4[%c0_12, %c0_13, %c0_14] : memref<1x8x8xf32, #tpu.memory_space<vmem>>, vector<1x8x8xf32>
    %cst_15 = arith.constant 0.000000e+00 : f32
    %10 = vector.broadcast %cst_15 : f32 to vector<1x8x8xf32>
    %11 = arith.cmpf ogt, %9, %10 : vector<1x8x8xf32>
    %cst_16 = arith.constant -1.000000e+09 : f32
    %12 = vector.shape_cast %11 : vector<1x8x8xi1> to vector<1x8x8xi1>
    %13 = vector.broadcast %12 : vector<1x8x8xi1> to vector<4x8x8xi1>
    %14 = vector.broadcast %cst_16 : f32 to vector<4x8x8xf32>
    %15 = arith.select %13, %14, %8 : vector<4x8x8xi1>, vector<4x8x8xf32>
    %cst_17 = arith.constant dense<0xFF800000> : vector<4x8xf32>
    %16 = vector.multi_reduction <maximumf>, %15, %cst_17 [2] : vector<4x8x8xf32> to vector<4x8xf32>
    %17 = vector.shape_cast %16 : vector<4x8xf32> to vector<4x8x1xf32>
    %18 = vector.broadcast %17 : vector<4x8x1xf32> to vector<4x8x8xf32>
    %19 = arith.subf %15, %18 : vector<4x8x8xf32>
    %20 = math.exp %19 : vector<4x8x8xf32>
    %cst_18 = arith.constant dense<0.000000e+00> : vector<4x8xf32>
    %21 = vector.multi_reduction <add>, %20, %cst_18 [2] : vector<4x8x8xf32> to vector<4x8xf32>
    %22 = vector.shape_cast %21 : vector<4x8xf32> to vector<4x8x1xf32>
    %23 = vector.broadcast %22 : vector<4x8x1xf32> to vector<4x8x8xf32>
    %24 = arith.divf %20, %23 : vector<4x8x8xf32>
    %cst_19 = arith.constant dense<0.000000e+00> : vector<4x8x8xf32>
    %25 = tpu.matmul %15, %5, %cst_19 {dimension_numbers = #tpu.dot_dimension_numbers<[2], [1], [1], [2], [0, 0, 0, 1, 1, 2], [0], [0]>} : vector<4x8x8xf32>, vector<4x8x8xf32>, vector<4x8x8xf32> -> vector<4x8x8xf32>
    %26 = vector.extract_strided_slice %25 {offsets = [0, 0, 0], sizes = [1, 8, 8], strides = [1, 1, 1]} : vector<4x8x8xf32> to vector<1x8x8xf32>
    %27 = vector.shape_cast %26 : vector<1x8x8xf32> to vector<8x8xf32>
    %c0_20 = arith.constant 0 : index
    %c0_21 = arith.constant 0 : index
    %28 = vector.load %arg15[%c0_20, %c0_21] : memref<8x32xf32, #tpu.memory_space<vmem>>, vector<8x8xf32>
    tpu.vector_store %arg15[%c0_20, %c0_21], %27 {strides = array<i32>} : memref<8x32xf32, #tpu.memory_space<vmem>>, vector<8x8xf32>,
    %29 = vector.extract_strided_slice %24 {offsets = [0, 0, 0], sizes = [1, 8, 8], strides = [1, 1, 1]} : vector<4x8x8xf32> to vector<1x8x8xf32>
    %30 = vector.shape_cast %29 : vector<1x8x8xf32> to vector<8x8xf32>
    %c0_22 = arith.constant 0 : index
    %c0_23 = arith.constant 0 : index
    %c0_24 = arith.constant 0 : index
    %31 = vector.load %arg14[%c0_22, %c0_23, %c0_24] : memref<1x8x32xf32, #tpu.memory_space<vmem>>, vector<1x8x8xf32>
    %32 = vector.shape_cast %31 : vector<1x8x8xf32> to vector<8x8xf32>
    %33 = vector.shape_cast %30 : vector<8x8xf32> to vector<1x8x8xf32>
    tpu.vector_store %arg14[%c0_22, %c0_23, %c0_24], %33 {strides = array<i32>} : memref<1x8x32xf32, #tpu.memory_space<vmem>>, vector<1x8x8xf32>,
    %34 = vector.extract_strided_slice %25 {offsets = [1, 0, 0], sizes = [1, 8, 8], strides = [1, 1, 1]} : vector<4x8x8xf32> to vector<1x8x8xf32>
    %35 = vector.shape_cast %34 : vector<1x8x8xf32> to vector<8x8xf32>
    %c0_25 = arith.constant 0 : index
    %c8 = arith.constant 8 : index
    %36 = vector.load %arg15[%c0_25, %c8] : memref<8x32xf32, #tpu.memory_space<vmem>>, vector<8x8xf32>
    tpu.vector_store %arg15[%c0_25, %c8], %35 {strides = array<i32>} : memref<8x32xf32, #tpu.memory_space<vmem>>, vector<8x8xf32>,
    %37 = vector.extract_strided_slice %24 {offsets = [1, 0, 0], sizes = [1, 8, 8], strides = [1, 1, 1]} : vector<4x8x8xf32> to vector<1x8x8xf32>
    %38 = vector.shape_cast %37 : vector<1x8x8xf32> to vector<8x8xf32>
    %c0_26 = arith.constant 0 : index
    %c0_27 = arith.constant 0 : index
    %c8_28 = arith.constant 8 : index
    %39 = vector.load %arg14[%c0_26, %c0_27, %c8_28] : memref<1x8x32xf32, #tpu.memory_space<vmem>>, vector<1x8x8xf32>
    %40 = vector.shape_cast %39 : vector<1x8x8xf32> to vector<8x8xf32>
    %41 = vector.shape_cast %38 : vector<8x8xf32> to vector<1x8x8xf32>
    tpu.vector_store %arg14[%c0_26, %c0_27, %c8_28], %41 {strides = array<i32>} : memref<1x8x32xf32, #tpu.memory_space<vmem>>, vector<1x8x8xf32>,
    %42 = vector.extract_strided_slice %25 {offsets = [2, 0, 0], sizes = [1, 8, 8], strides = [1, 1, 1]} : vector<4x8x8xf32> to vector<1x8x8xf32>
    %43 = vector.shape_cast %42 : vector<1x8x8xf32> to vector<8x8xf32>
    %c0_29 = arith.constant 0 : index
    %c16 = arith.constant 16 : index
    %44 = vector.load %arg15[%c0_29, %c16] : memref<8x32xf32, #tpu.memory_space<vmem>>, vector<8x8xf32>
    tpu.vector_store %arg15[%c0_29, %c16], %43 {strides = array<i32>} : memref<8x32xf32, #tpu.memory_space<vmem>>, vector<8x8xf32>,
    %45 = vector.extract_strided_slice %24 {offsets = [2, 0, 0], sizes = [1, 8, 8], strides = [1, 1, 1]} : vector<4x8x8xf32> to vector<1x8x8xf32>
    %46 = vector.shape_cast %45 : vector<1x8x8xf32> to vector<8x8xf32>
    %c0_30 = arith.constant 0 : index
    %c0_31 = arith.constant 0 : index
    %c16_32 = arith.constant 16 : index
    %47 = vector.load %arg14[%c0_30, %c0_31, %c16_32] : memref<1x8x32xf32, #tpu.memory_space<vmem>>, vector<1x8x8xf32>
    %48 = vector.shape_cast %47 : vector<1x8x8xf32> to vector<8x8xf32>
    %49 = vector.shape_cast %46 : vector<8x8xf32> to vector<1x8x8xf32>
    tpu.vector_store %arg14[%c0_30, %c0_31, %c16_32], %49 {strides = array<i32>} : memref<1x8x32xf32, #tpu.memory_space<vmem>>, vector<1x8x8xf32>,
    %50 = vector.extract_strided_slice %25 {offsets = [3, 0, 0], sizes = [1, 8, 8], strides = [1, 1, 1]} : vector<4x8x8xf32> to vector<1x8x8xf32>
    %51 = vector.shape_cast %50 : vector<1x8x8xf32> to vector<8x8xf32>
    %c0_33 = arith.constant 0 : index
    %c24 = arith.constant 24 : index
    %52 = vector.load %arg15[%c0_33, %c24] : memref<8x32xf32, #tpu.memory_space<vmem>>, vector<8x8xf32>
    tpu.vector_store %arg15[%c0_33, %c24], %51 {strides = array<i32>} : memref<8x32xf32, #tpu.memory_space<vmem>>, vector<8x8xf32>,
    %53 = vector.extract_strided_slice %24 {offsets = [3, 0, 0], sizes = [1, 8, 8], strides = [1, 1, 1]} : vector<4x8x8xf32> to vector<1x8x8xf32>
    %54 = vector.shape_cast %53 : vector<1x8x8xf32> to vector<8x8xf32>
    %c0_34 = arith.constant 0 : index
    %c0_35 = arith.constant 0 : index
    %c24_36 = arith.constant 24 : index
    %55 = vector.load %arg14[%c0_34, %c0_35, %c24_36] : memref<1x8x32xf32, #tpu.memory_space<vmem>>, vector<1x8x8xf32>
    %56 = vector.shape_cast %55 : vector<1x8x8xf32> to vector<8x8xf32>
    %57 = vector.shape_cast %54 : vector<8x8xf32> to vector<1x8x8xf32>
    tpu.vector_store %arg14[%c0_34, %c0_35, %c24_36], %57 {strides = array<i32>} : memref<1x8x32xf32, #tpu.memory_space<vmem>>, vector<1x8x8xf32>,
    %c0_37 = arith.constant 0 : index
    %c0_38 = arith.constant 0 : index
    %58 = vector.load %arg15[%c0_37, %c0_38] : memref<8x32xf32, #tpu.memory_space<vmem>>, vector<8x32xf32>
    %c0_39 = arith.constant 0 : index
    %c0_40 = arith.constant 0 : index
    %59 = vector.load %arg5[%c0_39, %c0_40] : memref<32x32xf32, #tpu.memory_space<vmem>>, vector<32x32xf32>
    %cst_41 = arith.constant dense<0.000000e+00> : vector<8x32xf32>
    %60 = tpu.matmul %58, %59, %cst_41 {dimension_numbers = #tpu.dot_dimension_numbers<[1], [0], [0], [1], [0, 0, 1, 1], [], []>} : vector<8x32xf32>, vector<32x32xf32>, vector<8x32xf32> -> vector<8x32xf32>
    %c0_42 = arith.constant 0 : index
    %c0_43 = arith.constant 0 : index
    %61 = vector.load %arg6[%c0_42, %c0_43] : memref<1x32xf32, #tpu.memory_space<vmem>>, vector<1x32xf32>
    %62 = vector.broadcast %61 : vector<1x32xf32> to vector<8x32xf32>
    %63 = arith.addf %60, %62 : vector<8x32xf32>
    %c0_44 = arith.constant 0 : index
    %c0_45 = arith.constant 0 : index
    %c0_46 = arith.constant 0 : index
    %64 = vector.load %arg7[%c0_44, %c0_45, %c0_46] : memref<1x8x32xf32, #tpu.memory_space<vmem>>, vector<1x8x32xf32>
    %65 = vector.shape_cast %64 : vector<1x8x32xf32> to vector<8x32xf32>
    %66 = arith.addf %63, %65 : vector<8x32xf32>
    %c0_47 = arith.constant 0 : index
    %c0_48 = arith.constant 0 : index
    %67 = vector.load %arg8[%c0_47, %c0_48] : memref<1x32xf32, #tpu.memory_space<vmem>>, vector<1x32xf32>
    %c0_49 = arith.constant 0 : index
    %c0_50 = arith.constant 0 : index
    %68 = vector.load %arg9[%c0_49, %c0_50] : memref<1x32xf32, #tpu.memory_space<vmem>>, vector<1x32xf32>
    %cst_51 = arith.constant dense<0.000000e+00> : vector<8xf32>
    %69 = vector.multi_reduction <add>, %66, %cst_51 [1] : vector<8x32xf32> to vector<8xf32>
    %70 = vector.shape_cast %69 : vector<8xf32> to vector<8x1xf32>
    %cst_52 = arith.constant 3.200000e+01 : f32
    %71 = vector.broadcast %cst_52 : f32 to vector<8x1xf32>
    %72 = arith.divf %70, %71 : vector<8x1xf32>
    %73 = vector.broadcast %72 : vector<8x1xf32> to vector<8x32xf32>
    %74 = arith.subf %66, %73 : vector<8x32xf32>
    %75 = arith.mulf %74, %74 : vector<8x32xf32>
    %cst_53 = arith.constant dense<0.000000e+00> : vector<8xf32>
    %76 = vector.multi_reduction <add>, %75, %cst_53 [1] : vector<8x32xf32> to vector<8xf32>
    %77 = vector.shape_cast %76 : vector<8xf32> to vector<8x1xf32>
    %cst_54 = arith.constant 3.200000e+01 : f32
    %78 = vector.broadcast %cst_54 : f32 to vector<8x1xf32>
    %79 = arith.divf %77, %78 : vector<8x1xf32>
    %80 = vector.broadcast %72 : vector<8x1xf32> to vector<8x32xf32>
    %81 = arith.subf %66, %80 : vector<8x32xf32>
    %cst_55 = arith.constant 9.99999974E-6 : f32
    %82 = vector.broadcast %cst_55 : f32 to vector<8x1xf32>
    %83 = arith.addf %79, %82 : vector<8x1xf32>
    %84 = math.rsqrt %83 : vector<8x1xf32>
    %85 = vector.broadcast %84 : vector<8x1xf32> to vector<8x32xf32>
    %86 = arith.mulf %81, %85 : vector<8x32xf32>
    %87 = vector.broadcast %67 : vector<1x32xf32> to vector<8x32xf32>
    %88 = arith.mulf %86, %87 : vector<8x32xf32>
    %89 = vector.broadcast %68 : vector<1x32xf32> to vector<8x32xf32>
    %90 = arith.addf %88, %89 : vector<8x32xf32>
    %c0_56 = arith.constant 0 : index
    %c0_57 = arith.constant 0 : index
    %c0_58 = arith.constant 0 : index
    %91 = vector.load %arg12[%c0_56, %c0_57, %c0_58] : memref<1x8x32xf32, #tpu.memory_space<vmem>>, vector<1x8x32xf32>
    %92 = vector.shape_cast %91 : vector<1x8x32xf32> to vector<8x32xf32>
    %93 = vector.shape_cast %90 : vector<8x32xf32> to vector<1x8x32xf32>
    tpu.vector_store %arg12[%c0_56, %c0_57, %c0_58], %93 {strides = array<i32>} : memref<1x8x32xf32, #tpu.memory_space<vmem>>, vector<1x8x32xf32>,
    %c0_59 = arith.constant 0 : index
    %c0_60 = arith.constant 0 : index
    %94 = vector.load %arg10[%c0_59, %c0_60] : memref<32x32xf32, #tpu.memory_space<vmem>>, vector<32x32xf32>
    %cst_61 = arith.constant dense<0.000000e+00> : vector<8x32xf32>
    %95 = tpu.matmul %90, %94, %cst_61 {dimension_numbers = #tpu.dot_dimension_numbers<[1], [0], [0], [1], [0, 0, 1, 1], [], []>} : vector<8x32xf32>, vector<32x32xf32>, vector<8x32xf32> -> vector<8x32xf32>
    %c0_62 = arith.constant 0 : index
    %c0_63 = arith.constant 0 : index
    %96 = vector.load %arg11[%c0_62, %c0_63] : memref<1x32xf32, #tpu.memory_space<vmem>>, vector<1x32xf32>
    %97 = vector.broadcast %96 : vector<1x32xf32> to vector<8x32xf32>
    %98 = arith.addf %95, %97 : vector<8x32xf32>
    %c0_64 = arith.constant 0 : index
    %c0_65 = arith.constant 0 : index
    %c0_66 = arith.constant 0 : index
    %99 = vector.load %arg13[%c0_64, %c0_65, %c0_66] : memref<1x8x32xf32, #tpu.memory_space<vmem>>, vector<1x8x32xf32>
    %100 = vector.shape_cast %99 : vector<1x8x32xf32> to vector<8x32xf32>
    %101 = vector.shape_cast %98 : vector<8x32xf32> to vector<1x8x32xf32>
    tpu.vector_store %arg13[%c0_64, %c0_65, %c0_66], %101 {strides = array<i32>} : memref<1x8x32xf32, #tpu.memory_space<vmem>>, vector<1x8x32xf32>,
    return
  }
  func.func @transform_0(%arg0: i32) -> (i32, i32, i32, i32) {
    %c0_i32 = arith.constant 0 : i32
    %c0_i32_0 = arith.constant 0 : i32
    %c0_i32_1 = arith.constant 0 : i32
    %c0_i32_2 = arith.constant 0 : i32
    return %arg0, %c0_i32, %c0_i32_0, %c0_i32_1 : i32, i32, i32, i32
  }
  func.func @transform_1(%arg0: i32) -> (i32, i32, i32, i32) {
    %c0_i32 = arith.constant 0 : i32
    %c0_i32_0 = arith.constant 0 : i32
    %c0_i32_1 = arith.constant 0 : i32
    %c0_i32_2 = arith.constant 0 : i32
    return %arg0, %c0_i32, %c0_i32_0, %c0_i32_1 : i32, i32, i32, i32
  }
  func.func @transform_2(%arg0: i32) -> (i32, i32, i32, i32) {
    %c0_i32 = arith.constant 0 : i32
    %c0_i32_0 = arith.constant 0 : i32
    %c0_i32_1 = arith.constant 0 : i32
    %c0_i32_2 = arith.constant 0 : i32
    return %arg0, %c0_i32, %c0_i32_0, %c0_i32_1 : i32, i32, i32, i32
  }
  func.func @transform_3(%arg0: i32) -> (i32, i32, i32) {
    %c0_i32 = arith.constant 0 : i32
    %c0_i32_0 = arith.constant 0 : i32
    %c0_i32_1 = arith.constant 0 : i32
    return %arg0, %c0_i32, %c0_i32_0 : i32, i32, i32
  }
  func.func @transform_4(%arg0: i32) -> (i32, i32) {
    %c0_i32 = arith.constant 0 : i32
    %c0_i32_0 = arith.constant 0 : i32
    %c0_i32_1 = arith.constant 0 : i32
    return %c0_i32, %c0_i32_0 : i32, i32
  }
  func.func @transform_5(%arg0: i32) -> (i32, i32) {
    %c0_i32 = arith.constant 0 : i32
    %c0_i32_0 = arith.constant 0 : i32
    %c0_i32_1 = arith.constant 0 : i32
    return %c0_i32, %c0_i32_0 : i32, i32
  }
  func.func @transform_6(%arg0: i32) -> (i32, i32, i32) {
    %c0_i32 = arith.constant 0 : i32
    %c0_i32_0 = arith.constant 0 : i32
    %c0_i32_1 = arith.constant 0 : i32
    return %arg0, %c0_i32, %c0_i32_0 : i32, i32, i32
  }
  func.func @transform_7(%arg0: i32) -> (i32, i32) {
    %c0_i32 = arith.constant 0 : i32
    %c0_i32_0 = arith.constant 0 : i32
    %c0_i32_1 = arith.constant 0 : i32
    return %c0_i32, %c0_i32_0 : i32, i32
  }
  func.func @transform_8(%arg0: i32) -> (i32, i32) {
    %c0_i32 = arith.constant 0 : i32
    %c0_i32_0 = arith.constant 0 : i32
    %c0_i32_1 = arith.constant 0 : i32
    return %c0_i32, %c0_i32_0 : i32, i32
  }
  func.func @transform_9(%arg0: i32) -> (i32, i32) {
    %c0_i32 = arith.constant 0 : i32
    %c0_i32_0 = arith.constant 0 : i32
    %c0_i32_1 = arith.constant 0 : i32
    return %c0_i32, %c0_i32_0 : i32, i32
  }
  func.func @transform_10(%arg0: i32) -> (i32, i32) {
    %c0_i32 = arith.constant 0 : i32
    %c0_i32_0 = arith.constant 0 : i32
    %c0_i32_1 = arith.constant 0 : i32
    return %c0_i32, %c0_i32_0 : i32, i32
  }
  func.func @transform_11(%arg0: i32) -> (i32, i32, i32) {
    %c0_i32 = arith.constant 0 : i32
    %c0_i32_0 = arith.constant 0 : i32
    %c0_i32_1 = arith.constant 0 : i32
    return %arg0, %c0_i32, %c0_i32_0 : i32, i32, i32
  }
  func.func @transform_12(%arg0: i32) -> (i32, i32, i32) {
    %c0_i32 = arith.constant 0 : i32
    %c0_i32_0 = arith.constant 0 : i32
    %c0_i32_1 = arith.constant 0 : i32
    return %arg0, %c0_i32, %c0_i32_0 : i32, i32, i32
  }
  func.func @transform_13(%arg0: i32) -> (i32, i32, i32) {
    %c0_i32 = arith.constant 0 : i32
    %c0_i32_0 = arith.constant 0 : i32
    %c0_i32_1 = arith.constant 0 : i32
    return %arg0, %c0_i32, %c0_i32_0 : i32, i32, i32
  }
}

module attributes {stable_mosaic.version = 11 : i64} {
  func.func @_cross_ffn_kernel(%arg0: i32, %arg1: memref<1x4x8x8xf32, #tpu.memory_space<vmem>>, %arg2: memref<1x4x8x8xf32, #tpu.memory_space<vmem>>, %arg3: memref<1x4x8x8xf32, #tpu.memory_space<vmem>>, %arg4: memref<1x8x8xf32, #tpu.memory_space<vmem>>, %arg5: memref<32x32xf32, #tpu.memory_space<vmem>>, %arg6: memref<1x32xf32, #tpu.memory_space<vmem>>, %arg7: memref<1x8x32xf32, #tpu.memory_space<vmem>>, %arg8: memref<1x32xf32, #tpu.memory_space<vmem>>, %arg9: memref<1x32xf32, #tpu.memory_space<vmem>>, %arg10: memref<32x64xf32, #tpu.memory_space<vmem>>, %arg11: memref<1x64xf32, #tpu.memory_space<vmem>>, %arg12: memref<64x32xf32, #tpu.memory_space<vmem>>, %arg13: memref<1x32xf32, #tpu.memory_space<vmem>>, %arg14: memref<1x32xf32, #tpu.memory_space<vmem>>, %arg15: memref<1x32xf32, #tpu.memory_space<vmem>>, %arg16: memref<1x8x32xf32, #tpu.memory_space<vmem>>, %arg17: memref<1x8x32xf32, #tpu.memory_space<vmem>>, %arg18: memref<8x32xf32, #tpu.memory_space<vmem>>) attributes {dimension_semantics = [#tpu.dimension_semantics<parallel>], iteration_bounds = array<i64: 2>, scalar_prefetch = 0 : i64, scratch_operands = 1 : i64, tpu.core_type = #tpu.core_type<tc>, window_params = [{transform_indices = @transform_0, window_bounds = array<i64: 1, 4, 8, 8>}, {transform_indices = @transform_1, window_bounds = array<i64: 1, 4, 8, 8>}, {transform_indices = @transform_2, window_bounds = array<i64: 1, 4, 8, 8>}, {transform_indices = @transform_3, window_bounds = array<i64: 1, 8, 8>}, {pipeline_mode = #tpu.pipeline_mode<synchronous>, transform_indices = @transform_4, window_bounds = array<i64: 32, 32>}, {pipeline_mode = #tpu.pipeline_mode<synchronous>, transform_indices = @transform_5, window_bounds = array<i64: 1, 32>}, {transform_indices = @transform_6, window_bounds = array<i64: 1, 8, 32>}, {pipeline_mode = #tpu.pipeline_mode<synchronous>, transform_indices = @transform_7, window_bounds = array<i64: 1, 32>}, {pipeline_mode = #tpu.pipeline_mode<synchronous>, transform_indices = @transform_8, window_bounds = array<i64: 1, 32>}, {pipeline_mode = #tpu.pipeline_mode<synchronous>, transform_indices = @transform_9, window_bounds = array<i64: 32, 64>}, {pipeline_mode = #tpu.pipeline_mode<synchronous>, transform_indices = @transform_10, window_bounds = array<i64: 1, 64>}, {pipeline_mode = #tpu.pipeline_mode<synchronous>, transform_indices = @transform_11, window_bounds = array<i64: 64, 32>}, {pipeline_mode = #tpu.pipeline_mode<synchronous>, transform_indices = @transform_12, window_bounds = array<i64: 1, 32>}, {pipeline_mode = #tpu.pipeline_mode<synchronous>, transform_indices = @transform_13, window_bounds = array<i64: 1, 32>}, {pipeline_mode = #tpu.pipeline_mode<synchronous>, transform_indices = @transform_14, window_bounds = array<i64: 1, 32>}, {transform_indices = @transform_15, window_bounds = array<i64: 1, 8, 32>}, {transform_indices = @transform_16, window_bounds = array<i64: 1, 8, 32>}]} {
    %c0 = arith.constant 0 : index
    %c0_0 = arith.constant 0 : index
    %c0_1 = arith.constant 0 : index
    %c0_2 = arith.constant 0 : index
    %0 = vector.load %arg1[%c0, %c0_0, %c0_1, %c0_2] : memref<1x4x8x8xf32, #tpu.memory_space<vmem>>, vector<1x4x8x8xf32>
    %1 = vector.shape_cast %0 : vector<1x4x8x8xf32> to vector<4x8x8xf32>
    %c0_3 = arith.constant 0 : index
    %c0_4 = arith.constant 0 : index
    %c0_5 = arith.constant 0 : index
    %c0_6 = arith.constant 0 : index
    %2 = vector.load %arg2[%c0_3, %c0_4, %c0_5, %c0_6] : memref<1x4x8x8xf32, #tpu.memory_space<vmem>>, vector<1x4x8x8xf32>
    %3 = vector.shape_cast %2 : vector<1x4x8x8xf32> to vector<4x8x8xf32>
    %c0_7 = arith.constant 0 : index
    %c0_8 = arith.constant 0 : index
    %c0_9 = arith.constant 0 : index
    %c0_10 = arith.constant 0 : index
    %4 = vector.load %arg3[%c0_7, %c0_8, %c0_9, %c0_10] : memref<1x4x8x8xf32, #tpu.memory_space<vmem>>, vector<1x4x8x8xf32>
    %5 = vector.shape_cast %4 : vector<1x4x8x8xf32> to vector<4x8x8xf32>
    %cst = arith.constant dense<0.000000e+00> : vector<4x8x8xf32>
    %6 = tpu.matmul %1, %3, %cst {dimension_numbers = #tpu.dot_dimension_numbers<[2], [2], [1], [1], [0, 0, 0, 1, 1, 1], [0], [0]>} : vector<4x8x8xf32>, vector<4x8x8xf32>, vector<4x8x8xf32> -> vector<4x8x8xf32>
    %cst_11 = arith.constant 0.353553385 : f32
    %7 = vector.broadcast %cst_11 : f32 to vector<4x8x8xf32>
    %8 = arith.mulf %6, %7 : vector<4x8x8xf32>
    %c0_12 = arith.constant 0 : index
    %c0_13 = arith.constant 0 : index
    %c0_14 = arith.constant 0 : index
    %9 = vector.load %arg4[%c0_12, %c0_13, %c0_14] : memref<1x8x8xf32, #tpu.memory_space<vmem>>, vector<1x8x8xf32>
    %cst_15 = arith.constant 0.000000e+00 : f32
    %10 = vector.broadcast %cst_15 : f32 to vector<1x8x8xf32>
    %11 = arith.cmpf ogt, %9, %10 : vector<1x8x8xf32>
    %cst_16 = arith.constant -1.000000e+09 : f32
    %12 = vector.shape_cast %11 : vector<1x8x8xi1> to vector<1x8x8xi1>
    %13 = vector.broadcast %12 : vector<1x8x8xi1> to vector<4x8x8xi1>
    %14 = vector.broadcast %cst_16 : f32 to vector<4x8x8xf32>
    %15 = arith.select %13, %14, %8 : vector<4x8x8xi1>, vector<4x8x8xf32>
    %cst_17 = arith.constant dense<0xFF800000> : vector<4x8xf32>
    %16 = vector.multi_reduction <maximumf>, %15, %cst_17 [2] : vector<4x8x8xf32> to vector<4x8xf32>
    %17 = vector.shape_cast %16 : vector<4x8xf32> to vector<4x8x1xf32>
    %18 = vector.broadcast %17 : vector<4x8x1xf32> to vector<4x8x8xf32>
    %19 = arith.subf %15, %18 : vector<4x8x8xf32>
    %20 = math.exp %19 : vector<4x8x8xf32>
    %cst_18 = arith.constant dense<0.000000e+00> : vector<4x8xf32>
    %21 = vector.multi_reduction <add>, %20, %cst_18 [2] : vector<4x8x8xf32> to vector<4x8xf32>
    %22 = vector.shape_cast %21 : vector<4x8xf32> to vector<4x8x1xf32>
    %23 = vector.broadcast %22 : vector<4x8x1xf32> to vector<4x8x8xf32>
    %24 = arith.divf %20, %23 : vector<4x8x8xf32>
    %cst_19 = arith.constant dense<0.000000e+00> : vector<4x8x8xf32>
    %25 = tpu.matmul %15, %5, %cst_19 {dimension_numbers = #tpu.dot_dimension_numbers<[2], [1], [1], [2], [0, 0, 0, 1, 1, 2], [0], [0]>} : vector<4x8x8xf32>, vector<4x8x8xf32>, vector<4x8x8xf32> -> vector<4x8x8xf32>
    %26 = vector.extract_strided_slice %25 {offsets = [0, 0, 0], sizes = [1, 8, 8], strides = [1, 1, 1]} : vector<4x8x8xf32> to vector<1x8x8xf32>
    %27 = vector.shape_cast %26 : vector<1x8x8xf32> to vector<8x8xf32>
    %c0_20 = arith.constant 0 : index
    %c0_21 = arith.constant 0 : index
    %28 = vector.load %arg18[%c0_20, %c0_21] : memref<8x32xf32, #tpu.memory_space<vmem>>, vector<8x8xf32>
    tpu.vector_store %arg18[%c0_20, %c0_21], %27 {strides = array<i32>} : memref<8x32xf32, #tpu.memory_space<vmem>>, vector<8x8xf32>,
    %29 = vector.extract_strided_slice %24 {offsets = [0, 0, 0], sizes = [1, 8, 8], strides = [1, 1, 1]} : vector<4x8x8xf32> to vector<1x8x8xf32>
    %30 = vector.shape_cast %29 : vector<1x8x8xf32> to vector<8x8xf32>
    %c0_22 = arith.constant 0 : index
    %c0_23 = arith.constant 0 : index
    %c0_24 = arith.constant 0 : index
    %31 = vector.load %arg17[%c0_22, %c0_23, %c0_24] : memref<1x8x32xf32, #tpu.memory_space<vmem>>, vector<1x8x8xf32>
    %32 = vector.shape_cast %31 : vector<1x8x8xf32> to vector<8x8xf32>
    %33 = vector.shape_cast %30 : vector<8x8xf32> to vector<1x8x8xf32>
    tpu.vector_store %arg17[%c0_22, %c0_23, %c0_24], %33 {strides = array<i32>} : memref<1x8x32xf32, #tpu.memory_space<vmem>>, vector<1x8x8xf32>,
    %34 = vector.extract_strided_slice %25 {offsets = [1, 0, 0], sizes = [1, 8, 8], strides = [1, 1, 1]} : vector<4x8x8xf32> to vector<1x8x8xf32>
    %35 = vector.shape_cast %34 : vector<1x8x8xf32> to vector<8x8xf32>
    %c0_25 = arith.constant 0 : index
    %c8 = arith.constant 8 : index
    %36 = vector.load %arg18[%c0_25, %c8] : memref<8x32xf32, #tpu.memory_space<vmem>>, vector<8x8xf32>
    tpu.vector_store %arg18[%c0_25, %c8], %35 {strides = array<i32>} : memref<8x32xf32, #tpu.memory_space<vmem>>, vector<8x8xf32>,
    %37 = vector.extract_strided_slice %24 {offsets = [1, 0, 0], sizes = [1, 8, 8], strides = [1, 1, 1]} : vector<4x8x8xf32> to vector<1x8x8xf32>
    %38 = vector.shape_cast %37 : vector<1x8x8xf32> to vector<8x8xf32>
    %c0_26 = arith.constant 0 : index
    %c0_27 = arith.constant 0 : index
    %c8_28 = arith.constant 8 : index
    %39 = vector.load %arg17[%c0_26, %c0_27, %c8_28] : memref<1x8x32xf32, #tpu.memory_space<vmem>>, vector<1x8x8xf32>
    %40 = vector.shape_cast %39 : vector<1x8x8xf32> to vector<8x8xf32>
    %41 = vector.shape_cast %38 : vector<8x8xf32> to vector<1x8x8xf32>
    tpu.vector_store %arg17[%c0_26, %c0_27, %c8_28], %41 {strides = array<i32>} : memref<1x8x32xf32, #tpu.memory_space<vmem>>, vector<1x8x8xf32>,
    %42 = vector.extract_strided_slice %25 {offsets = [2, 0, 0], sizes = [1, 8, 8], strides = [1, 1, 1]} : vector<4x8x8xf32> to vector<1x8x8xf32>
    %43 = vector.shape_cast %42 : vector<1x8x8xf32> to vector<8x8xf32>
    %c0_29 = arith.constant 0 : index
    %c16 = arith.constant 16 : index
    %44 = vector.load %arg18[%c0_29, %c16] : memref<8x32xf32, #tpu.memory_space<vmem>>, vector<8x8xf32>
    tpu.vector_store %arg18[%c0_29, %c16], %43 {strides = array<i32>} : memref<8x32xf32, #tpu.memory_space<vmem>>, vector<8x8xf32>,
    %45 = vector.extract_strided_slice %24 {offsets = [2, 0, 0], sizes = [1, 8, 8], strides = [1, 1, 1]} : vector<4x8x8xf32> to vector<1x8x8xf32>
    %46 = vector.shape_cast %45 : vector<1x8x8xf32> to vector<8x8xf32>
    %c0_30 = arith.constant 0 : index
    %c0_31 = arith.constant 0 : index
    %c16_32 = arith.constant 16 : index
    %47 = vector.load %arg17[%c0_30, %c0_31, %c16_32] : memref<1x8x32xf32, #tpu.memory_space<vmem>>, vector<1x8x8xf32>
    %48 = vector.shape_cast %47 : vector<1x8x8xf32> to vector<8x8xf32>
    %49 = vector.shape_cast %46 : vector<8x8xf32> to vector<1x8x8xf32>
    tpu.vector_store %arg17[%c0_30, %c0_31, %c16_32], %49 {strides = array<i32>} : memref<1x8x32xf32, #tpu.memory_space<vmem>>, vector<1x8x8xf32>,
    %50 = vector.extract_strided_slice %25 {offsets = [3, 0, 0], sizes = [1, 8, 8], strides = [1, 1, 1]} : vector<4x8x8xf32> to vector<1x8x8xf32>
    %51 = vector.shape_cast %50 : vector<1x8x8xf32> to vector<8x8xf32>
    %c0_33 = arith.constant 0 : index
    %c24 = arith.constant 24 : index
    %52 = vector.load %arg18[%c0_33, %c24] : memref<8x32xf32, #tpu.memory_space<vmem>>, vector<8x8xf32>
    tpu.vector_store %arg18[%c0_33, %c24], %51 {strides = array<i32>} : memref<8x32xf32, #tpu.memory_space<vmem>>, vector<8x8xf32>,
    %53 = vector.extract_strided_slice %24 {offsets = [3, 0, 0], sizes = [1, 8, 8], strides = [1, 1, 1]} : vector<4x8x8xf32> to vector<1x8x8xf32>
    %54 = vector.shape_cast %53 : vector<1x8x8xf32> to vector<8x8xf32>
    %c0_34 = arith.constant 0 : index
    %c0_35 = arith.constant 0 : index
    %c24_36 = arith.constant 24 : index
    %55 = vector.load %arg17[%c0_34, %c0_35, %c24_36] : memref<1x8x32xf32, #tpu.memory_space<vmem>>, vector<1x8x8xf32>
    %56 = vector.shape_cast %55 : vector<1x8x8xf32> to vector<8x8xf32>
    %57 = vector.shape_cast %54 : vector<8x8xf32> to vector<1x8x8xf32>
    tpu.vector_store %arg17[%c0_34, %c0_35, %c24_36], %57 {strides = array<i32>} : memref<1x8x32xf32, #tpu.memory_space<vmem>>, vector<1x8x8xf32>,
    %c0_37 = arith.constant 0 : index
    %c0_38 = arith.constant 0 : index
    %58 = vector.load %arg18[%c0_37, %c0_38] : memref<8x32xf32, #tpu.memory_space<vmem>>, vector<8x32xf32>
    %c0_39 = arith.constant 0 : index
    %c0_40 = arith.constant 0 : index
    %59 = vector.load %arg5[%c0_39, %c0_40] : memref<32x32xf32, #tpu.memory_space<vmem>>, vector<32x32xf32>
    %cst_41 = arith.constant dense<0.000000e+00> : vector<8x32xf32>
    %60 = tpu.matmul %58, %59, %cst_41 {dimension_numbers = #tpu.dot_dimension_numbers<[1], [0], [0], [1], [0, 0, 1, 1], [], []>} : vector<8x32xf32>, vector<32x32xf32>, vector<8x32xf32> -> vector<8x32xf32>
    %c0_42 = arith.constant 0 : index
    %c0_43 = arith.constant 0 : index
    %61 = vector.load %arg6[%c0_42, %c0_43] : memref<1x32xf32, #tpu.memory_space<vmem>>, vector<1x32xf32>
    %62 = vector.broadcast %61 : vector<1x32xf32> to vector<8x32xf32>
    %63 = arith.addf %60, %62 : vector<8x32xf32>
    %c0_44 = arith.constant 0 : index
    %c0_45 = arith.constant 0 : index
    %c0_46 = arith.constant 0 : index
    %64 = vector.load %arg7[%c0_44, %c0_45, %c0_46] : memref<1x8x32xf32, #tpu.memory_space<vmem>>, vector<1x8x32xf32>
    %65 = vector.shape_cast %64 : vector<1x8x32xf32> to vector<8x32xf32>
    %66 = arith.addf %63, %65 : vector<8x32xf32>
    %c0_47 = arith.constant 0 : index
    %c0_48 = arith.constant 0 : index
    %67 = vector.load %arg8[%c0_47, %c0_48] : memref<1x32xf32, #tpu.memory_space<vmem>>, vector<1x32xf32>
    %c0_49 = arith.constant 0 : index
    %c0_50 = arith.constant 0 : index
    %68 = vector.load %arg9[%c0_49, %c0_50] : memref<1x32xf32, #tpu.memory_space<vmem>>, vector<1x32xf32>
    %cst_51 = arith.constant dense<0.000000e+00> : vector<8xf32>
    %69 = vector.multi_reduction <add>, %66, %cst_51 [1] : vector<8x32xf32> to vector<8xf32>
    %70 = vector.shape_cast %69 : vector<8xf32> to vector<8x1xf32>
    %cst_52 = arith.constant 3.200000e+01 : f32
    %71 = vector.broadcast %cst_52 : f32 to vector<8x1xf32>
    %72 = arith.divf %70, %71 : vector<8x1xf32>
    %73 = vector.broadcast %72 : vector<8x1xf32> to vector<8x32xf32>
    %74 = arith.subf %66, %73 : vector<8x32xf32>
    %75 = arith.mulf %74, %74 : vector<8x32xf32>
    %cst_53 = arith.constant dense<0.000000e+00> : vector<8xf32>
    %76 = vector.multi_reduction <add>, %75, %cst_53 [1] : vector<8x32xf32> to vector<8xf32>
    %77 = vector.shape_cast %76 : vector<8xf32> to vector<8x1xf32>
    %cst_54 = arith.constant 3.200000e+01 : f32
    %78 = vector.broadcast %cst_54 : f32 to vector<8x1xf32>
    %79 = arith.divf %77, %78 : vector<8x1xf32>
    %80 = vector.broadcast %72 : vector<8x1xf32> to vector<8x32xf32>
    %81 = arith.subf %66, %80 : vector<8x32xf32>
    %cst_55 = arith.constant 9.99999974E-6 : f32
    %82 = vector.broadcast %cst_55 : f32 to vector<8x1xf32>
    %83 = arith.addf %79, %82 : vector<8x1xf32>
    %84 = math.rsqrt %83 : vector<8x1xf32>
    %85 = vector.broadcast %84 : vector<8x1xf32> to vector<8x32xf32>
    %86 = arith.mulf %81, %85 : vector<8x32xf32>
    %87 = vector.broadcast %67 : vector<1x32xf32> to vector<8x32xf32>
    %88 = arith.mulf %86, %87 : vector<8x32xf32>
    %89 = vector.broadcast %68 : vector<1x32xf32> to vector<8x32xf32>
    %90 = arith.addf %88, %89 : vector<8x32xf32>
    %c0_56 = arith.constant 0 : index
    %c0_57 = arith.constant 0 : index
    %91 = vector.load %arg10[%c0_56, %c0_57] : memref<32x64xf32, #tpu.memory_space<vmem>>, vector<32x64xf32>
    %cst_58 = arith.constant dense<0.000000e+00> : vector<8x64xf32>
    %92 = tpu.matmul %90, %91, %cst_58 {dimension_numbers = #tpu.dot_dimension_numbers<[1], [0], [0], [1], [0, 0, 1, 1], [], []>} : vector<8x32xf32>, vector<32x64xf32>, vector<8x64xf32> -> vector<8x64xf32>
    %c0_59 = arith.constant 0 : index
    %c0_60 = arith.constant 0 : index
    %93 = vector.load %arg11[%c0_59, %c0_60] : memref<1x64xf32, #tpu.memory_space<vmem>>, vector<1x64xf32>
    %94 = vector.broadcast %93 : vector<1x64xf32> to vector<8x64xf32>
    %95 = arith.addf %92, %94 : vector<8x64xf32>
    %cst_61 = arith.constant 0.000000e+00 : f32
    %96 = vector.broadcast %cst_61 : f32 to vector<8x64xf32>
    %97 = arith.maximumf %95, %96 : vector<8x64xf32>
    %c0_62 = arith.constant 0 : index
    %c0_63 = arith.constant 0 : index
    %98 = vector.load %arg12[%c0_62, %c0_63] : memref<64x32xf32, #tpu.memory_space<vmem>>, vector<64x32xf32>
    %cst_64 = arith.constant dense<0.000000e+00> : vector<8x32xf32>
    %99 = tpu.matmul %97, %98, %cst_64 {dimension_numbers = #tpu.dot_dimension_numbers<[1], [0], [0], [1], [0, 0, 1, 1], [], []>} : vector<8x64xf32>, vector<64x32xf32>, vector<8x32xf32> -> vector<8x32xf32>
    %c0_65 = arith.constant 0 : index
    %c0_66 = arith.constant 0 : index
    %100 = vector.load %arg13[%c0_65, %c0_66] : memref<1x32xf32, #tpu.memory_space<vmem>>, vector<1x32xf32>
    %101 = vector.broadcast %100 : vector<1x32xf32> to vector<8x32xf32>
    %102 = arith.addf %99, %101 : vector<8x32xf32>
    %103 = arith.addf %102, %90 : vector<8x32xf32>
    %c0_67 = arith.constant 0 : index
    %c0_68 = arith.constant 0 : index
    %104 = vector.load %arg14[%c0_67, %c0_68] : memref<1x32xf32, #tpu.memory_space<vmem>>, vector<1x32xf32>
    %c0_69 = arith.constant 0 : index
    %c0_70 = arith.constant 0 : index
    %105 = vector.load %arg15[%c0_69, %c0_70] : memref<1x32xf32, #tpu.memory_space<vmem>>, vector<1x32xf32>
    %cst_71 = arith.constant dense<0.000000e+00> : vector<8xf32>
    %106 = vector.multi_reduction <add>, %103, %cst_71 [1] : vector<8x32xf32> to vector<8xf32>
    %107 = vector.shape_cast %106 : vector<8xf32> to vector<8x1xf32>
    %cst_72 = arith.constant 3.200000e+01 : f32
    %108 = vector.broadcast %cst_72 : f32 to vector<8x1xf32>
    %109 = arith.divf %107, %108 : vector<8x1xf32>
    %110 = vector.broadcast %109 : vector<8x1xf32> to vector<8x32xf32>
    %111 = arith.subf %103, %110 : vector<8x32xf32>
    %112 = arith.mulf %111, %111 : vector<8x32xf32>
    %cst_73 = arith.constant dense<0.000000e+00> : vector<8xf32>
    %113 = vector.multi_reduction <add>, %112, %cst_73 [1] : vector<8x32xf32> to vector<8xf32>
    %114 = vector.shape_cast %113 : vector<8xf32> to vector<8x1xf32>
    %cst_74 = arith.constant 3.200000e+01 : f32
    %115 = vector.broadcast %cst_74 : f32 to vector<8x1xf32>
    %116 = arith.divf %114, %115 : vector<8x1xf32>
    %117 = vector.broadcast %109 : vector<8x1xf32> to vector<8x32xf32>
    %118 = arith.subf %103, %117 : vector<8x32xf32>
    %cst_75 = arith.constant 9.99999974E-6 : f32
    %119 = vector.broadcast %cst_75 : f32 to vector<8x1xf32>
    %120 = arith.addf %116, %119 : vector<8x1xf32>
    %121 = math.rsqrt %120 : vector<8x1xf32>
    %122 = vector.broadcast %121 : vector<8x1xf32> to vector<8x32xf32>
    %123 = arith.mulf %118, %122 : vector<8x32xf32>
    %124 = vector.broadcast %104 : vector<1x32xf32> to vector<8x32xf32>
    %125 = arith.mulf %123, %124 : vector<8x32xf32>
    %126 = vector.broadcast %105 : vector<1x32xf32> to vector<8x32xf32>
    %127 = arith.addf %125, %126 : vector<8x32xf32>
    %c0_76 = arith.constant 0 : index
    %c0_77 = arith.constant 0 : index
    %c0_78 = arith.constant 0 : index
    %128 = vector.load %arg16[%c0_76, %c0_77, %c0_78] : memref<1x8x32xf32, #tpu.memory_space<vmem>>, vector<1x8x32xf32>
    %129 = vector.shape_cast %128 : vector<1x8x32xf32> to vector<8x32xf32>
    %130 = vector.shape_cast %127 : vector<8x32xf32> to vector<1x8x32xf32>
    tpu.vector_store %arg16[%c0_76, %c0_77, %c0_78], %130 {strides = array<i32>} : memref<1x8x32xf32, #tpu.memory_space<vmem>>, vector<1x8x32xf32>,
    return
  }
  func.func @transform_0(%arg0: i32) -> (i32, i32, i32, i32) {
    %c0_i32 = arith.constant 0 : i32
    %c0_i32_0 = arith.constant 0 : i32
    %c0_i32_1 = arith.constant 0 : i32
    %c0_i32_2 = arith.constant 0 : i32
    return %arg0, %c0_i32, %c0_i32_0, %c0_i32_1 : i32, i32, i32, i32
  }
  func.func @transform_1(%arg0: i32) -> (i32, i32, i32, i32) {
    %c0_i32 = arith.constant 0 : i32
    %c0_i32_0 = arith.constant 0 : i32
    %c0_i32_1 = arith.constant 0 : i32
    %c0_i32_2 = arith.constant 0 : i32
    return %arg0, %c0_i32, %c0_i32_0, %c0_i32_1 : i32, i32, i32, i32
  }
  func.func @transform_2(%arg0: i32) -> (i32, i32, i32, i32) {
    %c0_i32 = arith.constant 0 : i32
    %c0_i32_0 = arith.constant 0 : i32
    %c0_i32_1 = arith.constant 0 : i32
    %c0_i32_2 = arith.constant 0 : i32
    return %arg0, %c0_i32, %c0_i32_0, %c0_i32_1 : i32, i32, i32, i32
  }
  func.func @transform_3(%arg0: i32) -> (i32, i32, i32) {
    %c0_i32 = arith.constant 0 : i32
    %c0_i32_0 = arith.constant 0 : i32
    %c0_i32_1 = arith.constant 0 : i32
    return %arg0, %c0_i32, %c0_i32_0 : i32, i32, i32
  }
  func.func @transform_4(%arg0: i32) -> (i32, i32) {
    %c0_i32 = arith.constant 0 : i32
    %c0_i32_0 = arith.constant 0 : i32
    %c0_i32_1 = arith.constant 0 : i32
    return %c0_i32, %c0_i32_0 : i32, i32
  }
  func.func @transform_5(%arg0: i32) -> (i32, i32) {
    %c0_i32 = arith.constant 0 : i32
    %c0_i32_0 = arith.constant 0 : i32
    %c0_i32_1 = arith.constant 0 : i32
    return %c0_i32, %c0_i32_0 : i32, i32
  }
  func.func @transform_6(%arg0: i32) -> (i32, i32, i32) {
    %c0_i32 = arith.constant 0 : i32
    %c0_i32_0 = arith.constant 0 : i32
    %c0_i32_1 = arith.constant 0 : i32
    return %arg0, %c0_i32, %c0_i32_0 : i32, i32, i32
  }
  func.func @transform_7(%arg0: i32) -> (i32, i32) {
    %c0_i32 = arith.constant 0 : i32
    %c0_i32_0 = arith.constant 0 : i32
    %c0_i32_1 = arith.constant 0 : i32
    return %c0_i32, %c0_i32_0 : i32, i32
  }
  func.func @transform_8(%arg0: i32) -> (i32, i32) {
    %c0_i32 = arith.constant 0 : i32
    %c0_i32_0 = arith.constant 0 : i32
    %c0_i32_1 = arith.constant 0 : i32
    return %c0_i32, %c0_i32_0 : i32, i32
  }
  func.func @transform_9(%arg0: i32) -> (i32, i32) {
    %c0_i32 = arith.constant 0 : i32
    %c0_i32_0 = arith.constant 0 : i32
    %c0_i32_1 = arith.constant 0 : i32
    return %c0_i32, %c0_i32_0 : i32, i32
  }
  func.func @transform_10(%arg0: i32) -> (i32, i32) {
    %c0_i32 = arith.constant 0 : i32
    %c0_i32_0 = arith.constant 0 : i32
    %c0_i32_1 = arith.constant 0 : i32
    return %c0_i32, %c0_i32_0 : i32, i32
  }
  func.func @transform_11(%arg0: i32) -> (i32, i32) {
    %c0_i32 = arith.constant 0 : i32
    %c0_i32_0 = arith.constant 0 : i32
    %c0_i32_1 = arith.constant 0 : i32
    return %c0_i32, %c0_i32_0 : i32, i32
  }
  func.func @transform_12(%arg0: i32) -> (i32, i32) {
    %c0_i32 = arith.constant 0 : i32
    %c0_i32_0 = arith.constant 0 : i32
    %c0_i32_1 = arith.constant 0 : i32
    return %c0_i32, %c0_i32_0 : i32, i32
  }
  func.func @transform_13(%arg0: i32) -> (i32, i32) {
    %c0_i32 = arith.constant 0 : i32
    %c0_i32_0 = arith.constant 0 : i32
    %c0_i32_1 = arith.constant 0 : i32
    return %c0_i32, %c0_i32_0 : i32, i32
  }
  func.func @transform_14(%arg0: i32) -> (i32, i32) {
    %c0_i32 = arith.constant 0 : i32
    %c0_i32_0 = arith.constant 0 : i32
    %c0_i32_1 = arith.constant 0 : i32
    return %c0_i32, %c0_i32_0 : i32, i32
  }
  func.func @transform_15(%arg0: i32) -> (i32, i32, i32) {
    %c0_i32 = arith.constant 0 : i32
    %c0_i32_0 = arith.constant 0 : i32
    %c0_i32_1 = arith.constant 0 : i32
    return %arg0, %c0_i32, %c0_i32_0 : i32, i32, i32
  }
  func.func @transform_16(%arg0: i32) -> (i32, i32, i32) {
    %c0_i32 = arith.constant 0 : i32
    %c0_i32_0 = arith.constant 0 : i32
    %c0_i32_1 = arith.constant 0 : i32
    return %arg0, %c0_i32, %c0_i32_0 : i32, i32, i32
  }
}

</mosaic_0001>

<llo_original>
// kernel: decoder_layer_forward.3
$region0: #{decoder_layer_forward.3}
  #allocation0 [shape = 'u32[]', space=smem, size = 0x4, offset = 0x4, fixed_abs, tag = 'smem constant byte address 0x4 - core index']
  #allocation1 [shape = 'u32[72,128]{1,0:T(1,128)}', space=vmem, size = 0x9000, scoped, tag = 'internal scratch']
  %s0 = inlined_call_operand.hbm [shape: f32[16,32], index: 0, kind: input, shape index: {}]
  %s1 = inlined_call_operand.hbm [shape: f32[32,96], index: 1, kind: input, shape index: {}]
  %s2 = inlined_call_operand.vmem [shape: f32[1,96], index: 2, kind: input, shape index: {}]
  %s3 = inlined_call_operand.vmem [shape: f32[16,32], index: 3, kind: input, shape index: {}]
  %s4 = inlined_call_operand.hbm [shape: f32[32,64], index: 4, kind: input, shape index: {}]
  %s5 = inlined_call_operand.vmem [shape: f32[1,64], index: 5, kind: input, shape index: {}]
  %s6 = inlined_call_operand.vmem [shape: f32[16,96], index: 6, kind: output, shape index: {0}]
  %s7 = inlined_call_operand.vmem [shape: f32[16,64], index: 7, kind: output, shape index: {1}]
  %8 = xla_tuple %s6, %s7
  %s9 = sld [smem:[#allocation0]]
  $region54: #{decoder_layer_forward.3} parent=0
    _
  %s11 = ssub.s32 1, %s9
  %s12 = scalar_select 0, %s11, %s9
  $region1: #{decoder_layer_forward.3} parent=0
    #allocation2 [shape = 'u8[8192]{0}', space=vmem, size = 0x2000, scoped, tag = 'input window, operand 0, single buffered']
    #allocation3 [shape = 's32[1]{0}', space=sflag, size = 0x4, scoped, tag = 'scoped memory for decoder_layer_forward.3']
    #allocation4 [shape = 'u8[16384]{0}', space=vmem, size = 0x4000, scoped, tag = 'input window, operand 1, single buffered']
    #allocation5 [shape = 's32[1]{0}', space=sflag, size = 0x4, scoped, tag = 'scoped memory for decoder_layer_forward.3']
    #allocation6 [shape = 'u8[16384]{0}', space=vmem, size = 0x4000, scoped, tag = 'input window, operand 4, single buffered']
    %13 = vsyncpa [#allocation3], 0
    %14 = vsyncpa [#allocation5], 0
    // Predicated region
    $region2: #{decoder_layer_forward.3} parent=1 // pred_check
      _
    $region3: #{decoder_layer_forward.3} parent=1 // pred_check_branch
      %16 = sbr.rel (0) target = $region5
    $region4: #{decoder_layer_forward.3} parent=1 // pred_region
      %18 = vsyncadd [#allocation3], 0
      %s19 = sshll.u32 %s0, 4
      %s20 = int_to_ptr.hbm [resolvable:$true] %s19
      %s21 = sshll.u32 [#allocation2], 4
      %s22 = int_to_ptr.vmem [resolvable:$true] %s21
      %27 = dma.hbm_to_vmem [thread:$0]  %s20, 256, %s22, [#allocation3], 128, 128, 8
    $region5: #{decoder_layer_forward.3} parent=1 // pred_fallthru
      _
    // Predicated region
    $region6: #{decoder_layer_forward.3} parent=1 // pred_check
      _
    $region7: #{decoder_layer_forward.3} parent=1 // pred_check_branch
      %29 = sbr.rel (0) target = $region9
    $region8: #{decoder_layer_forward.3} parent=1 // pred_region
      %31 = vsyncadd [#allocation5], 0
      %s32 = sshll.u32 %s1, 4
      %s33 = int_to_ptr.hbm [resolvable:$true] %s32
      %s34 = sshll.u32 [#allocation4], 4
      %s35 = int_to_ptr.vmem [resolvable:$true] %s34
      %40 = dma.hbm_to_vmem [thread:$0]  %s33, 512, %s35, [#allocation5], 128, 128, 8
    $region9: #{decoder_layer_forward.3} parent=1 // pred_fallthru
      _
    // Predicated region
    $region10: #{decoder_layer_forward.3} parent=1 // pred_check
      _
    $region11: #{decoder_layer_forward.3} parent=1 // pred_check_branch
      %42 = sbr.rel (0) target = $region13
    $region12: #{decoder_layer_forward.3} parent=1 // pred_region
      _
    $region13: #{decoder_layer_forward.3} parent=1 // pred_fallthru
      _
    // Predicated region
    $region14: #{decoder_layer_forward.3} parent=1 // pred_check
      _
    $region15: #{decoder_layer_forward.3} parent=1 // pred_check_branch
      %44 = sbr.rel (0) target = $region17
    $region16: #{decoder_layer_forward.3} parent=1 // pred_region
      _
    $region17: #{decoder_layer_forward.3} parent=1 // pred_fallthru
      _
    // Predicated region
    $region18: #{decoder_layer_forward.3} parent=1 // pred_check
      _
    $region19: #{decoder_layer_forward.3} parent=1 // pred_check_branch
      %46 = sbr.rel (0) target = $region21
    $region20: #{decoder_layer_forward.3} parent=1 // pred_region
      %48 = vsyncadd [#allocation5], 0
      %s49 = sshll.u32 %s4, 4
      %s50 = int_to_ptr.hbm [resolvable:$true] %s49
      %s51 = sshll.u32 [#allocation6], 4
      %s52 = int_to_ptr.vmem [resolvable:$true] %s51
      %57 = dma.hbm_to_vmem [thread:$0]  %s50, 512, %s52, [#allocation5], 128, 128, 8
    $region21: #{decoder_layer_forward.3} parent=1 // pred_fallthru
      _
    // Predicated region
    $region22: #{decoder_layer_forward.3} parent=1 // pred_check
      _
    $region23: #{decoder_layer_forward.3} parent=1 // pred_check_branch
      %59 = sbr.rel (0) target = $region25
    $region24: #{decoder_layer_forward.3} parent=1 // pred_region
      _
    $region25: #{decoder_layer_forward.3} parent=1 // pred_fallthru
      _
    // Predicated region
    $region26: #{decoder_layer_forward.3} parent=1 // pred_check
      _
    $region27: #{decoder_layer_forward.3} parent=1 // pred_check_branch
      %61 = sbr.rel (0) target = $region29
    $region28: #{decoder_layer_forward.3} parent=1 // pred_region
      %63 = dma.done [#allocation3], 256
    $region29: #{decoder_layer_forward.3} parent=1 // pred_fallthru
      _
    // Predicated region
    $region30: #{decoder_layer_forward.3} parent=1 // pred_check
      _
    $region31: #{decoder_layer_forward.3} parent=1 // pred_check_branch
      %65 = sbr.rel (0) target = $region33
    $region32: #{decoder_layer_forward.3} parent=1 // pred_region
      %67 = dma.done [#allocation5], 512
    $region33: #{decoder_layer_forward.3} parent=1 // pred_fallthru
      _
    // Predicated region
    $region34: #{decoder_layer_forward.3} parent=1 // pred_check
      _
    $region35: #{decoder_layer_forward.3} parent=1 // pred_check_branch
      %69 = sbr.rel (0) target = $region37
    $region36: #{decoder_layer_forward.3} parent=1 // pred_region
      %71 = dma.done [#allocation5], 512
    $region37: #{decoder_layer_forward.3} parent=1 // pred_fallthru
      _
    %v72 = vld [vmem:[#allocation2] sm:$0xff]
    %v73 = vld [vmem:[#allocation2 + $0x8] sm:$0xff]
    %v74 = vld [vmem:[#allocation4] sm:$0xff]
    %v75 = vld [vmem:[#allocation4 + $0x8] sm:$0xff]
    %v76 = vld [vmem:[#allocation4 + $0x10] sm:$0xff]
    %v77 = vld [vmem:[#allocation4 + $0x18] sm:$0xff]
    %v78 = vld [vmem:[%s2] sm:$0x1]
    %v80 = vperm.slane %v78, 0
    %vm82 = vcmask 261120
    %v84 = vsel %vm82, %v72, 0
    %v87 = vsel %vm82, %v73, 0
    %89 = vmatpush.msra.mxu0 0.0
    %90 = vmatpush.msra.mxu0 0.0
    %91 = vmatpush.msra.mxu0 0.0
    %92 = vmatpush.msra.mxu0 0.0
    %93 = vmatpush.msra.mxu0 0.0
    %94 = vmatpush.msra.mxu0 0.0
    %95 = vmatpush.msra.mxu0 0.0
    %96 = vmatpush.msra.mxu0 0.0
    %97 = vmatpush.msra.mxu0 0.0
    %98 = vmatpush.msra.mxu0 0.0
    %99 = vmatpush.msra.mxu0 0.0
    %100 = vmatpush.msra.mxu0 0.0
    %101 = vmatpush.msra.mxu0 %v77
    %102 = vmatpush.msra.mxu0 %v76
    %103 = vmatpush.msra.mxu0 %v75
    %104 = vmatpush.msra.mxu0 %v74
    %105 = vmatmul.f32.gmra.mxu0 %v84
    %v106 = vpop.f32.mrf.mxu0
    %v107 = vadd.f32 %v80, %v106
    %108 = vmatmul.f32.gmra.mxu0 %v87
    %v109 = vpop.f32.mrf.mxu0
    %v110 = vadd.f32 %v80, %v109
    %111 = vdwg.mxu0
    %vm112 = vcmask 785408
    %113 = vst.msk [vmem:[%s6] sm:$0xff] %vm112, %v107
    %114 = vst.msk [vmem:[%s6 + $0x8] sm:$0xff] %vm112, %v110
    %v115 = vld [vmem:[%s3] sm:$0xff]
    %v116 = vld [vmem:[%s3 + $0x8] sm:$0xff]
    %v117 = vld [vmem:[#allocation6] sm:$0xff]
    %v118 = vld [vmem:[#allocation6 + $0x8] sm:$0xff]
    %v119 = vld [vmem:[#allocation6 + $0x10] sm:$0xff]
    %v120 = vld [vmem:[#allocation6 + $0x18] sm:$0xff]
    %v121 = vld [vmem:[%s5] sm:$0x1]
    %v123 = vperm.slane %v121, 0
    %v126 = vsel %vm82, %v115, 0
    %v129 = vsel %vm82, %v116, 0
    %131 = vmatpush.msra.mxu0 0.0
    %132 = vmatpush.msra.mxu0 0.0
    %133 = vmatpush.msra.mxu0 0.0
    %134 = vmatpush.msra.mxu0 0.0
    %135 = vmatpush.msra.mxu0 0.0
    %136 = vmatpush.msra.mxu0 0.0
    %137 = vmatpush.msra.mxu0 0.0
    %138 = vmatpush.msra.mxu0 0.0
    %139 = vmatpush.msra.mxu0 0.0
    %140 = vmatpush.msra.mxu0 0.0
    %141 = vmatpush.msra.mxu0 0.0
    %142 = vmatpush.msra.mxu0 0.0
    %143 = vmatpush.msra.mxu0 %v120
    %144 = vmatpush.msra.mxu0 %v119
    %145 = vmatpush.msra.mxu0 %v118
    %146 = vmatpush.msra.mxu0 %v117
    %147 = vmatmul.f32.gmra.mxu0 %v126
    %v148 = vpop.f32.mrf.mxu0
    %v149 = vadd.f32 %v123, %v148
    %150 = vmatmul.f32.gmra.mxu0 %v129
    %v151 = vpop.f32.mrf.mxu0
    %v152 = vadd.f32 %v123, %v151
    %153 = vdwg.mxu0
    %vm154 = vcmask 523264
    %155 = vst.msk [vmem:[%s7] sm:$0xff] %vm154, %v149
    %156 = vst.msk [vmem:[%s7 + $0x8] sm:$0xff] %vm154, %v152
    // Predicated region
    $region38: #{decoder_layer_forward.3} parent=1 // pred_check
      _
    $region39: #{decoder_layer_forward.3} parent=1 // pred_check_branch
      %158 = sbr.rel (0) target = $region41
    $region40: #{decoder_layer_forward.3} parent=1 // pred_region
      _
    $region41: #{decoder_layer_forward.3} parent=1 // pred_fallthru
      _
    // Predicated region
    $region42: #{decoder_layer_forward.3} parent=1 // pred_check
      _
    $region43: #{decoder_layer_forward.3} parent=1 // pred_check_branch
      %160 = sbr.rel (0) target = $region45
    $region44: #{decoder_layer_forward.3} parent=1 // pred_region
      _
    $region45: #{decoder_layer_forward.3} parent=1 // pred_fallthru
      _
    // Predicated region
    $region46: #{decoder_layer_forward.3} parent=1 // pred_check
      _
    $region47: #{decoder_layer_forward.3} parent=1 // pred_check_branch
      %162 = sbr.rel (0) target = $region49
    $region48: #{decoder_layer_forward.3} parent=1 // pred_region
      _
    $region49: #{decoder_layer_forward.3} parent=1 // pred_fallthru
      _
    // Predicated region
    $region50: #{decoder_layer_forward.3} parent=1 // pred_check
      _
    $region51: #{decoder_layer_forward.3} parent=1 // pred_check_branch
      %164 = sbr.rel (0) target = $region53
    $region52: #{decoder_layer_forward.3} parent=1 // pred_region
      _
    $region53: #{decoder_layer_forward.3} parent=1 // pred_fallthru
      _
    %165 = vsyncpa [#allocation3], 1
    %166 = vsyncpa [#allocation5], 1

// kernel: decoder_layer_forward.4
$region0: #{decoder_layer_forward.4}
  #allocation0 [shape = 'u32[]', space=smem, size = 0x4, offset = 0x4, fixed_abs, tag = 'smem constant byte address 0x4 - core index']
  #allocation1 [shape = 'u32[72,128]{1,0:T(1,128)}', space=vmem, size = 0x9000, scoped, tag = 'internal scratch']
  #allocation2 [shape = 'f32[8,32]{1,0:T(8,128)}', space=vmem, size = 0x1000, scoped, tag = 'scratch operand']
  %s0 = inlined_call_operand.vmem [shape: f32[2,4,8,8], index: 0, kind: input, shape index: {}]
  %s1 = inlined_call_operand.vmem [shape: f32[2,4,8,8], index: 1, kind: input, shape index: {}]
  %s2 = inlined_call_operand.vmem [shape: f32[2,4,8,8], index: 2, kind: input, shape index: {}]
  %s3 = inlined_call_operand.vmem [shape: f32[2,8,8], index: 3, kind: input, shape index: {}]
  %s4 = inlined_call_operand.vmem [shape: f32[32,32], index: 4, kind: input, shape index: {}]
  %s5 = inlined_call_operand.vmem [shape: f32[1,32], index: 5, kind: input, shape index: {}]
  %s6 = inlined_call_operand.vmem [shape: f32[2,8,32], index: 6, kind: input, shape index: {}]
  %s7 = inlined_call_operand.vmem [shape: f32[1,32], index: 7, kind: input, shape index: {}]
  %s8 = inlined_call_operand.vmem [shape: f32[1,32], index: 8, kind: input, shape index: {}]
  %s9 = inlined_call_operand.vmem [shape: f32[32,32], index: 9, kind: input, shape index: {}]
  %s10 = inlined_call_operand.vmem [shape: f32[1,32], index: 10, kind: input, shape index: {}]
  %s11 = inlined_call_operand.vmem [shape: f32[2,8,32], index: 11, kind: output, shape index: {0}]
  %s12 = inlined_call_operand.vmem [shape: f32[2,8,32], index: 12, kind: output, shape index: {1}]
  %s13 = inlined_call_operand.vmem [shape: f32[2,8,32], index: 13, kind: output, shape index: {2}]
  %14 = xla_tuple %s11, %s12, %s13
  %s15 = sld [smem:[#allocation0]]
  $region93: #{decoder_layer_forward.4} parent=0
    _
  %s17 = ssub.s32 1, %s15
  %s18 = scalar_select 0, %s17, %s15
  loop: start=0, step=1, limit=4
  $region2: #{decoder_layer_forward.4} parent=0 // loop_pre_header
    _
  $region3: #{decoder_layer_forward.4} parent=0 // loop_header
    %s20 = sphi 0, %s24
    %p21 = scmp.ge.s32.totalorder %s20, 4
    %s30 = sphi 0, %s32
    %s33 = sphi 0, %s30
    %s34 = sphi 0, %s33
    %s50 = sphi 0, %s34
    %s56 = sphi 0, %s58
    %s59 = sphi 0, %s56
    %s60 = sphi 0, %s59
    %s76 = sphi 0, %s60
    %s82 = sphi 0, %s84
    %s85 = sphi 0, %s82
    %s86 = sphi 0, %s85
    %s102 = sphi 0, %s86
    %s108 = sphi 0, %s110
    %s111 = sphi 0, %s108
    %s112 = sphi 0, %s111
    %s128 = sphi 0, %s112
    %s132 = sphi 0, %s132
    %s134 = sphi 0, %s132
    %s135 = sphi 0, %s134
    %s149 = sphi 0, %s135
    %s153 = sphi 0, %s153
    %s155 = sphi 0, %s153
    %s156 = sphi 0, %s155
    %s170 = sphi 0, %s156
    %s176 = sphi 0, %s178
    %s179 = sphi 0, %s176
    %s180 = sphi 0, %s179
    %s196 = sphi 0, %s180
    %s200 = sphi 0, %s200
    %s202 = sphi 0, %s200
    %s203 = sphi 0, %s202
    %s217 = sphi 0, %s203
    %s221 = sphi 0, %s221
    %s223 = sphi 0, %s221
    %s224 = sphi 0, %s223
    %s238 = sphi 0, %s224
    %s242 = sphi 0, %s242
    %s244 = sphi 0, %s242
    %s245 = sphi 0, %s244
    %s259 = sphi 0, %s245
    %s263 = sphi 0, %s263
    %s265 = sphi 0, %s263
    %s266 = sphi 0, %s265
    %s280 = sphi 0, %s266
    %s286 = sphi 0, %s288
    %s289 = sphi 0, %s286
    %s290 = sphi 0, %s289
    %s306 = sphi 0, %s290
    %s312 = sphi 0, %s314
    %s315 = sphi 0, %s312
    %s316 = sphi 0, %s315
    %s332 = sphi 0, %s316
    %s338 = sphi 0, %s340
    %s341 = sphi 0, %s338
    %s342 = sphi 0, %s341
    %s358 = sphi 0, %s342
  $region4: #{decoder_layer_forward.4} parent=0 // loop_header_branch
    %23 = sbr.rel (%p21) target = $region8
  $region5: #{decoder_layer_forward.4} parent=0 // loop_body
    %s25 = ssub.s32 %s20, 1
    %s26 = ssub.s32 %s20, 2
    %s27 = sadd.s32 %s20, 1
    %s28 = ssub.s32 %s20, %s27
    %p29 = scmp.eq.s32.totalorder %s28, 0
    %s31 = sadd.s32 %s30, 1
    %s32 = scalar_select %p29, %s30, %s31
    %p35 = pneg %p29
    %p36 = scmp.eq.s32.totalorder %s20, 1
    %p37 = por %p35, %p36
    %p38 = scmp.ne.s32.totalorder %s30, %s33
    %p39 = scmp.eq.s32.totalorder %s20, 0
    %p40 = por %p38, %p39
    %p41 = scmp.ne.s32.totalorder %s30, %s33
    %p42 = scmp.eq.s32.totalorder %s25, 1
    %p43 = por %p41, %p42
    %p44 = scmp.ne.s32.totalorder %s33, %s34
    %p45 = scmp.eq.s32.totalorder %s25, 0
    %p46 = por %p44, %p45
    %p47 = scmp.ne.s32.totalorder %s33, %s34
    %p48 = scmp.eq.s32.totalorder %s26, 1
    %p49 = por %p47, %p48
    %p51 = scmp.ne.s32.totalorder %s34, %s50
    %p52 = scmp.eq.s32.totalorder %s26, 0
    %p53 = por %p51, %p52
    %s54 = ssub.s32 %s20, %s27
    %p55 = scmp.eq.s32.totalorder %s54, 0
    %s57 = sadd.s32 %s56, 1
    %s58 = scalar_select %p55, %s56, %s57
    %p61 = pneg %p55
    %p62 = scmp.eq.s32.totalorder %s20, 1
    %p63 = por %p61, %p62
    %p64 = scmp.ne.s32.totalorder %s56, %s59
    %p65 = scmp.eq.s32.totalorder %s20, 0
    %p66 = por %p64, %p65
    %p67 = scmp.ne.s32.totalorder %s56, %s59
    %p68 = scmp.eq.s32.totalorder %s25, 1
    %p69 = por %p67, %p68
    %p70 = scmp.ne.s32.totalorder %s59, %s60
    %p71 = scmp.eq.s32.totalorder %s25, 0
    %p72 = por %p70, %p71
    %p73 = scmp.ne.s32.totalorder %s59, %s60
    %p74 = scmp.eq.s32.totalorder %s26, 1
    %p75 = por %p73, %p74
    %p77 = scmp.ne.s32.totalorder %s60, %s76
    %p78 = scmp.eq.s32.totalorder %s26, 0
    %p79 = por %p77, %p78
    %s80 = ssub.s32 %s20, %s27
    %p81 = scmp.eq.s32.totalorder %s80, 0
    %s83 = sadd.s32 %s82, 1
    %s84 = scalar_select %p81, %s82, %s83
    %p87 = pneg %p81
    %p88 = scmp.eq.s32.totalorder %s20, 1
    %p89 = por %p87, %p88
    %p90 = scmp.ne.s32.totalorder %s82, %s85
    %p91 = scmp.eq.s32.totalorder %s20, 0
    %p92 = por %p90, %p91
    %p93 = scmp.ne.s32.totalorder %s82, %s85
    %p94 = scmp.eq.s32.totalorder %s25, 1
    %p95 = por %p93, %p94
    %p96 = scmp.ne.s32.totalorder %s85, %s86
    %p97 = scmp.eq.s32.totalorder %s25, 0
    %p98 = por %p96, %p97
    %p99 = scmp.ne.s32.totalorder %s85, %s86
    %p100 = scmp.eq.s32.totalorder %s26, 1
    %p101 = por %p99, %p100
    %p103 = scmp.ne.s32.totalorder %s86, %s102
    %p104 = scmp.eq.s32.totalorder %s26, 0
    %p105 = por %p103, %p104
    %s106 = ssub.s32 %s20, %s27
    %p107 = scmp.eq.s32.totalorder %s106, 0
    %s109 = sadd.s32 %s108, 1
    %s110 = scalar_select %p107, %s108, %s109
    %p113 = pneg %p107
    %p114 = scmp.eq.s32.totalorder %s20, 1
    %p115 = por %p113, %p114
    %p116 = scmp.ne.s32.totalorder %s108, %s111
    %p117 = scmp.eq.s32.totalorder %s20, 0
    %p118 = por %p116, %p117
    %p119 = scmp.ne.s32.totalorder %s108, %s111
    %p120 = scmp.eq.s32.totalorder %s25, 1
    %p121 = por %p119, %p120
    %p122 = scmp.ne.s32.totalorder %s111, %s112
    %p123 = scmp.eq.s32.totalorder %s25, 0
    %p124 = por %p122, %p123
    %p125 = scmp.ne.s32.totalorder %s111, %s112
    %p126 = scmp.eq.s32.totalorder %s26, 1
    %p127 = por %p125, %p126
    %p129 = scmp.ne.s32.totalorder %s112, %s128
    %p130 = scmp.eq.s32.totalorder %s26, 0
    %p131 = por %p129, %p130
    %s133 = sadd.s32 %s132, 1
    %p136 = scmp.eq.s32.totalorder %s20, 1
    %p137 = scmp.ne.s32.totalorder %s132, %s134
    %p138 = scmp.eq.s32.totalorder %s20, 0
    %p139 = por %p137, %p138
    %p140 = scmp.ne.s32.totalorder %s132, %s134
    %p141 = scmp.eq.s32.totalorder %s25, 1
    %p142 = por %p140, %p141
    %p143 = scmp.ne.s32.totalorder %s134, %s135
    %p144 = scmp.eq.s32.totalorder %s25, 0
    %p145 = por %p143, %p144
    %p146 = scmp.ne.s32.totalorder %s134, %s135
    %p147 = scmp.eq.s32.totalorder %s26, 1
    %p148 = por %p146, %p147
    %p150 = scmp.ne.s32.totalorder %s135, %s149
    %p151 = scmp.eq.s32.totalorder %s26, 0
    %p152 = por %p150, %p151
    %s154 = sadd.s32 %s153, 1
    %p157 = scmp.eq.s32.totalorder %s20, 1
    %p158 = scmp.ne.s32.totalorder %s153, %s155
    %p159 = scmp.eq.s32.totalorder %s20, 0
    %p160 = por %p158, %p159
    %p161 = scmp.ne.s32.totalorder %s153, %s155
    %p162 = scmp.eq.s32.totalorder %s25, 1
    %p163 = por %p161, %p162
    %p164 = scmp.ne.s32.totalorder %s155, %s156
    %p165 = scmp.eq.s32.totalorder %s25, 0
    %p166 = por %p164, %p165
    %p167 = scmp.ne.s32.totalorder %s155, %s156
    %p168 = scmp.eq.s32.totalorder %s26, 1
    %p169 = por %p167, %p168
    %p171 = scmp.ne.s32.totalorder %s156, %s170
    %p172 = scmp.eq.s32.totalorder %s26, 0
    %p173 = por %p171, %p172
    %s174 = ssub.s32 %s20, %s27
    %p175 = scmp.eq.s32.totalorder %s174, 0
    %s177 = sadd.s32 %s176, 1
    %s178 = scalar_select %p175, %s176, %s177
    %p181 = pneg %p175
    %p182 = scmp.eq.s32.totalorder %s20, 1
    %p183 = por %p181, %p182
    %p184 = scmp.ne.s32.totalorder %s176, %s179
    %p185 = scmp.eq.s32.totalorder %s20, 0
    %p186 = por %p184, %p185
    %p187 = scmp.ne.s32.totalorder %s176, %s179
    %p188 = scmp.eq.s32.totalorder %s25, 1
    %p189 = por %p187, %p188
    %p190 = scmp.ne.s32.totalorder %s179, %s180
    %p191 = scmp.eq.s32.totalorder %s25, 0
    %p192 = por %p190, %p191
    %p193 = scmp.ne.s32.totalorder %s179, %s180
    %p194 = scmp.eq.s32.totalorder %s26, 1
    %p195 = por %p193, %p194
    %p197 = scmp.ne.s32.totalorder %s180, %s196
    %p198 = scmp.eq.s32.totalorder %s26, 0
    %p199 = por %p197, %p198
    %s201 = sadd.s32 %s200, 1
    %p204 = scmp.eq.s32.totalorder %s20, 1
    %p205 = scmp.ne.s32.totalorder %s200, %s202
    %p206 = scmp.eq.s32.totalorder %s20, 0
    %p207 = por %p205, %p206
    %p208 = scmp.ne.s32.totalorder %s200, %s202
    %p209 = scmp.eq.s32.totalorder %s25, 1
    %p210 = por %p208, %p209
    %p211 = scmp.ne.s32.totalorder %s202, %s203
    %p212 = scmp.eq.s32.totalorder %s25, 0
    %p213 = por %p211, %p212
    %p214 = scmp.ne.s32.totalorder %s202, %s203
    %p215 = scmp.eq.s32.totalorder %s26, 1
    %p216 = por %p214, %p215
    %p218 = scmp.ne.s32.totalorder %s203, %s217
    %p219 = scmp.eq.s32.totalorder %s26, 0
    %p220 = por %p218, %p219
    %s222 = sadd.s32 %s221, 1
    %p225 = scmp.eq.s32.totalorder %s20, 1
    %p226 = scmp.ne.s32.totalorder %s221, %s223
    %p227 = scmp.eq.s32.totalorder %s20, 0
    %p228 = por %p226, %p227
    %p229 = scmp.ne.s32.totalorder %s221, %s223
    %p230 = scmp.eq.s32.totalorder %s25, 1
    %p231 = por %p229, %p230
    %p232 = scmp.ne.s32.totalorder %s223, %s224
    %p233 = scmp.eq.s32.totalorder %s25, 0
    %p234 = por %p232, %p233
    %p235 = scmp.ne.s32.totalorder %s223, %s224
    %p236 = scmp.eq.s32.totalorder %s26, 1
    %p237 = por %p235, %p236
    %p239 = scmp.ne.s32.totalorder %s224, %s238
    %p240 = scmp.eq.s32.totalorder %s26, 0
    %p241 = por %p239, %p240
    %s243 = sadd.s32 %s242, 1
    %p246 = scmp.eq.s32.totalorder %s20, 1
    %p247 = scmp.ne.s32.totalorder %s242, %s244
    %p248 = scmp.eq.s32.totalorder %s20, 0
    %p249 = por %p247, %p248
    %p250 = scmp.ne.s32.totalorder %s242, %s244
    %p251 = scmp.eq.s32.totalorder %s25, 1
    %p252 = por %p250, %p251
    %p253 = scmp.ne.s32.totalorder %s244, %s245
    %p254 = scmp.eq.s32.totalorder %s25, 0
    %p255 = por %p253, %p254
    %p256 = scmp.ne.s32.totalorder %s244, %s245
    %p257 = scmp.eq.s32.totalorder %s26, 1
    %p258 = por %p256, %p257
    %p260 = scmp.ne.s32.totalorder %s245, %s259
    %p261 = scmp.eq.s32.totalorder %s26, 0
    %p262 = por %p260, %p261
    %s264 = sadd.s32 %s263, 1
    %p267 = scmp.eq.s32.totalorder %s20, 1
    %p268 = scmp.ne.s32.totalorder %s263, %s265
    %p269 = scmp.eq.s32.totalorder %s20, 0
    %p270 = por %p268, %p269
    %p271 = scmp.ne.s32.totalorder %s263, %s265
    %p272 = scmp.eq.s32.totalorder %s25, 1
    %p273 = por %p271, %p272
    %p274 = scmp.ne.s32.totalorder %s265, %s266
    %p275 = scmp.eq.s32.totalorder %s25, 0
    %p276 = por %p274, %p275
    %p277 = scmp.ne.s32.totalorder %s265, %s266
    %p278 = scmp.eq.s32.totalorder %s26, 1
    %p279 = por %p277, %p278
    %p281 = scmp.ne.s32.totalorder %s266, %s280
    %p282 = scmp.eq.s32.totalorder %s26, 0
    %p283 = por %p281, %p282
    %s284 = ssub.s32 %s20, %s27
    %p285 = scmp.eq.s32.totalorder %s284, 0
    %s287 = sadd.s32 %s286, 1
    %s288 = scalar_select %p285, %s286, %s287
    %p291 = pneg %p285
    %p292 = scmp.eq.s32.totalorder %s20, 1
    %p293 = por %p291, %p292
    %p294 = scmp.ne.s32.totalorder %s286, %s289
    %p295 = scmp.eq.s32.totalorder %s20, 0
    %p296 = por %p294, %p295
    %p297 = scmp.ne.s32.totalorder %s286, %s289
    %p298 = scmp.eq.s32.totalorder %s25, 1
    %p299 = por %p297, %p298
    %p300 = scmp.ne.s32.totalorder %s289, %s290
    %p301 = scmp.eq.s32.totalorder %s25, 0
    %p302 = por %p300, %p301
    %p303 = scmp.ne.s32.totalorder %s289, %s290
    %p304 = scmp.eq.s32.totalorder %s26, 1
    %p305 = por %p303, %p304
    %p307 = scmp.ne.s32.totalorder %s290, %s306
    %p308 = scmp.eq.s32.totalorder %s26, 0
    %p309 = por %p307, %p308
    %s310 = ssub.s32 %s20, %s27
    %p311 = scmp.eq.s32.totalorder %s310, 0
    %s313 = sadd.s32 %s312, 1
    %s314 = scalar_select %p311, %s312, %s313
    %p317 = pneg %p311
    %p318 = scmp.eq.s32.totalorder %s20, 1
    %p319 = por %p317, %p318
    %p320 = scmp.ne.s32.totalorder %s312, %s315
    %p321 = scmp.eq.s32.totalorder %s20, 0
    %p322 = por %p320, %p321
    %p323 = scmp.ne.s32.totalorder %s312, %s315
    %p324 = scmp.eq.s32.totalorder %s25, 1
    %p325 = por %p323, %p324
    %p326 = scmp.ne.s32.totalorder %s315, %s316
    %p327 = scmp.eq.s32.totalorder %s25, 0
    %p328 = por %p326, %p327
    %p329 = scmp.ne.s32.totalorder %s315, %s316
    %p330 = scmp.eq.s32.totalorder %s26, 1
    %p331 = por %p329, %p330
    %p333 = scmp.ne.s32.totalorder %s316, %s332
    %p334 = scmp.eq.s32.totalorder %s26, 0
    %p335 = por %p333, %p334
    %s336 = ssub.s32 %s20, %s27
    %p337 = scmp.eq.s32.totalorder %s336, 0
    %s339 = sadd.s32 %s338, 1
    %s340 = scalar_select %p337, %s338, %s339
    %p343 = pneg %p337
    %p344 = scmp.eq.s32.totalorder %s20, 1
    %p345 = por %p343, %p344
    %p346 = scmp.ne.s32.totalorder %s338, %s341
    %p347 = scmp.eq.s32.totalorder %s20, 0
    %p348 = por %p346, %p347
    %p349 = scmp.ne.s32.totalorder %s338, %s341
    %p350 = scmp.eq.s32.totalorder %s25, 1
    %p351 = por %p349, %p350
    %p352 = scmp.ne.s32.totalorder %s341, %s342
    %p353 = scmp.eq.s32.totalorder %s25, 0
    %p354 = por %p352, %p353
    %p355 = scmp.ne.s32.totalorder %s341, %s342
    %p356 = scmp.eq.s32.totalorder %s26, 1
    %p357 = por %p355, %p356
    %p359 = scmp.ne.s32.totalorder %s342, %s358
    %p360 = scmp.eq.s32.totalorder %s26, 0
    %p361 = por %p359, %p360
    %p362 = scmp.le.s32.totalorder 1, %s20
    %p363 = scmp.lt.s32.totalorder %s20, 3
    %p364 = pnand %p362, %p363
    %p365 = pneg %p364
    // Predicated region
    $region9: #{decoder_layer_forward.4} parent=5 // pred_check
      _
    $region10: #{decoder_layer_forward.4} parent=5 // pred_check_branch
      %367 = sbr.rel (%p364) target = $region12
    $region11: #{decoder_layer_forward.4} parent=5 // pred_region
      %s368 = ssub.s32 %s20, 1
      // Predicated region
      $region13: #{decoder_layer_forward.4} parent=11 // pred_check
        %p369 = pneg %p145
      $region14: #{decoder_layer_forward.4} parent=11 // pred_check_branch
        %371 = sbr.rel (%p369) target = $region16
      $region15: #{decoder_layer_forward.4} parent=11 // pred_region
        _
      $region16: #{decoder_layer_forward.4} parent=11 // pred_fallthru
        _
      // Predicated region
      $region17: #{decoder_layer_forward.4} parent=11 // pred_check
        %p372 = pneg %p166
      $region18: #{decoder_layer_forward.4} parent=11 // pred_check_branch
        %374 = sbr.rel (%p372) target = $region20
      $region19: #{decoder_layer_forward.4} parent=11 // pred_region
        _
      $region20: #{decoder_layer_forward.4} parent=11 // pred_fallthru
        _
      // Predicated region
      $region21: #{decoder_layer_forward.4} parent=11 // pred_check
        %p375 = pneg %p213
      $region22: #{decoder_layer_forward.4} parent=11 // pred_check_branch
        %377 = sbr.rel (%p375) target = $region24
      $region23: #{decoder_layer_forward.4} parent=11 // pred_region
        _
      $region24: #{decoder_layer_forward.4} parent=11 // pred_fallthru
        _
      // Predicated region
      $region25: #{decoder_layer_forward.4} parent=11 // pred_check
        %p378 = pneg %p234
      $region26: #{decoder_layer_forward.4} parent=11 // pred_check_branch
        %380 = sbr.rel (%p378) target = $region28
      $region27: #{decoder_layer_forward.4} parent=11 // pred_region
        _
      $region28: #{decoder_layer_forward.4} parent=11 // pred_fallthru
        _
      // Predicated region
      $region29: #{decoder_layer_forward.4} parent=11 // pred_check
        %p381 = pneg %p255
      $region30: #{decoder_layer_forward.4} parent=11 // pred_check_branch
        %383 = sbr.rel (%p381) target = $region32
      $region31: #{decoder_layer_forward.4} parent=11 // pred_region
        _
      $region32: #{decoder_layer_forward.4} parent=11 // pred_fallthru
        _
      // Predicated region
      $region33: #{decoder_layer_forward.4} parent=11 // pred_check
        %p384 = pneg %p276
      $region34: #{decoder_layer_forward.4} parent=11 // pred_check_branch
        %386 = sbr.rel (%p384) target = $region36
      $region35: #{decoder_layer_forward.4} parent=11 // pred_region
        _
      $region36: #{decoder_layer_forward.4} parent=11 // pred_fallthru
        _
    $region12: #{decoder_layer_forward.4} parent=5 // pred_fallthru
      _
    %p387 = scmp.lt.s32.totalorder %s20, 2
    // Predicated region
    $region37: #{decoder_layer_forward.4} parent=5 // pred_check
      %p388 = pneg %p387
    $region38: #{decoder_layer_forward.4} parent=5 // pred_check_branch
      %390 = sbr.rel (%p388) target = $region40
    $region39: #{decoder_layer_forward.4} parent=5 // pred_region
      // Predicated region
      $region41: #{decoder_layer_forward.4} parent=39 // pred_check
        %p391 = pneg %p40
      $region42: #{decoder_layer_forward.4} parent=39 // pred_check_branch
        %393 = sbr.rel (%p391) target = $region44
      $region43: #{decoder_layer_forward.4} parent=39 // pred_region
        %p394 = scmp.lt.s32.totalorder %s20, 1
        %s395 = scalar_select %p394, %s20, 1
        %s396 = smul.addr %s395, 4
        %s397 = smul.addr %s396, 8
        %s398 = scalar_lea.vmem %s0, %s397
      $region44: #{decoder_layer_forward.4} parent=39 // pred_fallthru
        _
      // Predicated region
      $region45: #{decoder_layer_forward.4} parent=39 // pred_check
        %p399 = pneg %p66
      $region46: #{decoder_layer_forward.4} parent=39 // pred_check_branch
        %401 = sbr.rel (%p399) target = $region48
      $region47: #{decoder_layer_forward.4} parent=39 // pred_region
        %p402 = scmp.lt.s32.totalorder %s20, 1
        %s403 = scalar_select %p402, %s20, 1
        %s404 = smul.addr %s403, 4
        %s405 = smul.addr %s404, 8
        %s406 = scalar_lea.vmem %s1, %s405
      $region48: #{decoder_layer_forward.4} parent=39 // pred_fallthru
        _
      // Predicated region
      $region49: #{decoder_layer_forward.4} parent=39 // pred_check
        %p407 = pneg %p92
      $region50: #{decoder_layer_forward.4} parent=39 // pred_check_branch
        %409 = sbr.rel (%p407) target = $region52
      $region51: #{decoder_layer_forward.4} parent=39 // pred_region
        %p410 = scmp.lt.s32.totalorder %s20, 1
        %s411 = scalar_select %p410, %s20, 1
        %s412 = smul.addr %s411, 4
        %s413 = smul.addr %s412, 8
        %s414 = scalar_lea.vmem %s2, %s413
      $region52: #{decoder_layer_forward.4} parent=39 // pred_fallthru
        _
      // Predicated region
      $region53: #{decoder_layer_forward.4} parent=39 // pred_check
        %p415 = pneg %p118
      $region54: #{decoder_layer_forward.4} parent=39 // pred_check_branch
        %417 = sbr.rel (%p415) target = $region56
      $region55: #{decoder_layer_forward.4} parent=39 // pred_region
        %p418 = scmp.lt.s32.totalorder %s20, 1
        %s419 = scalar_select %p418, %s20, 1
        %s420 = smul.addr %s419, 8
        %s421 = scalar_lea.vmem %s3, %s420
      $region56: #{decoder_layer_forward.4} parent=39 // pred_fallthru
        _
      // Predicated region
      $region57: #{decoder_layer_forward.4} parent=39 // pred_check
        %p422 = pneg %p186
      $region58: #{decoder_layer_forward.4} parent=39 // pred_check_branch
        %424 = sbr.rel (%p422) target = $region60
      $region59: #{decoder_layer_forward.4} parent=39 // pred_region
        %p425 = scmp.lt.s32.totalorder %s20, 1
        %s426 = scalar_select %p425, %s20, 1
        %s427 = smul.addr %s426, 8
        %s428 = scalar_lea.vmem %s6, %s427
      $region60: #{decoder_layer_forward.4} parent=39 // pred_fallthru
        _
    $region40: #{decoder_layer_forward.4} parent=5 // pred_fallthru
      _
    %p429 = scmp.le.s32.totalorder 1, %s20
    %p430 = scmp.lt.s32.totalorder %s20, 3
    %p431 = pnand %p429, %p430
    %p432 = pneg %p431
    // Predicated region
    $region61: #{decoder_layer_forward.4} parent=5 // pred_check
      _
    $region62: #{decoder_layer_forward.4} parent=5 // pred_check_branch
      %434 = sbr.rel (%p431) target = $region64
    $region63: #{decoder_layer_forward.4} parent=5 // pred_region
      %s435 = ssub.s32 %s20, 1
      %p436 = scmp.lt.s32.totalorder %s25, 1
      %s437 = scalar_select %p436, %s25, 1
      %s438 = smul.addr %s437, 4
      %s439 = smul.addr %s438, 8
      %s440 = scalar_lea.vmem %s0, %s439
      %p441 = pneg %p46
      %p442 = pneg %p43
      %p443 = scmp.lt.s32.totalorder %s25, 1
      %s444 = scalar_select %p443, %s25, 1
      %s445 = smul.addr %s444, 4
      %s446 = smul.addr %s445, 8
      %s447 = scalar_lea.vmem %s1, %s446
      %p448 = pneg %p72
      %p449 = pneg %p69
      %p450 = scmp.lt.s32.totalorder %s25, 1
      %s451 = scalar_select %p450, %s25, 1
      %s452 = smul.addr %s451, 4
      %s453 = smul.addr %s452, 8
      %s454 = scalar_lea.vmem %s2, %s453
      %p455 = pneg %p98
      %p456 = pneg %p95
      %p457 = scmp.lt.s32.totalorder %s25, 1
      %s458 = scalar_select %p457, %s25, 1
      %s459 = smul.addr %s458, 8
      %s460 = scalar_lea.vmem %s3, %s459
      %p461 = pneg %p124
      %p462 = pneg %p121
      %p463 = pneg %p145
      %p464 = pneg %p142
      %p465 = pneg %p166
      %p466 = pneg %p163
      %p467 = scmp.lt.s32.totalorder %s25, 1
      %s468 = scalar_select %p467, %s25, 1
      %s469 = smul.addr %s468, 8
      %s470 = scalar_lea.vmem %s6, %s469
      %p471 = pneg %p192
      %p472 = pneg %p189
      %p473 = pneg %p213
      %p474 = pneg %p210
      %p475 = pneg %p234
      %p476 = pneg %p231
      %p477 = pneg %p255
      %p478 = pneg %p252
      %p479 = pneg %p276
      %p480 = pneg %p273
      %p481 = pneg %p302
      %p482 = pneg %p299
      %p483 = scmp.lt.s32.totalorder %s25, 1
      %s484 = scalar_select %p483, %s25, 1
      %s485 = smul.addr %s484, 8
      %s486 = scalar_lea.vmem %s11, %s485
      %p487 = pneg %p328
      %p488 = pneg %p325
      %p489 = scmp.lt.s32.totalorder %s25, 1
      %s490 = scalar_select %p489, %s25, 1
      %s491 = smul.addr %s490, 8
      %s492 = scalar_lea.vmem %s12, %s491
      %p493 = pneg %p354
      %p494 = pneg %p351
      %p495 = scmp.lt.s32.totalorder %s25, 1
      %s496 = scalar_select %p495, %s25, 1
      %s497 = smul.addr %s496, 8
      %s498 = scalar_lea.vmem %s13, %s497
      %p499 = scmp.lt.s32.totalorder %s25, 1
      %s500 = scalar_select %p499, %s25, 1
      %s501 = smul.addr %s500, 4
      %s502 = smul.addr %s501, 8
      %s503 = scalar_lea.vmem %s0, %s502
      %p504 = scmp.lt.s32.totalorder %s25, 1
      %s505 = scalar_select %p504, %s25, 1
      %s506 = smul.addr %s505, 4
      %s507 = smul.addr %s506, 8
      %s508 = scalar_lea.vmem %s1, %s507
      %p509 = scmp.lt.s32.totalorder %s25, 1
      %s510 = scalar_select %p509, %s25, 1
      %s511 = smul.addr %s510, 4
      %s512 = smul.addr %s511, 8
      %s513 = scalar_lea.vmem %s2, %s512
      %p514 = scmp.lt.s32.totalorder %s25, 1
      %s515 = scalar_select %p514, %s25, 1
      %s516 = smul.addr %s515, 8
      %s517 = scalar_lea.vmem %s3, %s516
      %p518 = scmp.lt.s32.totalorder %s25, 1
      %s519 = scalar_select %p518, %s25, 1
      %s520 = smul.addr %s519, 8
      %s521 = scalar_lea.vmem %s6, %s520
      %p522 = scmp.lt.s32.totalorder %s25, 1
      %s523 = scalar_select %p522, %s25, 1
      %s524 = smul.addr %s523, 8
      %s525 = scalar_lea.vmem %s11, %s524
      %p526 = scmp.lt.s32.totalorder %s25, 1
      %s527 = scalar_select %p526, %s25, 1
      %s528 = smul.addr %s527, 8
      %s529 = scalar_lea.vmem %s12, %s528
      %p530 = scmp.lt.s32.totalorder %s25, 1
      %s531 = scalar_select %p530, %s25, 1
      %s532 = smul.addr %s531, 8
      %s533 = scalar_lea.vmem %s13, %s532
      %v534 = vld [vmem:[%s503] sm:$0xff]
      %v535 = vld [vmem:[%s503 + $0x8] sm:$0xff]
      %v536 = vld [vmem:[%s503 + $0x10] sm:$0xff]
      %v537 = vld [vmem:[%s503 + $0x18] sm:$0xff]
      %v538 = vld [vmem:[%s508] sm:$0xff]
      %v539 = vld [vmem:[%s508 + $0x8] sm:$0xff]
      %v540 = vld [vmem:[%s508 + $0x10] sm:$0xff]
      %v541 = vld [vmem:[%s508 + $0x18] sm:$0xff]
      %v542 = vld [vmem:[%s513] sm:$0xff]
      %v543 = vld [vmem:[%s513 + $0x8] sm:$0xff]
      %v544 = vld [vmem:[%s513 + $0x10] sm:$0xff]
      %v545 = vld [vmem:[%s513 + $0x18] sm:$0xff]
      %vm546 = vcmask 64512
      %v548 = vsel %vm546, %v534, 0
      %v551 = vsel %vm546, %v538, 0
      %553 = vmatpush.xpose.msra.mxu0 0.0
      %554 = vmatpush.xpose.msra.mxu0 0.0
      %555 = vmatpush.xpose.msra.mxu0 0.0
      %556 = vmatpush.xpose.msra.mxu0 0.0
      %557 = vmatpush.xpose.msra.mxu0 0.0
      %558 = vmatpush.xpose.msra.mxu0 0.0
      %559 = vmatpush.xpose.msra.mxu0 0.0
      %560 = vmatpush.xpose.msra.mxu0 0.0
      %561 = vmatpush.xpose.msra.mxu0 0.0
      %562 = vmatpush.xpose.msra.mxu0 0.0
      %563 = vmatpush.xpose.msra.mxu0 0.0
      %564 = vmatpush.xpose.msra.mxu0 0.0
      %565 = vmatpush.xpose.msra.mxu0 0.0
      %566 = vmatpush.xpose.msra.mxu0 0.0
      %567 = vmatpush.xpose.msra.mxu0 0.0
      %568 = vmatpush.xpose.msra.mxu0 %v551
      %569 = vmatmul.f32.gmra.mxu0 %v548
      %v570 = vpop.f32.mrf.mxu0
      %v571 = vadd.f32 0.0, %v570
      %572 = vdwg.mxu0
      %v574 = vsel %vm546, %v535, 0
      %v577 = vsel %vm546, %v539, 0
      %579 = vmatpush.xpose.msra.mxu0 0.0
      %580 = vmatpush.xpose.msra.mxu0 0.0
      %581 = vmatpush.xpose.msra.mxu0 0.0
      %582 = vmatpush.xpose.msra.mxu0 0.0
      %583 = vmatpush.xpose.msra.mxu0 0.0
      %584 = vmatpush.xpose.msra.mxu0 0.0
      %585 = vmatpush.xpose.msra.mxu0 0.0
      %586 = vmatpush.xpose.msra.mxu0 0.0
      %587 = vmatpush.xpose.msra.mxu0 0.0
      %588 = vmatpush.xpose.msra.mxu0 0.0
      %589 = vmatpush.xpose.msra.mxu0 0.0
      %590 = vmatpush.xpose.msra.mxu0 0.0
      %591 = vmatpush.xpose.msra.mxu0 0.0
      %592 = vmatpush.xpose.msra.mxu0 0.0
      %593 = vmatpush.xpose.msra.mxu0 0.0
      %594 = vmatpush.xpose.msra.mxu0 %v577
      %595 = vmatmul.f32.gmra.mxu0 %v574
      %v596 = vpop.f32.mrf.mxu0
      %v597 = vadd.f32 0.0, %v596
      %598 = vdwg.mxu0
      %v600 = vsel %vm546, %v536, 0
      %v603 = vsel %vm546, %v540, 0
      %605 = vmatpush.xpose.msra.mxu0 0.0
      %606 = vmatpush.xpose.msra.mxu0 0.0
      %607 = vmatpush.xpose.msra.mxu0 0.0
      %608 = vmatpush.xpose.msra.mxu0 0.0
      %609 = vmatpush.xpose.msra.mxu0 0.0
      %610 = vmatpush.xpose.msra.mxu0 0.0
      %611 = vmatpush.xpose.msra.mxu0 0.0
      %612 = vmatpush.xpose.msra.mxu0 0.0
      %613 = vmatpush.xpose.msra.mxu0 0.0
      %614 = vmatpush.xpose.msra.mxu0 0.0
      %615 = vmatpush.xpose.msra.mxu0 0.0
      %616 = vmatpush.xpose.msra.mxu0 0.0
      %617 = vmatpush.xpose.msra.mxu0 0.0
      %618 = vmatpush.xpose.msra.mxu0 0.0
      %619 = vmatpush.xpose.msra.mxu0 0.0
      %620 = vmatpush.xpose.msra.mxu0 %v603
      %621 = vmatmul.f32.gmra.mxu0 %v600
      %v622 = vpop.f32.mrf.mxu0
      %v623 = vadd.f32 0.0, %v622
      %624 = vdwg.mxu0
      %v626 = vsel %vm546, %v537, 0
      %v629 = vsel %vm546, %v541, 0
      %631 = vmatpush.xpose.msra.mxu0 0.0
      %632 = vmatpush.xpose.msra.mxu0 0.0
      %633 = vmatpush.xpose.msra.mxu0 0.0
      %634 = vmatpush.xpose.msra.mxu0 0.0
      %635 = vmatpush.xpose.msra.mxu0 0.0
      %636 = vmatpush.xpose.msra.mxu0 0.0
      %637 = vmatpush.xpose.msra.mxu0 0.0
      %638 = vmatpush.xpose.msra.mxu0 0.0
      %639 = vmatpush.xpose.msra.mxu0 0.0
      %640 = vmatpush.xpose.msra.mxu0 0.0
      %641 = vmatpush.xpose.msra.mxu0 0.0
      %642 = vmatpush.xpose.msra.mxu0 0.0
      %643 = vmatpush.xpose.msra.mxu0 0.0
      %644 = vmatpush.xpose.msra.mxu0 0.0
      %645 = vmatpush.xpose.msra.mxu0 0.0
      %646 = vmatpush.xpose.msra.mxu0 %v629
      %647 = vmatmul.f32.gmra.mxu0 %v626
      %v648 = vpop.f32.mrf.mxu0
      %v649 = vadd.f32 0.0, %v648
      %650 = vdwg.mxu0
      %v651 = vmul.f32 %v571, 0.35355338
      %v652 = vmul.f32 %v597, 0.35355338
      %v653 = vmul.f32 %v623, 0.35355338
      %v654 = vmul.f32 %v649, 0.35355338
      %v655 = vld [vmem:[%s517] sm:$0xff]
      %vm656 = vcmp.gt.f32.partialorder %v655, 0.0
      %v657 = vsel %vm656, 1, 0
      %vm658 = vcmp.eq.s32.totalorder %v657, 1
      %v659 = vsel %vm658, -1e+09, %v651
      %v660 = vsel %vm658, -1e+09, %v652
      %v661 = vsel %vm658, -1e+09, %v653
      %v662 = vsel %vm658, -1e+09, %v654
      %v663 = vsel %vm546, %v659, -inf
      %664 = vmax.xlane.f32.xlu0 %v663
      %v665 = vpop.xlane.xlu0 %664
      %v666 = vsel %vm546, %v660, -inf
      %667 = vmax.xlane.f32.xlu0 %v666
      %v668 = vpop.xlane.xlu0 %667
      %v669 = vsel %vm546, %v661, -inf
      %670 = vmax.xlane.f32.xlu0 %v669
      %v671 = vpop.xlane.xlu0 %670
      %v672 = vsel %vm546, %v662, -inf
      %673 = vmax.xlane.f32.xlu0 %v672
      %v674 = vpop.xlane.xlu0 %673
      %v675 = vsub.f32 %v659, %v665
      %v676 = vsub.f32 %v660, %v668
      %v677 = vsub.f32 %v661, %v671
      %v678 = vsub.f32 %v662, %v674
      %v679 = vmul.f32 %v675, 1.442695
      %v680 = vpow.pop %v679
      %v681 = vmul.f32 %v676, 1.442695
      %v682 = vpow.pop %v681
      %v683 = vmul.f32 %v677, 1.442695
      %v684 = vpow.pop %v683
      %v685 = vmul.f32 %v678, 1.442695
      %v686 = vpow.pop %v685
      %v687 = vsel %vm546, %v680, 0.0
      %688 = vadd.xlane.f32.xlu0 %v687
      %v689 = vpop.xlane.xlu0 %688
      %v690 = vsel %vm546, %v682, 0.0
      %691 = vadd.xlane.f32.xlu0 %v690
      %v692 = vpop.xlane.xlu0 %691
      %v693 = vsel %vm546, %v684, 0.0
      %694 = vadd.xlane.f32.xlu0 %v693
      %v695 = vpop.xlane.xlu0 %694
      %v696 = vsel %vm546, %v686, 0.0
      %697 = vadd.xlane.f32.xlu0 %v696
      %v698 = vpop.xlane.xlu0 %697
      %v699 = vrcp.pop %v689
      %v700 = vmul.f32 %v689, %v699
      %v701 = vsub.f32 1.0, %v700
      %v702 = vmul.f32 %v699, %v701
      %v703 = vadd.f32 %v699, %v702
      %vm704 = vweird.f32 %v689
      %vm705 = vweird.f32 %v699
      %vm706 = vmor %vm704, %vm705
      %v707 = vsel %vm706, %v699, %v703
      %v708 = vand.u32 2147483647, %v689
      %vm709 = vcmp.eq.f32.partialorder %v708, 8.507059e+37
      %v710 = vand.u32 %v689, 2147483648
      %v711 = vor.u32 1.1754944e-38, %v710
      %v712 = vsel %vm709, %v711, %v707
      %v713 = vmul.f32 %v680, %v712
      %v714 = vrcp.pop %v692
      %v715 = vmul.f32 %v692, %v714
      %v716 = vsub.f32 1.0, %v715
      %v717 = vmul.f32 %v714, %v716
      %v718 = vadd.f32 %v714, %v717
      %vm719 = vweird.f32 %v692
      %vm720 = vweird.f32 %v714
      %vm721 = vmor %vm719, %vm720
      %v722 = vsel %vm721, %v714, %v718
      %v723 = vand.u32 2147483647, %v692
      %vm724 = vcmp.eq.f32.partialorder %v723, 8.507059e+37
      %v725 = vand.u32 %v692, 2147483648
      %v726 = vor.u32 1.1754944e-38, %v725
      %v727 = vsel %vm724, %v726, %v722
      %v728 = vmul.f32 %v682, %v727
      %v729 = vrcp.pop %v695
      %v730 = vmul.f32 %v695, %v729
      %v731 = vsub.f32 1.0, %v730
      %v732 = vmul.f32 %v729, %v731
      %v733 = vadd.f32 %v729, %v732
      %vm734 = vweird.f32 %v695
      %vm735 = vweird.f32 %v729
      %vm736 = vmor %vm734, %vm735
      %v737 = vsel %vm736, %v729, %v733
      %v738 = vand.u32 2147483647, %v695
      %vm739 = vcmp.eq.f32.partialorder %v738, 8.507059e+37
      %v740 = vand.u32 %v695, 2147483648
      %v741 = vor.u32 1.1754944e-38, %v740
      %v742 = vsel %vm739, %v741, %v737
      %v743 = vmul.f32 %v684, %v742
      %v744 = vrcp.pop %v698
      %v745 = vmul.f32 %v698, %v744
      %v746 = vsub.f32 1.0, %v745
      %v747 = vmul.f32 %v744, %v746
      %v748 = vadd.f32 %v744, %v747
      %vm749 = vweird.f32 %v698
      %vm750 = vweird.f32 %v744
      %vm751 = vmor %vm749, %vm750
      %v752 = vsel %vm751, %v744, %v748
      %v753 = vand.u32 2147483647, %v698
      %vm754 = vcmp.eq.f32.partialorder %v753, 8.507059e+37
      %v755 = vand.u32 %v698, 2147483648
      %v756 = vor.u32 1.1754944e-38, %v755
      %v757 = vsel %vm754, %v756, %v752
      %v758 = vmul.f32 %v686, %v757
      %v760 = vsel %vm546, %v659, 0
      %762 = vmatpush.msra.mxu0 0.0
      %763 = vmatpush.msra.mxu0 0.0
      %764 = vmatpush.msra.mxu0 0.0
      %765 = vmatpush.msra.mxu0 0.0
      %766 = vmatpush.msra.mxu0 0.0
      %767 = vmatpush.msra.mxu0 0.0
      %768 = vmatpush.msra.mxu0 0.0
      %769 = vmatpush.msra.mxu0 0.0
      %770 = vmatpush.msra.mxu0 0.0
      %771 = vmatpush.msra.mxu0 0.0
      %772 = vmatpush.msra.mxu0 0.0
      %773 = vmatpush.msra.mxu0 0.0
      %774 = vmatpush.msra.mxu0 0.0
      %775 = vmatpush.msra.mxu0 0.0
      %776 = vmatpush.msra.mxu0 0.0
      %777 = vmatpush.msra.mxu0 %v542
      %778 = vmatmul.f32.gmra.mxu0 %v760
      %v779 = vpop.f32.mrf.mxu0
      %v780 = vadd.f32 0.0, %v779
      %781 = vdwg.mxu0
      %v783 = vsel %vm546, %v660, 0
      %785 = vmatpush.msra.mxu0 0.0
      %786 = vmatpush.msra.mxu0 0.0
      %787 = vmatpush.msra.mxu0 0.0
      %788 = vmatpush.msra.mxu0 0.0
      %789 = vmatpush.msra.mxu0 0.0
      %790 = vmatpush.msra.mxu0 0.0
      %791 = vmatpush.msra.mxu0 0.0
      %792 = vmatpush.msra.mxu0 0.0
      %793 = vmatpush.msra.mxu0 0.0
      %794 = vmatpush.msra.mxu0 0.0
      %795 = vmatpush.msra.mxu0 0.0
      %796 = vmatpush.msra.mxu0 0.0
      %797 = vmatpush.msra.mxu0 0.0
      %798 = vmatpush.msra.mxu0 0.0
      %799 = vmatpush.msra.mxu0 0.0
      %800 = vmatpush.msra.mxu0 %v543
      %801 = vmatmul.f32.gmra.mxu0 %v783
      %v802 = vpop.f32.mrf.mxu0
      %v803 = vadd.f32 0.0, %v802
      %804 = vdwg.mxu0
      %v806 = vsel %vm546, %v661, 0
      %808 = vmatpush.msra.mxu0 0.0
      %809 = vmatpush.msra.mxu0 0.0
      %810 = vmatpush.msra.mxu0 0.0
      %811 = vmatpush.msra.mxu0 0.0
      %812 = vmatpush.msra.mxu0 0.0
      %813 = vmatpush.msra.mxu0 0.0
      %814 = vmatpush.msra.mxu0 0.0
      %815 = vmatpush.msra.mxu0 0.0
      %816 = vmatpush.msra.mxu0 0.0
      %817 = vmatpush.msra.mxu0 0.0
      %818 = vmatpush.msra.mxu0 0.0
      %819 = vmatpush.msra.mxu0 0.0
      %820 = vmatpush.msra.mxu0 0.0
      %821 = vmatpush.msra.mxu0 0.0
      %822 = vmatpush.msra.mxu0 0.0
      %823 = vmatpush.msra.mxu0 %v544
      %824 = vmatmul.f32.gmra.mxu0 %v806
      %v825 = vpop.f32.mrf.mxu0
      %v826 = vadd.f32 0.0, %v825
      %827 = vdwg.mxu0
      %v829 = vsel %vm546, %v662, 0
      %831 = vmatpush.msra.mxu0 0.0
      %832 = vmatpush.msra.mxu0 0.0
      %833 = vmatpush.msra.mxu0 0.0
      %834 = vmatpush.msra.mxu0 0.0
      %835 = vmatpush.msra.mxu0 0.0
      %836 = vmatpush.msra.mxu0 0.0
      %837 = vmatpush.msra.mxu0 0.0
      %838 = vmatpush.msra.mxu0 0.0
      %839 = vmatpush.msra.mxu0 0.0
      %840 = vmatpush.msra.mxu0 0.0
      %841 = vmatpush.msra.mxu0 0.0
      %842 = vmatpush.msra.mxu0 0.0
      %843 = vmatpush.msra.mxu0 0.0
      %844 = vmatpush.msra.mxu0 0.0
      %845 = vmatpush.msra.mxu0 0.0
      %846 = vmatpush.msra.mxu0 %v545
      %847 = vmatmul.f32.gmra.mxu0 %v829
      %v848 = vpop.f32.mrf.mxu0
      %v849 = vadd.f32 0.0, %v848
      %850 = vdwg.mxu0
      %851 = vst.msk [vmem:[#allocation2] sm:$0xff] %vm546, %v780
      %852 = vst.msk [vmem:[%s533] sm:$0xff] %vm546, %v713
      %854 = vrot.lane.b32.xlu0 %v803, 8
      %v855 = vpop.permute.xlu0 %854
      %vm857 = vcmask 130112
      %858 = vst.msk [vmem:[#allocation2] sm:$0xff] %vm857, %v855
      %860 = vrot.lane.b32.xlu0 %v728, 8
      %v861 = vpop.permute.xlu0 %860
      %863 = vst.msk [vmem:[%s533] sm:$0xff] %vm857, %v861
      %865 = vrot.lane.b32.xlu0 %v826, 16
      %v866 = vpop.permute.xlu0 %865
      %vm868 = vcmask 195712
      %869 = vst.msk [vmem:[#allocation2] sm:$0xff] %vm868, %v866
      %871 = vrot.lane.b32.xlu0 %v743, 16
      %v872 = vpop.permute.xlu0 %871
      %874 = vst.msk [vmem:[%s533] sm:$0xff] %vm868, %v872
      %876 = vrot.lane.b32.xlu0 %v849, 24
      %v877 = vpop.permute.xlu0 %876
      %vm879 = vcmask 261312
      %880 = vst.msk [vmem:[#allocation2] sm:$0xff] %vm879, %v877
      %882 = vrot.lane.b32.xlu0 %v758, 24
      %v883 = vpop.permute.xlu0 %882
      %885 = vst.msk [vmem:[%s533] sm:$0xff] %vm879, %v883
      %v886 = vld [vmem:[#allocation2] sm:$0xff]
      %v887 = vld [vmem:[%s4] sm:$0xff]
      %v888 = vld [vmem:[%s4 + $0x8] sm:$0xff]
      %v889 = vld [vmem:[%s4 + $0x10] sm:$0xff]
      %v890 = vld [vmem:[%s4 + $0x18] sm:$0xff]
      %v891 = vld [vmem:[%s5] sm:$0x1]
      %v893 = vperm.slane %v891, 0
      %vm895 = vcmask 261120
      %v897 = vsel %vm895, %v886, 0
      %899 = vmatpush.msra.mxu0 0.0
      %900 = vmatpush.msra.mxu0 0.0
      %901 = vmatpush.msra.mxu0 0.0
      %902 = vmatpush.msra.mxu0 0.0
      %903 = vmatpush.msra.mxu0 0.0
      %904 = vmatpush.msra.mxu0 0.0
      %905 = vmatpush.msra.mxu0 0.0
      %906 = vmatpush.msra.mxu0 0.0
      %907 = vmatpush.msra.mxu0 0.0
      %908 = vmatpush.msra.mxu0 0.0
      %909 = vmatpush.msra.mxu0 0.0
      %910 = vmatpush.msra.mxu0 0.0
      %911 = vmatpush.msra.mxu0 %v890
      %912 = vmatpush.msra.mxu0 %v889
      %913 = vmatpush.msra.mxu0 %v888
      %914 = vmatpush.msra.mxu0 %v887
      %915 = vmatmul.f32.gmra.mxu0 %v897
      %v916 = vpop.f32.mrf.mxu0
      %v917 = vadd.f32 %v893, %v916
      %918 = vdwg.mxu0
      %v919 = vld [vmem:[%s521] sm:$0xff]
      %v920 = vadd.f32 %v917, %v919
      %v921 = vld [vmem:[%s7] sm:$0x1]
      %v922 = vld [vmem:[%s8] sm:$0x1]
      %v923 = vsel %vm895, %v920, 0.0
      %924 = vadd.xlane.f32.xlu0 %v923
      %v925 = vpop.xlane.xlu0 %924
      %v926 = vrcp.pop 32.0
      %v927 = vmul.f32 32.0, %v926
      %v928 = vsub.f32 1.0, %v927
      %v929 = vmul.f32 %v926, %v928
      %v930 = vadd.f32 %v926, %v929
      %vm931 = vweird.f32 %v926
      %v932 = vsel %vm931, %v926, %v930
      %v933 = vmul.f32 %v925, %v932
      %v934 = vsub.f32 %v920, %v933
      %v935 = vmul.f32 %v934, %v934
      %v936 = vsel %vm895, %v935, 0.0
      %937 = vadd.xlane.f32.xlu0 %v936
      %v938 = vpop.xlane.xlu0 %937
      %v939 = vmul.f32 %v938, %v932
      %v940 = vadd.f32 %v939, 1e-05
      %v941 = vrsqrt.pop %v940
      %v942 = vmul.f32 %v941, %v940
      %v943 = vmul.f32 %v942, %v941
      %v944 = vmul.f32 0.5, %v943
      %v945 = vsub.f32 1.5, %v944
      %v946 = vmul.f32 %v941, %v945
      %vm947 = vweird.f32 %v940
      %vm948 = vweird.f32 %v941
      %vm949 = vmor %vm947, %vm948
      %v950 = vsel %vm949, %v941, %v946
      %v951 = vmul.f32 %v934, %v950
      %v953 = vperm.slane %v921, 0
      %v955 = vmul.f32 %v951, %v953
      %v957 = vperm.slane %v922, 0
      %v959 = vadd.f32 %v955, %v957
      %960 = vst.msk [vmem:[%s525] sm:$0xff] %vm895, %v959
      %v961 = vld [vmem:[%s9] sm:$0xff]
      %v962 = vld [vmem:[%s9 + $0x8] sm:$0xff]
      %v963 = vld [vmem:[%s9 + $0x10] sm:$0xff]
      %v964 = vld [vmem:[%s9 + $0x18] sm:$0xff]
      %v965 = vld [vmem:[%s10] sm:$0x1]
      %v967 = vperm.slane %v965, 0
      %v970 = vsel %vm895, %v959, 0
      %972 = vmatpush.msra.mxu0 0.0
      %973 = vmatpush.msra.mxu0 0.0
      %974 = vmatpush.msra.mxu0 0.0
      %975 = vmatpush.msra.mxu0 0.0
      %976 = vmatpush.msra.mxu0 0.0
      %977 = vmatpush.msra.mxu0 0.0
      %978 = vmatpush.msra.mxu0 0.0
      %979 = vmatpush.msra.mxu0 0.0
      %980 = vmatpush.msra.mxu0 0.0
      %981 = vmatpush.msra.mxu0 0.0
      %982 = vmatpush.msra.mxu0 0.0
      %983 = vmatpush.msra.mxu0 0.0
      %984 = vmatpush.msra.mxu0 %v964
      %985 = vmatpush.msra.mxu0 %v963
      %986 = vmatpush.msra.mxu0 %v962
      %987 = vmatpush.msra.mxu0 %v961
      %988 = vmatmul.f32.gmra.mxu0 %v970
      %v989 = vpop.f32.mrf.mxu0
      %v990 = vadd.f32 %v967, %v989
      %991 = vdwg.mxu0
      %992 = vst.msk [vmem:[%s529] sm:$0xff] %vm895, %v990
      %p993 = scmp.lt.s32.totalorder %s25, 1
      %s994 = scalar_select %p993, %s25, 1
      %s995 = smul.addr %s994, 8
      %s996 = scalar_lea.vmem %s11, %s995
      %p997 = scmp.lt.s32.totalorder %s25, 1
      %s998 = scalar_select %p997, %s25, 1
      %s999 = smul.addr %s998, 8
      %s1000 = scalar_lea.vmem %s12, %s999
      %p1001 = scmp.lt.s32.totalorder %s25, 1
      %s1002 = scalar_select %p1001, %s25, 1
      %s1003 = smul.addr %s1002, 8
      %s1004 = scalar_lea.vmem %s13, %s1003
      // Predicated region
      $region65: #{decoder_layer_forward.4} parent=63 // pred_check
        %p1005 = pneg %p299
      $region66: #{decoder_layer_forward.4} parent=63 // pred_check_branch
        %1007 = sbr.rel (%p1005) target = $region68
      $region67: #{decoder_layer_forward.4} parent=63 // pred_region
        _
      $region68: #{decoder_layer_forward.4} parent=63 // pred_fallthru
        _
      // Predicated region
      $region69: #{decoder_layer_forward.4} parent=63 // pred_check
        %p1008 = pneg %p325
      $region70: #{decoder_layer_forward.4} parent=63 // pred_check_branch
        %1010 = sbr.rel (%p1008) target = $region72
      $region71: #{decoder_layer_forward.4} parent=63 // pred_region
        _
      $region72: #{decoder_layer_forward.4} parent=63 // pred_fallthru
        _
      // Predicated region
      $region73: #{decoder_layer_forward.4} parent=63 // pred_check
        %p1011 = pneg %p351
      $region74: #{decoder_layer_forward.4} parent=63 // pred_check_branch
        %1013 = sbr.rel (%p1011) target = $region76
      $region75: #{decoder_layer_forward.4} parent=63 // pred_region
        _
      $region76: #{decoder_layer_forward.4} parent=63 // pred_fallthru
        _
    $region64: #{decoder_layer_forward.4} parent=5 // pred_fallthru
      _
    %p1014 = scmp.le.s32.totalorder 2, %s20
    // Predicated region
    $region77: #{decoder_layer_forward.4} parent=5 // pred_check
      %p1015 = pneg %p1014
    $region78: #{decoder_layer_forward.4} parent=5 // pred_check_branch
      %1017 = sbr.rel (%p1015) target = $region80
    $region79: #{decoder_layer_forward.4} parent=5 // pred_region
      %s1018 = ssub.s32 %s20, 2
      // Predicated region
      $region81: #{decoder_layer_forward.4} parent=79 // pred_check
        %p1019 = pneg %p305
      $region82: #{decoder_layer_forward.4} parent=79 // pred_check_branch
        %1021 = sbr.rel (%p1019) target = $region84
      $region83: #{decoder_layer_forward.4} parent=79 // pred_region
        %p1022 = scmp.lt.s32.totalorder %s26, 1
        %s1023 = scalar_select %p1022, %s26, 1
        %s1024 = smul.addr %s1023, 8
        %s1025 = scalar_lea.vmem %s11, %s1024
      $region84: #{decoder_layer_forward.4} parent=79 // pred_fallthru
        _
      // Predicated region
      $region85: #{decoder_layer_forward.4} parent=79 // pred_check
        %p1026 = pneg %p331
      $region86: #{decoder_layer_forward.4} parent=79 // pred_check_branch
        %1028 = sbr.rel (%p1026) target = $region88
      $region87: #{decoder_layer_forward.4} parent=79 // pred_region
        %p1029 = scmp.lt.s32.totalorder %s26, 1
        %s1030 = scalar_select %p1029, %s26, 1
        %s1031 = smul.addr %s1030, 8
        %s1032 = scalar_lea.vmem %s12, %s1031
      $region88: #{decoder_layer_forward.4} parent=79 // pred_fallthru
        _
      // Predicated region
      $region89: #{decoder_layer_forward.4} parent=79 // pred_check
        %p1033 = pneg %p357
      $region90: #{decoder_layer_forward.4} parent=79 // pred_check_branch
        %1035 = sbr.rel (%p1033) target = $region92
      $region91: #{decoder_layer_forward.4} parent=79 // pred_region
        %p1036 = scmp.lt.s32.totalorder %s26, 1
        %s1037 = scalar_select %p1036, %s26, 1
        %s1038 = smul.addr %s1037, 8
        %s1039 = scalar_lea.vmem %s13, %s1038
      $region92: #{decoder_layer_forward.4} parent=79 // pred_fallthru
        _
    $region80: #{decoder_layer_forward.4} parent=5 // pred_fallthru
      _
  $region6: #{decoder_layer_forward.4} parent=0 // loop_footer
    %s24 = sadd.s32 1, %s20
  $region7: #{decoder_layer_forward.4} parent=0 // loop_footer_branch
    %19 = sbr.rel target = $region3
  $region8: #{decoder_layer_forward.4} parent=0 // loop_exit
    _

// kernel: decoder_layer_forward.5
$region0: #{decoder_layer_forward.5}
  #allocation0 [shape = 'u32[]', space=smem, size = 0x4, offset = 0x4, fixed_abs, tag = 'smem constant byte address 0x4 - core index']
  #allocation1 [shape = 'u32[72,128]{1,0:T(1,128)}', space=vmem, size = 0x9000, scoped, tag = 'internal scratch']
  #allocation2 [shape = 'f32[8,32]{1,0:T(8,128)}', space=vmem, size = 0x1000, scoped, tag = 'scratch operand']
  %s0 = inlined_call_operand.vmem [shape: f32[2,4,8,8], index: 0, kind: input, shape index: {}]
  %s1 = inlined_call_operand.vmem [shape: f32[2,4,8,8], index: 1, kind: input, shape index: {}]
  %s2 = inlined_call_operand.vmem [shape: f32[2,4,8,8], index: 2, kind: input, shape index: {}]
  %s3 = inlined_call_operand.vmem [shape: f32[2,8,8], index: 3, kind: input, shape index: {}]
  %s4 = inlined_call_operand.vmem [shape: f32[32,32], index: 4, kind: input, shape index: {}]
  %s5 = inlined_call_operand.vmem [shape: f32[1,32], index: 5, kind: input, shape index: {}]
  %s6 = inlined_call_operand.vmem [shape: f32[2,8,32], index: 6, kind: input, shape index: {}]
  %s7 = inlined_call_operand.vmem [shape: f32[1,32], index: 7, kind: input, shape index: {}]
  %s8 = inlined_call_operand.vmem [shape: f32[1,32], index: 8, kind: input, shape index: {}]
  %s9 = inlined_call_operand.vmem [shape: f32[32,64], index: 9, kind: input, shape index: {}]
  %s10 = inlined_call_operand.vmem [shape: f32[1,64], index: 10, kind: input, shape index: {}]
  %s11 = inlined_call_operand.vmem [shape: f32[64,32], index: 11, kind: input, shape index: {}]
  %s12 = inlined_call_operand.vmem [shape: f32[1,32], index: 12, kind: input, shape index: {}]
  %s13 = inlined_call_operand.vmem [shape: f32[1,32], index: 13, kind: input, shape index: {}]
  %s14 = inlined_call_operand.vmem [shape: f32[1,32], index: 14, kind: input, shape index: {}]
  %s15 = inlined_call_operand.hbm [shape: f32[2,8,32], index: 15, kind: output, shape index: {0}]
  %s16 = inlined_call_operand.vmem [shape: f32[2,8,32], index: 16, kind: output, shape index: {1}]
  %17 = xla_tuple %s15, %s16
  %s18 = sld [smem:[#allocation0]]
  $region101: #{decoder_layer_forward.5} parent=0
    _
  %s20 = ssub.s32 1, %s18
  %s21 = scalar_select 0, %s20, %s18
  $region1: #{decoder_layer_forward.5} parent=0
    #allocation3 [shape = 'u8[8192]{0}', space=vmem, size = 0x2000, scoped, tag = 'output window, operand 0']
    #allocation4 [shape = 's32[2]{0}', space=sflag, size = 0x8, scoped, tag = 'scoped memory for decoder_layer_forward.5']
    %22 = vsyncpa [#allocation4], 0
    %s23 = scalar_lea.sflag [#allocation4], 1
    %24 = vsyncpa %s23, 0
    loop: start=0, step=1, limit=4
    $region2: #{decoder_layer_forward.5} parent=1 // loop_pre_header
      _
    $region3: #{decoder_layer_forward.5} parent=1 // loop_header
      %s26 = sphi 0, %s30
      %p27 = scmp.ge.s32.totalorder %s26, 4
      %s36 = sphi 0, %s38
      %s39 = sphi 0, %s36
      %s40 = sphi 0, %s39
      %s56 = sphi 0, %s40
      %s62 = sphi 0, %s64
      %s65 = sphi 0, %s62
      %s66 = sphi 0, %s65
      %s82 = sphi 0, %s66
      %s88 = sphi 0, %s90
      %s91 = sphi 0, %s88
      %s92 = sphi 0, %s91
      %s108 = sphi 0, %s92
      %s114 = sphi 0, %s116
      %s117 = sphi 0, %s114
      %s118 = sphi 0, %s117
      %s134 = sphi 0, %s118
      %s138 = sphi 0, %s138
      %s140 = sphi 0, %s138
      %s141 = sphi 0, %s140
      %s155 = sphi 0, %s141
      %s159 = sphi 0, %s159
      %s161 = sphi 0, %s159
      %s162 = sphi 0, %s161
      %s176 = sphi 0, %s162
      %s182 = sphi 0, %s184
      %s185 = sphi 0, %s182
      %s186 = sphi 0, %s185
      %s202 = sphi 0, %s186
      %s206 = sphi 0, %s206
      %s208 = sphi 0, %s206
      %s209 = sphi 0, %s208
      %s223 = sphi 0, %s209
      %s227 = sphi 0, %s227
      %s229 = sphi 0, %s227
      %s230 = sphi 0, %s229
      %s244 = sphi 0, %s230
      %s248 = sphi 0, %s248
      %s250 = sphi 0, %s248
      %s251 = sphi 0, %s250
      %s265 = sphi 0, %s251
      %s269 = sphi 0, %s269
      %s271 = sphi 0, %s269
      %s272 = sphi 0, %s271
      %s286 = sphi 0, %s272
      %s290 = sphi 0, %s290
      %s292 = sphi 0, %s290
      %s293 = sphi 0, %s292
      %s307 = sphi 0, %s293
      %s311 = sphi 0, %s311
      %s313 = sphi 0, %s311
      %s314 = sphi 0, %s313
      %s328 = sphi 0, %s314
      %s332 = sphi 0, %s332
      %s334 = sphi 0, %s332
      %s335 = sphi 0, %s334
      %s349 = sphi 0, %s335
      %s353 = sphi 0, %s353
      %s355 = sphi 0, %s353
      %s356 = sphi 0, %s355
      %s370 = sphi 0, %s356
      %s376 = sphi 0, %s378
      %s379 = sphi 0, %s376
      %s380 = sphi 0, %s379
      %s396 = sphi 0, %s380
      %s402 = sphi 0, %s404
      %s405 = sphi 0, %s402
      %s406 = sphi 0, %s405
      %s422 = sphi 0, %s406
    $region4: #{decoder_layer_forward.5} parent=1 // loop_header_branch
      %29 = sbr.rel (%p27) target = $region8
    $region5: #{decoder_layer_forward.5} parent=1 // loop_body
      %s31 = ssub.s32 %s26, 1
      %s32 = ssub.s32 %s26, 2
      %s33 = sadd.s32 %s26, 1
      %s34 = ssub.s32 %s26, %s33
      %p35 = scmp.eq.s32.totalorder %s34, 0
      %s37 = sadd.s32 %s36, 1
      %s38 = scalar_select %p35, %s36, %s37
      %p41 = pneg %p35
      %p42 = scmp.eq.s32.totalorder %s26, 1
      %p43 = por %p41, %p42
      %p44 = scmp.ne.s32.totalorder %s36, %s39
      %p45 = scmp.eq.s32.totalorder %s26, 0
      %p46 = por %p44, %p45
      %p47 = scmp.ne.s32.totalorder %s36, %s39
      %p48 = scmp.eq.s32.totalorder %s31, 1
      %p49 = por %p47, %p48
      %p50 = scmp.ne.s32.totalorder %s39, %s40
      %p51 = scmp.eq.s32.totalorder %s31, 0
      %p52 = por %p50, %p51
      %p53 = scmp.ne.s32.totalorder %s39, %s40
      %p54 = scmp.eq.s32.totalorder %s32, 1
      %p55 = por %p53, %p54
      %p57 = scmp.ne.s32.totalorder %s40, %s56
      %p58 = scmp.eq.s32.totalorder %s32, 0
      %p59 = por %p57, %p58
      %s60 = ssub.s32 %s26, %s33
      %p61 = scmp.eq.s32.totalorder %s60, 0
      %s63 = sadd.s32 %s62, 1
      %s64 = scalar_select %p61, %s62, %s63
      %p67 = pneg %p61
      %p68 = scmp.eq.s32.totalorder %s26, 1
      %p69 = por %p67, %p68
      %p70 = scmp.ne.s32.totalorder %s62, %s65
      %p71 = scmp.eq.s32.totalorder %s26, 0
      %p72 = por %p70, %p71
      %p73 = scmp.ne.s32.totalorder %s62, %s65
      %p74 = scmp.eq.s32.totalorder %s31, 1
      %p75 = por %p73, %p74
      %p76 = scmp.ne.s32.totalorder %s65, %s66
      %p77 = scmp.eq.s32.totalorder %s31, 0
      %p78 = por %p76, %p77
      %p79 = scmp.ne.s32.totalorder %s65, %s66
      %p80 = scmp.eq.s32.totalorder %s32, 1
      %p81 = por %p79, %p80
      %p83 = scmp.ne.s32.totalorder %s66, %s82
      %p84 = scmp.eq.s32.totalorder %s32, 0
      %p85 = por %p83, %p84
      %s86 = ssub.s32 %s26, %s33
      %p87 = scmp.eq.s32.totalorder %s86, 0
      %s89 = sadd.s32 %s88, 1
      %s90 = scalar_select %p87, %s88, %s89
      %p93 = pneg %p87
      %p94 = scmp.eq.s32.totalorder %s26, 1
      %p95 = por %p93, %p94
      %p96 = scmp.ne.s32.totalorder %s88, %s91
      %p97 = scmp.eq.s32.totalorder %s26, 0
      %p98 = por %p96, %p97
      %p99 = scmp.ne.s32.totalorder %s88, %s91
      %p100 = scmp.eq.s32.totalorder %s31, 1
      %p101 = por %p99, %p100
      %p102 = scmp.ne.s32.totalorder %s91, %s92
      %p103 = scmp.eq.s32.totalorder %s31, 0
      %p104 = por %p102, %p103
      %p105 = scmp.ne.s32.totalorder %s91, %s92
      %p106 = scmp.eq.s32.totalorder %s32, 1
      %p107 = por %p105, %p106
      %p109 = scmp.ne.s32.totalorder %s92, %s108
      %p110 = scmp.eq.s32.totalorder %s32, 0
      %p111 = por %p109, %p110
      %s112 = ssub.s32 %s26, %s33
      %p113 = scmp.eq.s32.totalorder %s112, 0
      %s115 = sadd.s32 %s114, 1
      %s116 = scalar_select %p113, %s114, %s115
      %p119 = pneg %p113
      %p120 = scmp.eq.s32.totalorder %s26, 1
      %p121 = por %p119, %p120
      %p122 = scmp.ne.s32.totalorder %s114, %s117
      %p123 = scmp.eq.s32.totalorder %s26, 0
      %p124 = por %p122, %p123
      %p125 = scmp.ne.s32.totalorder %s114, %s117
      %p126 = scmp.eq.s32.totalorder %s31, 1
      %p127 = por %p125, %p126
      %p128 = scmp.ne.s32.totalorder %s117, %s118
      %p129 = scmp.eq.s32.totalorder %s31, 0
      %p130 = por %p128, %p129
      %p131 = scmp.ne.s32.totalorder %s117, %s118
      %p132 = scmp.eq.s32.totalorder %s32, 1
      %p133 = por %p131, %p132
      %p135 = scmp.ne.s32.totalorder %s118, %s134
      %p136 = scmp.eq.s32.totalorder %s32, 0
      %p137 = por %p135, %p136
      %s139 = sadd.s32 %s138, 1
      %p142 = scmp.eq.s32.totalorder %s26, 1
      %p143 = scmp.ne.s32.totalorder %s138, %s140
      %p144 = scmp.eq.s32.totalorder %s26, 0
      %p145 = por %p143, %p144
      %p146 = scmp.ne.s32.totalorder %s138, %s140
      %p147 = scmp.eq.s32.totalorder %s31, 1
      %p148 = por %p146, %p147
      %p149 = scmp.ne.s32.totalorder %s140, %s141
      %p150 = scmp.eq.s32.totalorder %s31, 0
      %p151 = por %p149, %p150
      %p152 = scmp.ne.s32.totalorder %s140, %s141
      %p153 = scmp.eq.s32.totalorder %s32, 1
      %p154 = por %p152, %p153
      %p156 = scmp.ne.s32.totalorder %s141, %s155
      %p157 = scmp.eq.s32.totalorder %s32, 0
      %p158 = por %p156, %p157
      %s160 = sadd.s32 %s159, 1
      %p163 = scmp.eq.s32.totalorder %s26, 1
      %p164 = scmp.ne.s32.totalorder %s159, %s161
      %p165 = scmp.eq.s32.totalorder %s26, 0
      %p166 = por %p164, %p165
      %p167 = scmp.ne.s32.totalorder %s159, %s161
      %p168 = scmp.eq.s32.totalorder %s31, 1
      %p169 = por %p167, %p168
      %p170 = scmp.ne.s32.totalorder %s161, %s162
      %p171 = scmp.eq.s32.totalorder %s31, 0
      %p172 = por %p170, %p171
      %p173 = scmp.ne.s32.totalorder %s161, %s162
      %p174 = scmp.eq.s32.totalorder %s32, 1
      %p175 = por %p173, %p174
      %p177 = scmp.ne.s32.totalorder %s162, %s176
      %p178 = scmp.eq.s32.totalorder %s32, 0
      %p179 = por %p177, %p178
      %s180 = ssub.s32 %s26, %s33
      %p181 = scmp.eq.s32.totalorder %s180, 0
      %s183 = sadd.s32 %s182, 1
      %s184 = scalar_select %p181, %s182, %s183
      %p187 = pneg %p181
      %p188 = scmp.eq.s32.totalorder %s26, 1
      %p189 = por %p187, %p188
      %p190 = scmp.ne.s32.totalorder %s182, %s185
      %p191 = scmp.eq.s32.totalorder %s26, 0
      %p192 = por %p190, %p191
      %p193 = scmp.ne.s32.totalorder %s182, %s185
      %p194 = scmp.eq.s32.totalorder %s31, 1
      %p195 = por %p193, %p194
      %p196 = scmp.ne.s32.totalorder %s185, %s186
      %p197 = scmp.eq.s32.totalorder %s31, 0
      %p198 = por %p196, %p197
      %p199 = scmp.ne.s32.totalorder %s185, %s186
      %p200 = scmp.eq.s32.totalorder %s32, 1
      %p201 = por %p199, %p200
      %p203 = scmp.ne.s32.totalorder %s186, %s202
      %p204 = scmp.eq.s32.totalorder %s32, 0
      %p205 = por %p203, %p204
      %s207 = sadd.s32 %s206, 1
      %p210 = scmp.eq.s32.totalorder %s26, 1
      %p211 = scmp.ne.s32.totalorder %s206, %s208
      %p212 = scmp.eq.s32.totalorder %s26, 0
      %p213 = por %p211, %p212
      %p214 = scmp.ne.s32.totalorder %s206, %s208
      %p215 = scmp.eq.s32.totalorder %s31, 1
      %p216 = por %p214, %p215
      %p217 = scmp.ne.s32.totalorder %s208, %s209
      %p218 = scmp.eq.s32.totalorder %s31, 0
      %p219 = por %p217, %p218
      %p220 = scmp.ne.s32.totalorder %s208, %s209
      %p221 = scmp.eq.s32.totalorder %s32, 1
      %p222 = por %p220, %p221
      %p224 = scmp.ne.s32.totalorder %s209, %s223
      %p225 = scmp.eq.s32.totalorder %s32, 0
      %p226 = por %p224, %p225
      %s228 = sadd.s32 %s227, 1
      %p231 = scmp.eq.s32.totalorder %s26, 1
      %p232 = scmp.ne.s32.totalorder %s227, %s229
      %p233 = scmp.eq.s32.totalorder %s26, 0
      %p234 = por %p232, %p233
      %p235 = scmp.ne.s32.totalorder %s227, %s229
      %p236 = scmp.eq.s32.totalorder %s31, 1
      %p237 = por %p235, %p236
      %p238 = scmp.ne.s32.totalorder %s229, %s230
      %p239 = scmp.eq.s32.totalorder %s31, 0
      %p240 = por %p238, %p239
      %p241 = scmp.ne.s32.totalorder %s229, %s230
      %p242 = scmp.eq.s32.totalorder %s32, 1
      %p243 = por %p241, %p242
      %p245 = scmp.ne.s32.totalorder %s230, %s244
      %p246 = scmp.eq.s32.totalorder %s32, 0
      %p247 = por %p245, %p246
      %s249 = sadd.s32 %s248, 1
      %p252 = scmp.eq.s32.totalorder %s26, 1
      %p253 = scmp.ne.s32.totalorder %s248, %s250
      %p254 = scmp.eq.s32.totalorder %s26, 0
      %p255 = por %p253, %p254
      %p256 = scmp.ne.s32.totalorder %s248, %s250
      %p257 = scmp.eq.s32.totalorder %s31, 1
      %p258 = por %p256, %p257
      %p259 = scmp.ne.s32.totalorder %s250, %s251
      %p260 = scmp.eq.s32.totalorder %s31, 0
      %p261 = por %p259, %p260
      %p262 = scmp.ne.s32.totalorder %s250, %s251
      %p263 = scmp.eq.s32.totalorder %s32, 1
      %p264 = por %p262, %p263
      %p266 = scmp.ne.s32.totalorder %s251, %s265
      %p267 = scmp.eq.s32.totalorder %s32, 0
      %p268 = por %p266, %p267
      %s270 = sadd.s32 %s269, 1
      %p273 = scmp.eq.s32.totalorder %s26, 1
      %p274 = scmp.ne.s32.totalorder %s269, %s271
      %p275 = scmp.eq.s32.totalorder %s26, 0
      %p276 = por %p274, %p275
      %p277 = scmp.ne.s32.totalorder %s269, %s271
      %p278 = scmp.eq.s32.totalorder %s31, 1
      %p279 = por %p277, %p278
      %p280 = scmp.ne.s32.totalorder %s271, %s272
      %p281 = scmp.eq.s32.totalorder %s31, 0
      %p282 = por %p280, %p281
      %p283 = scmp.ne.s32.totalorder %s271, %s272
      %p284 = scmp.eq.s32.totalorder %s32, 1
      %p285 = por %p283, %p284
      %p287 = scmp.ne.s32.totalorder %s272, %s286
      %p288 = scmp.eq.s32.totalorder %s32, 0
      %p289 = por %p287, %p288
      %s291 = sadd.s32 %s290, 1
      %p294 = scmp.eq.s32.totalorder %s26, 1
      %p295 = scmp.ne.s32.totalorder %s290, %s292
      %p296 = scmp.eq.s32.totalorder %s26, 0
      %p297 = por %p295, %p296
      %p298 = scmp.ne.s32.totalorder %s290, %s292
      %p299 = scmp.eq.s32.totalorder %s31, 1
      %p300 = por %p298, %p299
      %p301 = scmp.ne.s32.totalorder %s292, %s293
      %p302 = scmp.eq.s32.totalorder %s31, 0
      %p303 = por %p301, %p302
      %p304 = scmp.ne.s32.totalorder %s292, %s293
      %p305 = scmp.eq.s32.totalorder %s32, 1
      %p306 = por %p304, %p305
      %p308 = scmp.ne.s32.totalorder %s293, %s307
      %p309 = scmp.eq.s32.totalorder %s32, 0
      %p310 = por %p308, %p309
      %s312 = sadd.s32 %s311, 1
      %p315 = scmp.eq.s32.totalorder %s26, 1
      %p316 = scmp.ne.s32.totalorder %s311, %s313
      %p317 = scmp.eq.s32.totalorder %s26, 0
      %p318 = por %p316, %p317
      %p319 = scmp.ne.s32.totalorder %s311, %s313
      %p320 = scmp.eq.s32.totalorder %s31, 1
      %p321 = por %p319, %p320
      %p322 = scmp.ne.s32.totalorder %s313, %s314
      %p323 = scmp.eq.s32.totalorder %s31, 0
      %p324 = por %p322, %p323
      %p325 = scmp.ne.s32.totalorder %s313, %s314
      %p326 = scmp.eq.s32.totalorder %s32, 1
      %p327 = por %p325, %p326
      %p329 = scmp.ne.s32.totalorder %s314, %s328
      %p330 = scmp.eq.s32.totalorder %s32, 0
      %p331 = por %p329, %p330
      %s333 = sadd.s32 %s332, 1
      %p336 = scmp.eq.s32.totalorder %s26, 1
      %p337 = scmp.ne.s32.totalorder %s332, %s334
      %p338 = scmp.eq.s32.totalorder %s26, 0
      %p339 = por %p337, %p338
      %p340 = scmp.ne.s32.totalorder %s332, %s334
      %p341 = scmp.eq.s32.totalorder %s31, 1
      %p342 = por %p340, %p341
      %p343 = scmp.ne.s32.totalorder %s334, %s335
      %p344 = scmp.eq.s32.totalorder %s31, 0
      %p345 = por %p343, %p344
      %p346 = scmp.ne.s32.totalorder %s334, %s335
      %p347 = scmp.eq.s32.totalorder %s32, 1
      %p348 = por %p346, %p347
      %p350 = scmp.ne.s32.totalorder %s335, %s349
      %p351 = scmp.eq.s32.totalorder %s32, 0
      %p352 = por %p350, %p351
      %s354 = sadd.s32 %s353, 1
      %p357 = scmp.eq.s32.totalorder %s26, 1
      %p358 = scmp.ne.s32.totalorder %s353, %s355
      %p359 = scmp.eq.s32.totalorder %s26, 0
      %p360 = por %p358, %p359
      %p361 = scmp.ne.s32.totalorder %s353, %s355
      %p362 = scmp.eq.s32.totalorder %s31, 1
      %p363 = por %p361, %p362
      %p364 = scmp.ne.s32.totalorder %s355, %s356
      %p365 = scmp.eq.s32.totalorder %s31, 0
      %p366 = por %p364, %p365
      %p367 = scmp.ne.s32.totalorder %s355, %s356
      %p368 = scmp.eq.s32.totalorder %s32, 1
      %p369 = por %p367, %p368
      %p371 = scmp.ne.s32.totalorder %s356, %s370
      %p372 = scmp.eq.s32.totalorder %s32, 0
      %p373 = por %p371, %p372
      %s374 = ssub.s32 %s26, %s33
      %p375 = scmp.eq.s32.totalorder %s374, 0
      %s377 = sadd.s32 %s376, 1
      %s378 = scalar_select %p375, %s376, %s377
      %p381 = pneg %p375
      %p382 = scmp.eq.s32.totalorder %s26, 1
      %p383 = por %p381, %p382
      %p384 = scmp.ne.s32.totalorder %s376, %s379
      %p385 = scmp.eq.s32.totalorder %s26, 0
      %p386 = por %p384, %p385
      %p387 = scmp.ne.s32.totalorder %s376, %s379
      %p388 = scmp.eq.s32.totalorder %s31, 1
      %p389 = por %p387, %p388
      %p390 = scmp.ne.s32.totalorder %s379, %s380
      %p391 = scmp.eq.s32.totalorder %s31, 0
      %p392 = por %p390, %p391
      %p393 = scmp.ne.s32.totalorder %s379, %s380
      %p394 = scmp.eq.s32.totalorder %s32, 1
      %p395 = por %p393, %p394
      %p397 = scmp.ne.s32.totalorder %s380, %s396
      %p398 = scmp.eq.s32.totalorder %s32, 0
      %p399 = por %p397, %p398
      %s400 = ssub.s32 %s26, %s33
      %p401 = scmp.eq.s32.totalorder %s400, 0
      %s403 = sadd.s32 %s402, 1
      %s404 = scalar_select %p401, %s402, %s403
      %p407 = pneg %p401
      %p408 = scmp.eq.s32.totalorder %s26, 1
      %p409 = por %p407, %p408
      %p410 = scmp.ne.s32.totalorder %s402, %s405
      %p411 = scmp.eq.s32.totalorder %s26, 0
      %p412 = por %p410, %p411
      %p413 = scmp.ne.s32.totalorder %s402, %s405
      %p414 = scmp.eq.s32.totalorder %s31, 1
      %p415 = por %p413, %p414
      %p416 = scmp.ne.s32.totalorder %s405, %s406
      %p417 = scmp.eq.s32.totalorder %s31, 0
      %p418 = por %p416, %p417
      %p419 = scmp.ne.s32.totalorder %s405, %s406
      %p420 = scmp.eq.s32.totalorder %s32, 1
      %p421 = por %p419, %p420
      %p423 = scmp.ne.s32.totalorder %s406, %s422
      %p424 = scmp.eq.s32.totalorder %s32, 0
      %p425 = por %p423, %p424
      %p426 = scmp.le.s32.totalorder 1, %s26
      %p427 = scmp.lt.s32.totalorder %s26, 3
      %p428 = pnand %p426, %p427
      %p429 = pneg %p428
      // Predicated region
      $region9: #{decoder_layer_forward.5} parent=5 // pred_check
        _
      $region10: #{decoder_layer_forward.5} parent=5 // pred_check_branch
        %431 = sbr.rel (%p428) target = $region12
      $region11: #{decoder_layer_forward.5} parent=5 // pred_region
        %s432 = ssub.s32 %s26, 1
        // Predicated region
        $region13: #{decoder_layer_forward.5} parent=11 // pred_check
          %p433 = pneg %p151
        $region14: #{decoder_layer_forward.5} parent=11 // pred_check_branch
          %435 = sbr.rel (%p433) target = $region16
        $region15: #{decoder_layer_forward.5} parent=11 // pred_region
          _
        $region16: #{decoder_layer_forward.5} parent=11 // pred_fallthru
          _
        // Predicated region
        $region17: #{decoder_layer_forward.5} parent=11 // pred_check
          %p436 = pneg %p172
        $region18: #{decoder_layer_forward.5} parent=11 // pred_check_branch
          %438 = sbr.rel (%p436) target = $region20
        $region19: #{decoder_layer_forward.5} parent=11 // pred_region
          _
        $region20: #{decoder_layer_forward.5} parent=11 // pred_fallthru
          _
        // Predicated region
        $region21: #{decoder_layer_forward.5} parent=11 // pred_check
          %p439 = pneg %p219
        $region22: #{decoder_layer_forward.5} parent=11 // pred_check_branch
          %441 = sbr.rel (%p439) target = $region24
        $region23: #{decoder_layer_forward.5} parent=11 // pred_region
          _
        $region24: #{decoder_layer_forward.5} parent=11 // pred_fallthru
          _
        // Predicated region
        $region25: #{decoder_layer_forward.5} parent=11 // pred_check
          %p442 = pneg %p240
        $region26: #{decoder_layer_forward.5} parent=11 // pred_check_branch
          %444 = sbr.rel (%p442) target = $region28
        $region27: #{decoder_layer_forward.5} parent=11 // pred_region
          _
        $region28: #{decoder_layer_forward.5} parent=11 // pred_fallthru
          _
        // Predicated region
        $region29: #{decoder_layer_forward.5} parent=11 // pred_check
          %p445 = pneg %p261
        $region30: #{decoder_layer_forward.5} parent=11 // pred_check_branch
          %447 = sbr.rel (%p445) target = $region32
        $region31: #{decoder_layer_forward.5} parent=11 // pred_region
          _
        $region32: #{decoder_layer_forward.5} parent=11 // pred_fallthru
          _
        // Predicated region
        $region33: #{decoder_layer_forward.5} parent=11 // pred_check
          %p448 = pneg %p282
        $region34: #{decoder_layer_forward.5} parent=11 // pred_check_branch
          %450 = sbr.rel (%p448) target = $region36
        $region35: #{decoder_layer_forward.5} parent=11 // pred_region
          _
        $region36: #{decoder_layer_forward.5} parent=11 // pred_fallthru
          _
        // Predicated region
        $region37: #{decoder_layer_forward.5} parent=11 // pred_check
          %p451 = pneg %p303
        $region38: #{decoder_layer_forward.5} parent=11 // pred_check_branch
          %453 = sbr.rel (%p451) target = $region40
        $region39: #{decoder_layer_forward.5} parent=11 // pred_region
          _
        $region40: #{decoder_layer_forward.5} parent=11 // pred_fallthru
          _
        // Predicated region
        $region41: #{decoder_layer_forward.5} parent=11 // pred_check
          %p454 = pneg %p324
        $region42: #{decoder_layer_forward.5} parent=11 // pred_check_branch
          %456 = sbr.rel (%p454) target = $region44
        $region43: #{decoder_layer_forward.5} parent=11 // pred_region
          _
        $region44: #{decoder_layer_forward.5} parent=11 // pred_fallthru
          _
        // Predicated region
        $region45: #{decoder_layer_forward.5} parent=11 // pred_check
          %p457 = pneg %p345
        $region46: #{decoder_layer_forward.5} parent=11 // pred_check_branch
          %459 = sbr.rel (%p457) target = $region48
        $region47: #{decoder_layer_forward.5} parent=11 // pred_region
          _
        $region48: #{decoder_layer_forward.5} parent=11 // pred_fallthru
          _
        // Predicated region
        $region49: #{decoder_layer_forward.5} parent=11 // pred_check
          %p460 = pneg %p366
        $region50: #{decoder_layer_forward.5} parent=11 // pred_check_branch
          %462 = sbr.rel (%p460) target = $region52
        $region51: #{decoder_layer_forward.5} parent=11 // pred_region
          _
        $region52: #{decoder_layer_forward.5} parent=11 // pred_fallthru
          _
      $region12: #{decoder_layer_forward.5} parent=5 // pred_fallthru
        _
      %p463 = scmp.lt.s32.totalorder %s26, 2
      // Predicated region
      $region53: #{decoder_layer_forward.5} parent=5 // pred_check
        %p464 = pneg %p463
      $region54: #{decoder_layer_forward.5} parent=5 // pred_check_branch
        %466 = sbr.rel (%p464) target = $region56
      $region55: #{decoder_layer_forward.5} parent=5 // pred_region
        // Predicated region
        $region57: #{decoder_layer_forward.5} parent=55 // pred_check
          %p467 = pneg %p46
        $region58: #{decoder_layer_forward.5} parent=55 // pred_check_branch
          %469 = sbr.rel (%p467) target = $region60
        $region59: #{decoder_layer_forward.5} parent=55 // pred_region
          %p470 = scmp.lt.s32.totalorder %s26, 1
          %s471 = scalar_select %p470, %s26, 1
          %s472 = smul.addr %s471, 4
          %s473 = smul.addr %s472, 8
          %s474 = scalar_lea.vmem %s0, %s473
        $region60: #{decoder_layer_forward.5} parent=55 // pred_fallthru
          _
        // Predicated region
        $region61: #{decoder_layer_forward.5} parent=55 // pred_check
          %p475 = pneg %p72
        $region62: #{decoder_layer_forward.5} parent=55 // pred_check_branch
          %477 = sbr.rel (%p475) target = $region64
        $region63: #{decoder_layer_forward.5} parent=55 // pred_region
          %p478 = scmp.lt.s32.totalorder %s26, 1
          %s479 = scalar_select %p478, %s26, 1
          %s480 = smul.addr %s479, 4
          %s481 = smul.addr %s480, 8
          %s482 = scalar_lea.vmem %s1, %s481
        $region64: #{decoder_layer_forward.5} parent=55 // pred_fallthru
          _
        // Predicated region
        $region65: #{decoder_layer_forward.5} parent=55 // pred_check
          %p483 = pneg %p98
        $region66: #{decoder_layer_forward.5} parent=55 // pred_check_branch
          %485 = sbr.rel (%p483) target = $region68
        $region67: #{decoder_layer_forward.5} parent=55 // pred_region
          %p486 = scmp.lt.s32.totalorder %s26, 1
          %s487 = scalar_select %p486, %s26, 1
          %s488 = smul.addr %s487, 4
          %s489 = smul.addr %s488, 8
          %s490 = scalar_lea.vmem %s2, %s489
        $region68: #{decoder_layer_forward.5} parent=55 // pred_fallthru
          _
        // Predicated region
        $region69: #{decoder_layer_forward.5} parent=55 // pred_check
          %p491 = pneg %p124
        $region70: #{decoder_layer_forward.5} parent=55 // pred_check_branch
          %493 = sbr.rel (%p491) target = $region72
        $region71: #{decoder_layer_forward.5} parent=55 // pred_region
          %p494 = scmp.lt.s32.totalorder %s26, 1
          %s495 = scalar_select %p494, %s26, 1
          %s496 = smul.addr %s495, 8
          %s497 = scalar_lea.vmem %s3, %s496
        $region72: #{decoder_layer_forward.5} parent=55 // pred_fallthru
          _
        // Predicated region
        $region73: #{decoder_layer_forward.5} parent=55 // pred_check
          %p498 = pneg %p192
        $region74: #{decoder_layer_forward.5} parent=55 // pred_check_branch
          %500 = sbr.rel (%p498) target = $region76
        $region75: #{decoder_layer_forward.5} parent=55 // pred_region
          %p501 = scmp.lt.s32.totalorder %s26, 1
          %s502 = scalar_select %p501, %s26, 1
          %s503 = smul.addr %s502, 8
          %s504 = scalar_lea.vmem %s6, %s503
        $region76: #{decoder_layer_forward.5} parent=55 // pred_fallthru
          _
      $region56: #{decoder_layer_forward.5} parent=5 // pred_fallthru
        _
      %p505 = scmp.le.s32.totalorder 1, %s26
      %p506 = scmp.lt.s32.totalorder %s26, 3
      %p507 = pnand %p505, %p506
      %p508 = pneg %p507
      // Predicated region
      $region77: #{decoder_layer_forward.5} parent=5 // pred_check
        _
      $region78: #{decoder_layer_forward.5} parent=5 // pred_check_branch
        %510 = sbr.rel (%p507) target = $region80
      $region79: #{decoder_layer_forward.5} parent=5 // pred_region
        %s511 = ssub.s32 %s26, 1
        %p512 = scmp.lt.s32.totalorder %s31, 1
        %s513 = scalar_select %p512, %s31, 1
        %s514 = smul.addr %s513, 4
        %s515 = smul.addr %s514, 8
        %s516 = scalar_lea.vmem %s0, %s515
        %p517 = pneg %p52
        %p518 = pneg %p49
        %p519 = scmp.lt.s32.totalorder %s31, 1
        %s520 = scalar_select %p519, %s31, 1
        %s521 = smul.addr %s520, 4
        %s522 = smul.addr %s521, 8
        %s523 = scalar_lea.vmem %s1, %s522
        %p524 = pneg %p78
        %p525 = pneg %p75
        %p526 = scmp.lt.s32.totalorder %s31, 1
        %s527 = scalar_select %p526, %s31, 1
        %s528 = smul.addr %s527, 4
        %s529 = smul.addr %s528, 8
        %s530 = scalar_lea.vmem %s2, %s529
        %p531 = pneg %p104
        %p532 = pneg %p101
        %p533 = scmp.lt.s32.totalorder %s31, 1
        %s534 = scalar_select %p533, %s31, 1
        %s535 = smul.addr %s534, 8
        %s536 = scalar_lea.vmem %s3, %s535
        %p537 = pneg %p130
        %p538 = pneg %p127
        %p539 = pneg %p151
        %p540 = pneg %p148
        %p541 = pneg %p172
        %p542 = pneg %p169
        %p543 = scmp.lt.s32.totalorder %s31, 1
        %s544 = scalar_select %p543, %s31, 1
        %s545 = smul.addr %s544, 8
        %s546 = scalar_lea.vmem %s6, %s545
        %p547 = pneg %p198
        %p548 = pneg %p195
        %p549 = pneg %p219
        %p550 = pneg %p216
        %p551 = pneg %p240
        %p552 = pneg %p237
        %p553 = pneg %p261
        %p554 = pneg %p258
        %p555 = pneg %p282
        %p556 = pneg %p279
        %p557 = pneg %p303
        %p558 = pneg %p300
        %p559 = pneg %p324
        %p560 = pneg %p321
        %p561 = pneg %p345
        %p562 = pneg %p342
        %p563 = pneg %p366
        %p564 = pneg %p363
        %p565 = pneg %p392
        %p566 = pneg %p389
        %s567 = sand.u32 %s379, 1
        %s568 = scalar_lea.sflag [#allocation4], %s567
        %s569 = sand.u32 %s379, 1
        %s570 = smul.addr %s569, 8
        %s571 = scalar_lea.vmem [#allocation3], %s570
        %p572 = pneg %p418
        %p573 = pneg %p415
        %p574 = scmp.lt.s32.totalorder %s31, 1
        %s575 = scalar_select %p574, %s31, 1
        %s576 = smul.addr %s575, 8
        %s577 = scalar_lea.vmem %s16, %s576
        %p578 = scmp.lt.s32.totalorder %s31, 1
        %s579 = scalar_select %p578, %s31, 1
        %s580 = smul.addr %s579, 4
        %s581 = smul.addr %s580, 8
        %s582 = scalar_lea.vmem %s0, %s581
        %p583 = scmp.lt.s32.totalorder %s31, 1
        %s584 = scalar_select %p583, %s31, 1
        %s585 = smul.addr %s584, 4
        %s586 = smul.addr %s585, 8
        %s587 = scalar_lea.vmem %s1, %s586
        %p588 = scmp.lt.s32.totalorder %s31, 1
        %s589 = scalar_select %p588, %s31, 1
        %s590 = smul.addr %s589, 4
        %s591 = smul.addr %s590, 8
        %s592 = scalar_lea.vmem %s2, %s591
        %p593 = scmp.lt.s32.totalorder %s31, 1
        %s594 = scalar_select %p593, %s31, 1
        %s595 = smul.addr %s594, 8
        %s596 = scalar_lea.vmem %s3, %s595
        %p597 = scmp.lt.s32.totalorder %s31, 1
        %s598 = scalar_select %p597, %s31, 1
        %s599 = smul.addr %s598, 8
        %s600 = scalar_lea.vmem %s6, %s599
        %p601 = scmp.lt.s32.totalorder %s31, 1
        %s602 = scalar_select %p601, %s31, 1
        %s603 = smul.addr %s602, 8
        %s604 = scalar_lea.vmem %s16, %s603
        %v605 = vld [vmem:[%s582] sm:$0xff]
        %v606 = vld [vmem:[%s582 + $0x8] sm:$0xff]
        %v607 = vld [vmem:[%s582 + $0x10] sm:$0xff]
        %v608 = vld [vmem:[%s582 + $0x18] sm:$0xff]
        %v609 = vld [vmem:[%s587] sm:$0xff]
        %v610 = vld [vmem:[%s587 + $0x8] sm:$0xff]
        %v611 = vld [vmem:[%s587 + $0x10] sm:$0xff]
        %v612 = vld [vmem:[%s587 + $0x18] sm:$0xff]
        %v613 = vld [vmem:[%s592] sm:$0xff]
        %v614 = vld [vmem:[%s592 + $0x8] sm:$0xff]
        %v615 = vld [vmem:[%s592 + $0x10] sm:$0xff]
        %v616 = vld [vmem:[%s592 + $0x18] sm:$0xff]
        %vm617 = vcmask 64512
        %v619 = vsel %vm617, %v605, 0
        %v622 = vsel %vm617, %v609, 0
        %624 = vmatpush.xpose.msra.mxu0 0.0
        %625 = vmatpush.xpose.msra.mxu0 0.0
        %626 = vmatpush.xpose.msra.mxu0 0.0
        %627 = vmatpush.xpose.msra.mxu0 0.0
        %628 = vmatpush.xpose.msra.mxu0 0.0
        %629 = vmatpush.xpose.msra.mxu0 0.0
        %630 = vmatpush.xpose.msra.mxu0 0.0
        %631 = vmatpush.xpose.msra.mxu0 0.0
        %632 = vmatpush.xpose.msra.mxu0 0.0
        %633 = vmatpush.xpose.msra.mxu0 0.0
        %634 = vmatpush.xpose.msra.mxu0 0.0
        %635 = vmatpush.xpose.msra.mxu0 0.0
        %636 = vmatpush.xpose.msra.mxu0 0.0
        %637 = vmatpush.xpose.msra.mxu0 0.0
        %638 = vmatpush.xpose.msra.mxu0 0.0
        %639 = vmatpush.xpose.msra.mxu0 %v622
        %640 = vmatmul.f32.gmra.mxu0 %v619
        %v641 = vpop.f32.mrf.mxu0
        %v642 = vadd.f32 0.0, %v641
        %643 = vdwg.mxu0
        %v645 = vsel %vm617, %v606, 0
        %v648 = vsel %vm617, %v610, 0
        %650 = vmatpush.xpose.msra.mxu0 0.0
        %651 = vmatpush.xpose.msra.mxu0 0.0
        %652 = vmatpush.xpose.msra.mxu0 0.0
        %653 = vmatpush.xpose.msra.mxu0 0.0
        %654 = vmatpush.xpose.msra.mxu0 0.0
        %655 = vmatpush.xpose.msra.mxu0 0.0
        %656 = vmatpush.xpose.msra.mxu0 0.0
        %657 = vmatpush.xpose.msra.mxu0 0.0
        %658 = vmatpush.xpose.msra.mxu0 0.0
        %659 = vmatpush.xpose.msra.mxu0 0.0
        %660 = vmatpush.xpose.msra.mxu0 0.0
        %661 = vmatpush.xpose.msra.mxu0 0.0
        %662 = vmatpush.xpose.msra.mxu0 0.0
        %663 = vmatpush.xpose.msra.mxu0 0.0
        %664 = vmatpush.xpose.msra.mxu0 0.0
        %665 = vmatpush.xpose.msra.mxu0 %v648
        %666 = vmatmul.f32.gmra.mxu0 %v645
        %v667 = vpop.f32.mrf.mxu0
        %v668 = vadd.f32 0.0, %v667
        %669 = vdwg.mxu0
        %v671 = vsel %vm617, %v607, 0
        %v674 = vsel %vm617, %v611, 0
        %676 = vmatpush.xpose.msra.mxu0 0.0
        %677 = vmatpush.xpose.msra.mxu0 0.0
        %678 = vmatpush.xpose.msra.mxu0 0.0
        %679 = vmatpush.xpose.msra.mxu0 0.0
        %680 = vmatpush.xpose.msra.mxu0 0.0
        %681 = vmatpush.xpose.msra.mxu0 0.0
        %682 = vmatpush.xpose.msra.mxu0 0.0
        %683 = vmatpush.xpose.msra.mxu0 0.0
        %684 = vmatpush.xpose.msra.mxu0 0.0
        %685 = vmatpush.xpose.msra.mxu0 0.0
        %686 = vmatpush.xpose.msra.mxu0 0.0
        %687 = vmatpush.xpose.msra.mxu0 0.0
        %688 = vmatpush.xpose.msra.mxu0 0.0
        %689 = vmatpush.xpose.msra.mxu0 0.0
        %690 = vmatpush.xpose.msra.mxu0 0.0
        %691 = vmatpush.xpose.msra.mxu0 %v674
        %692 = vmatmul.f32.gmra.mxu0 %v671
        %v693 = vpop.f32.mrf.mxu0
        %v694 = vadd.f32 0.0, %v693
        %695 = vdwg.mxu0
        %v697 = vsel %vm617, %v608, 0
        %v700 = vsel %vm617, %v612, 0
        %702 = vmatpush.xpose.msra.mxu0 0.0
        %703 = vmatpush.xpose.msra.mxu0 0.0
        %704 = vmatpush.xpose.msra.mxu0 0.0
        %705 = vmatpush.xpose.msra.mxu0 0.0
        %706 = vmatpush.xpose.msra.mxu0 0.0
        %707 = vmatpush.xpose.msra.mxu0 0.0
        %708 = vmatpush.xpose.msra.mxu0 0.0
        %709 = vmatpush.xpose.msra.mxu0 0.0
        %710 = vmatpush.xpose.msra.mxu0 0.0
        %711 = vmatpush.xpose.msra.mxu0 0.0
        %712 = vmatpush.xpose.msra.mxu0 0.0
        %713 = vmatpush.xpose.msra.mxu0 0.0
        %714 = vmatpush.xpose.msra.mxu0 0.0
        %715 = vmatpush.xpose.msra.mxu0 0.0
        %716 = vmatpush.xpose.msra.mxu0 0.0
        %717 = vmatpush.xpose.msra.mxu0 %v700
        %718 = vmatmul.f32.gmra.mxu0 %v697
        %v719 = vpop.f32.mrf.mxu0
        %v720 = vadd.f32 0.0, %v719
        %721 = vdwg.mxu0
        %v722 = vmul.f32 %v642, 0.35355338
        %v723 = vmul.f32 %v668, 0.35355338
        %v724 = vmul.f32 %v694, 0.35355338
        %v725 = vmul.f32 %v720, 0.35355338
        %v726 = vld [vmem:[%s596] sm:$0xff]
        %vm727 = vcmp.gt.f32.partialorder %v726, 0.0
        %v728 = vsel %vm727, 1, 0
        %vm729 = vcmp.eq.s32.totalorder %v728, 1
        %v730 = vsel %vm729, -1e+09, %v722
        %v731 = vsel %vm729, -1e+09, %v723
        %v732 = vsel %vm729, -1e+09, %v724
        %v733 = vsel %vm729, -1e+09, %v725
        %v734 = vsel %vm617, %v730, -inf
        %735 = vmax.xlane.f32.xlu0 %v734
        %v736 = vpop.xlane.xlu0 %735
        %v737 = vsel %vm617, %v731, -inf
        %738 = vmax.xlane.f32.xlu0 %v737
        %v739 = vpop.xlane.xlu0 %738
        %v740 = vsel %vm617, %v732, -inf
        %741 = vmax.xlane.f32.xlu0 %v740
        %v742 = vpop.xlane.xlu0 %741
        %v743 = vsel %vm617, %v733, -inf
        %744 = vmax.xlane.f32.xlu0 %v743
        %v745 = vpop.xlane.xlu0 %744
        %v746 = vsub.f32 %v730, %v736
        %v747 = vsub.f32 %v731, %v739
        %v748 = vsub.f32 %v732, %v742
        %v749 = vsub.f32 %v733, %v745
        %v750 = vmul.f32 %v746, 1.442695
        %v751 = vpow.pop %v750
        %v752 = vmul.f32 %v747, 1.442695
        %v753 = vpow.pop %v752
        %v754 = vmul.f32 %v748, 1.442695
        %v755 = vpow.pop %v754
        %v756 = vmul.f32 %v749, 1.442695
        %v757 = vpow.pop %v756
        %v758 = vsel %vm617, %v751, 0.0
        %759 = vadd.xlane.f32.xlu0 %v758
        %v760 = vpop.xlane.xlu0 %759
        %v761 = vsel %vm617, %v753, 0.0
        %762 = vadd.xlane.f32.xlu0 %v761
        %v763 = vpop.xlane.xlu0 %762
        %v764 = vsel %vm617, %v755, 0.0
        %765 = vadd.xlane.f32.xlu0 %v764
        %v766 = vpop.xlane.xlu0 %765
        %v767 = vsel %vm617, %v757, 0.0
        %768 = vadd.xlane.f32.xlu0 %v767
        %v769 = vpop.xlane.xlu0 %768
        %v770 = vrcp.pop %v760
        %v771 = vmul.f32 %v760, %v770
        %v772 = vsub.f32 1.0, %v771
        %v773 = vmul.f32 %v770, %v772
        %v774 = vadd.f32 %v770, %v773
        %vm775 = vweird.f32 %v760
        %vm776 = vweird.f32 %v770
        %vm777 = vmor %vm775, %vm776
        %v778 = vsel %vm777, %v770, %v774
        %v779 = vand.u32 2147483647, %v760
        %vm780 = vcmp.eq.f32.partialorder %v779, 8.507059e+37
        %v781 = vand.u32 %v760, 2147483648
        %v782 = vor.u32 1.1754944e-38, %v781
        %v783 = vsel %vm780, %v782, %v778
        %v784 = vmul.f32 %v751, %v783
        %v785 = vrcp.pop %v763
        %v786 = vmul.f32 %v763, %v785
        %v787 = vsub.f32 1.0, %v786
        %v788 = vmul.f32 %v785, %v787
        %v789 = vadd.f32 %v785, %v788
        %vm790 = vweird.f32 %v763
        %vm791 = vweird.f32 %v785
        %vm792 = vmor %vm790, %vm791
        %v793 = vsel %vm792, %v785, %v789
        %v794 = vand.u32 2147483647, %v763
        %vm795 = vcmp.eq.f32.partialorder %v794, 8.507059e+37
        %v796 = vand.u32 %v763, 2147483648
        %v797 = vor.u32 1.1754944e-38, %v796
        %v798 = vsel %vm795, %v797, %v793
        %v799 = vmul.f32 %v753, %v798
        %v800 = vrcp.pop %v766
        %v801 = vmul.f32 %v766, %v800
        %v802 = vsub.f32 1.0, %v801
        %v803 = vmul.f32 %v800, %v802
        %v804 = vadd.f32 %v800, %v803
        %vm805 = vweird.f32 %v766
        %vm806 = vweird.f32 %v800
        %vm807 = vmor %vm805, %vm806
        %v808 = vsel %vm807, %v800, %v804
        %v809 = vand.u32 2147483647, %v766
        %vm810 = vcmp.eq.f32.partialorder %v809, 8.507059e+37
        %v811 = vand.u32 %v766, 2147483648
        %v812 = vor.u32 1.1754944e-38, %v811
        %v813 = vsel %vm810, %v812, %v808
        %v814 = vmul.f32 %v755, %v813
        %v815 = vrcp.pop %v769
        %v816 = vmul.f32 %v769, %v815
        %v817 = vsub.f32 1.0, %v816
        %v818 = vmul.f32 %v815, %v817
        %v819 = vadd.f32 %v815, %v818
        %vm820 = vweird.f32 %v769
        %vm821 = vweird.f32 %v815
        %vm822 = vmor %vm820, %vm821
        %v823 = vsel %vm822, %v815, %v819
        %v824 = vand.u32 2147483647, %v769
        %vm825 = vcmp.eq.f32.partialorder %v824, 8.507059e+37
        %v826 = vand.u32 %v769, 2147483648
        %v827 = vor.u32 1.1754944e-38, %v826
        %v828 = vsel %vm825, %v827, %v823
        %v829 = vmul.f32 %v757, %v828
        %v831 = vsel %vm617, %v730, 0
        %833 = vmatpush.msra.mxu0 0.0
        %834 = vmatpush.msra.mxu0 0.0
        %835 = vmatpush.msra.mxu0 0.0
        %836 = vmatpush.msra.mxu0 0.0
        %837 = vmatpush.msra.mxu0 0.0
        %838 = vmatpush.msra.mxu0 0.0
        %839 = vmatpush.msra.mxu0 0.0
        %840 = vmatpush.msra.mxu0 0.0
        %841 = vmatpush.msra.mxu0 0.0
        %842 = vmatpush.msra.mxu0 0.0
        %843 = vmatpush.msra.mxu0 0.0
        %844 = vmatpush.msra.mxu0 0.0
        %845 = vmatpush.msra.mxu0 0.0
        %846 = vmatpush.msra.mxu0 0.0
        %847 = vmatpush.msra.mxu0 0.0
        %848 = vmatpush.msra.mxu0 %v613
        %849 = vmatmul.f32.gmra.mxu0 %v831
        %v850 = vpop.f32.mrf.mxu0
        %v851 = vadd.f32 0.0, %v850
        %852 = vdwg.mxu0
        %v854 = vsel %vm617, %v731, 0
        %856 = vmatpush.msra.mxu0 0.0
        %857 = vmatpush.msra.mxu0 0.0
        %858 = vmatpush.msra.mxu0 0.0
        %859 = vmatpush.msra.mxu0 0.0
        %860 = vmatpush.msra.mxu0 0.0
        %861 = vmatpush.msra.mxu0 0.0
        %862 = vmatpush.msra.mxu0 0.0
        %863 = vmatpush.msra.mxu0 0.0
        %864 = vmatpush.msra.mxu0 0.0
        %865 = vmatpush.msra.mxu0 0.0
        %866 = vmatpush.msra.mxu0 0.0
        %867 = vmatpush.msra.mxu0 0.0
        %868 = vmatpush.msra.mxu0 0.0
        %869 = vmatpush.msra.mxu0 0.0
        %870 = vmatpush.msra.mxu0 0.0
        %871 = vmatpush.msra.mxu0 %v614
        %872 = vmatmul.f32.gmra.mxu0 %v854
        %v873 = vpop.f32.mrf.mxu0
        %v874 = vadd.f32 0.0, %v873
        %875 = vdwg.mxu0
        %v877 = vsel %vm617, %v732, 0
        %879 = vmatpush.msra.mxu0 0.0
        %880 = vmatpush.msra.mxu0 0.0
        %881 = vmatpush.msra.mxu0 0.0
        %882 = vmatpush.msra.mxu0 0.0
        %883 = vmatpush.msra.mxu0 0.0
        %884 = vmatpush.msra.mxu0 0.0
        %885 = vmatpush.msra.mxu0 0.0
        %886 = vmatpush.msra.mxu0 0.0
        %887 = vmatpush.msra.mxu0 0.0
        %888 = vmatpush.msra.mxu0 0.0
        %889 = vmatpush.msra.mxu0 0.0
        %890 = vmatpush.msra.mxu0 0.0
        %891 = vmatpush.msra.mxu0 0.0
        %892 = vmatpush.msra.mxu0 0.0
        %893 = vmatpush.msra.mxu0 0.0
        %894 = vmatpush.msra.mxu0 %v615
        %895 = vmatmul.f32.gmra.mxu0 %v877
        %v896 = vpop.f32.mrf.mxu0
        %v897 = vadd.f32 0.0, %v896
        %898 = vdwg.mxu0
        %v900 = vsel %vm617, %v733, 0
        %902 = vmatpush.msra.mxu0 0.0
        %903 = vmatpush.msra.mxu0 0.0
        %904 = vmatpush.msra.mxu0 0.0
        %905 = vmatpush.msra.mxu0 0.0
        %906 = vmatpush.msra.mxu0 0.0
        %907 = vmatpush.msra.mxu0 0.0
        %908 = vmatpush.msra.mxu0 0.0
        %909 = vmatpush.msra.mxu0 0.0
        %910 = vmatpush.msra.mxu0 0.0
        %911 = vmatpush.msra.mxu0 0.0
        %912 = vmatpush.msra.mxu0 0.0
        %913 = vmatpush.msra.mxu0 0.0
        %914 = vmatpush.msra.mxu0 0.0
        %915 = vmatpush.msra.mxu0 0.0
        %916 = vmatpush.msra.mxu0 0.0
        %917 = vmatpush.msra.mxu0 %v616
        %918 = vmatmul.f32.gmra.mxu0 %v900
        %v919 = vpop.f32.mrf.mxu0
        %v920 = vadd.f32 0.0, %v919
        %921 = vdwg.mxu0
        %922 = vst.msk [vmem:[#allocation2] sm:$0xff] %vm617, %v851
        %923 = vst.msk [vmem:[%s604] sm:$0xff] %vm617, %v784
        %925 = vrot.lane.b32.xlu0 %v874, 8
        %v926 = vpop.permute.xlu0 %925
        %vm928 = vcmask 130112
        %929 = vst.msk [vmem:[#allocation2] sm:$0xff] %vm928, %v926
        %931 = vrot.lane.b32.xlu0 %v799, 8
        %v932 = vpop.permute.xlu0 %931
        %934 = vst.msk [vmem:[%s604] sm:$0xff] %vm928, %v932
        %936 = vrot.lane.b32.xlu0 %v897, 16
        %v937 = vpop.permute.xlu0 %936
        %vm939 = vcmask 195712
        %940 = vst.msk [vmem:[#allocation2] sm:$0xff] %vm939, %v937
        %942 = vrot.lane.b32.xlu0 %v814, 16
        %v943 = vpop.permute.xlu0 %942
        %945 = vst.msk [vmem:[%s604] sm:$0xff] %vm939, %v943
        %947 = vrot.lane.b32.xlu0 %v920, 24
        %v948 = vpop.permute.xlu0 %947
        %vm950 = vcmask 261312
        %951 = vst.msk [vmem:[#allocation2] sm:$0xff] %vm950, %v948
        %953 = vrot.lane.b32.xlu0 %v829, 24
        %v954 = vpop.permute.xlu0 %953
        %956 = vst.msk [vmem:[%s604] sm:$0xff] %vm950, %v954
        %v957 = vld [vmem:[#allocation2] sm:$0xff]
        %v958 = vld [vmem:[%s4] sm:$0xff]
        %v959 = vld [vmem:[%s4 + $0x8] sm:$0xff]
        %v960 = vld [vmem:[%s4 + $0x10] sm:$0xff]
        %v961 = vld [vmem:[%s4 + $0x18] sm:$0xff]
        %v962 = vld [vmem:[%s5] sm:$0x1]
        %v964 = vperm.slane %v962, 0
        %vm966 = vcmask 261120
        %v968 = vsel %vm966, %v957, 0
        %970 = vmatpush.msra.mxu0 0.0
        %971 = vmatpush.msra.mxu0 0.0
        %972 = vmatpush.msra.mxu0 0.0
        %973 = vmatpush.msra.mxu0 0.0
        %974 = vmatpush.msra.mxu0 0.0
        %975 = vmatpush.msra.mxu0 0.0
        %976 = vmatpush.msra.mxu0 0.0
        %977 = vmatpush.msra.mxu0 0.0
        %978 = vmatpush.msra.mxu0 0.0
        %979 = vmatpush.msra.mxu0 0.0
        %980 = vmatpush.msra.mxu0 0.0
        %981 = vmatpush.msra.mxu0 0.0
        %982 = vmatpush.msra.mxu0 %v961
        %983 = vmatpush.msra.mxu0 %v960
        %984 = vmatpush.msra.mxu0 %v959
        %985 = vmatpush.msra.mxu0 %v958
        %986 = vmatmul.f32.gmra.mxu0 %v968
        %v987 = vpop.f32.mrf.mxu0
        %v988 = vadd.f32 %v964, %v987
        %989 = vdwg.mxu0
        %v990 = vld [vmem:[%s600] sm:$0xff]
        %v991 = vadd.f32 %v988, %v990
        %v992 = vld [vmem:[%s7] sm:$0x1]
        %v993 = vld [vmem:[%s8] sm:$0x1]
        %v994 = vsel %vm966, %v991, 0.0
        %995 = vadd.xlane.f32.xlu0 %v994
        %v996 = vpop.xlane.xlu0 %995
        %v997 = vrcp.pop 32.0
        %v998 = vmul.f32 32.0, %v997
        %v999 = vsub.f32 1.0, %v998
        %v1000 = vmul.f32 %v997, %v999
        %v1001 = vadd.f32 %v997, %v1000
        %vm1002 = vweird.f32 %v997
        %v1003 = vsel %vm1002, %v997, %v1001
        %v1004 = vmul.f32 %v996, %v1003
        %v1005 = vsub.f32 %v991, %v1004
        %v1006 = vmul.f32 %v1005, %v1005
        %v1007 = vsel %vm966, %v1006, 0.0
        %1008 = vadd.xlane.f32.xlu0 %v1007
        %v1009 = vpop.xlane.xlu0 %1008
        %v1010 = vmul.f32 %v1009, %v1003
        %v1011 = vadd.f32 %v1010, 1e-05
        %v1012 = vrsqrt.pop %v1011
        %v1013 = vmul.f32 %v1012, %v1011
        %v1014 = vmul.f32 %v1013, %v1012
        %v1015 = vmul.f32 0.5, %v1014
        %v1016 = vsub.f32 1.5, %v1015
        %v1017 = vmul.f32 %v1012, %v1016
        %vm1018 = vweird.f32 %v1011
        %vm1019 = vweird.f32 %v1012
        %vm1020 = vmor %vm1018, %vm1019
        %v1021 = vsel %vm1020, %v1012, %v1017
        %v1022 = vmul.f32 %v1005, %v1021
        %v1024 = vperm.slane %v992, 0
        %v1026 = vmul.f32 %v1022, %v1024
        %v1028 = vperm.slane %v993, 0
        %v1030 = vadd.f32 %v1026, %v1028
        %v1031 = vld [vmem:[%s9] sm:$0xff]
        %v1032 = vld [vmem:[%s9 + $0x8] sm:$0xff]
        %v1033 = vld [vmem:[%s9 + $0x10] sm:$0xff]
        %v1034 = vld [vmem:[%s9 + $0x18] sm:$0xff]
        %v1035 = vld [vmem:[%s10] sm:$0x1]
        %v1037 = vperm.slane %v1035, 0
        %v1040 = vsel %vm966, %v1030, 0
        %1042 = vmatpush.msra.mxu0 0.0
        %1043 = vmatpush.msra.mxu0 0.0
        %1044 = vmatpush.msra.mxu0 0.0
        %1045 = vmatpush.msra.mxu0 0.0
        %1046 = vmatpush.msra.mxu0 0.0
        %1047 = vmatpush.msra.mxu0 0.0
        %1048 = vmatpush.msra.mxu0 0.0
        %1049 = vmatpush.msra.mxu0 0.0
        %1050 = vmatpush.msra.mxu0 0.0
        %1051 = vmatpush.msra.mxu0 0.0
        %1052 = vmatpush.msra.mxu0 0.0
        %1053 = vmatpush.msra.mxu0 0.0
        %1054 = vmatpush.msra.mxu0 %v1034
        %1055 = vmatpush.msra.mxu0 %v1033
        %1056 = vmatpush.msra.mxu0 %v1032
        %1057 = vmatpush.msra.mxu0 %v1031
        %1058 = vmatmul.f32.gmra.mxu0 %v1040
        %v1059 = vpop.f32.mrf.mxu0
        %v1060 = vadd.f32 %v1037, %v1059
        %1061 = vdwg.mxu0
        %v1062 = vmax.f32 %v1060, 0.0
        %v1063 = vld [vmem:[%s11] sm:$0xff]
        %v1064 = vld [vmem:[%s11 + $0x8] sm:$0xff]
        %v1065 = vld [vmem:[%s11 + $0x10] sm:$0xff]
        %v1066 = vld [vmem:[%s11 + $0x18] sm:$0xff]
        %v1067 = vld [vmem:[%s11 + $0x20] sm:$0xff]
        %v1068 = vld [vmem:[%s11 + $0x28] sm:$0xff]
        %v1069 = vld [vmem:[%s11 + $0x30] sm:$0xff]
        %v1070 = vld [vmem:[%s11 + $0x38] sm:$0xff]
        %v1071 = vld [vmem:[%s12] sm:$0x1]
        %v1073 = vperm.slane %v1071, 0
        %vm1075 = vcmask 523264
        %v1077 = vsel %vm1075, %v1062, 0
        %1079 = vmatpush.msra.mxu0 0.0
        %1080 = vmatpush.msra.mxu0 0.0
        %1081 = vmatpush.msra.mxu0 0.0
        %1082 = vmatpush.msra.mxu0 0.0
        %1083 = vmatpush.msra.mxu0 0.0
        %1084 = vmatpush.msra.mxu0 0.0
        %1085 = vmatpush.msra.mxu0 0.0
        %1086 = vmatpush.msra.mxu0 0.0
        %1087 = vmatpush.msra.mxu0 %v1070
        %1088 = vmatpush.msra.mxu0 %v1069
        %1089 = vmatpush.msra.mxu0 %v1068
        %1090 = vmatpush.msra.mxu0 %v1067
        %1091 = vmatpush.msra.mxu0 %v1066
        %1092 = vmatpush.msra.mxu0 %v1065
        %1093 = vmatpush.msra.mxu0 %v1064
        %1094 = vmatpush.msra.mxu0 %v1063
        %1095 = vmatmul.f32.gmra.mxu0 %v1077
        %v1096 = vpop.f32.mrf.mxu0
        %v1097 = vadd.f32 %v1073, %v1096
        %1098 = vdwg.mxu0
        %v1099 = vadd.f32 %v1097, %v1030
        %v1100 = vld [vmem:[%s13] sm:$0x1]
        %v1101 = vld [vmem:[%s14] sm:$0x1]
        %v1102 = vsel %vm966, %v1099, 0.0
        %1103 = vadd.xlane.f32.xlu0 %v1102
        %v1104 = vpop.xlane.xlu0 %1103
        %v1105 = vmul.f32 %v1104, %v1003
        %v1106 = vsub.f32 %v1099, %v1105
        %v1107 = vmul.f32 %v1106, %v1106
        %v1108 = vsel %vm966, %v1107, 0.0
        %1109 = vadd.xlane.f32.xlu0 %v1108
        %v1110 = vpop.xlane.xlu0 %1109
        %v1111 = vmul.f32 %v1110, %v1003
        %v1112 = vadd.f32 %v1111, 1e-05
        %v1113 = vrsqrt.pop %v1112
        %v1114 = vmul.f32 %v1113, %v1112
        %v1115 = vmul.f32 %v1114, %v1113
        %v1116 = vmul.f32 0.5, %v1115
        %v1117 = vsub.f32 1.5, %v1116
        %v1118 = vmul.f32 %v1113, %v1117
        %vm1119 = vweird.f32 %v1112
        %vm1120 = vweird.f32 %v1113
        %vm1121 = vmor %vm1119, %vm1120
        %v1122 = vsel %vm1121, %v1113, %v1118
        %v1123 = vmul.f32 %v1106, %v1122
        %v1125 = vperm.slane %v1100, 0
        %v1127 = vmul.f32 %v1123, %v1125
        %v1129 = vperm.slane %v1101, 0
        %v1131 = vadd.f32 %v1127, %v1129
        %1132 = vst.msk [vmem:[%s571] sm:$0xff] %vm966, %v1131
        %s1133 = sand.u32 %s379, 1
        %s1134 = scalar_lea.sflag [#allocation4], %s1133
        %s1135 = sand.u32 %s379, 1
        %s1136 = smul.addr %s1135, 8
        %s1137 = scalar_lea.vmem [#allocation3], %s1136
        %p1138 = scmp.lt.s32.totalorder %s31, 1
        %s1139 = scalar_select %p1138, %s31, 1
        %s1140 = smul.addr %s1139, 8
        %s1141 = scalar_lea.vmem %s16, %s1140
        // Predicated region
        $region81: #{decoder_layer_forward.5} parent=79 // pred_check
          %p1142 = pneg %p389
        $region82: #{decoder_layer_forward.5} parent=79 // pred_check_branch
          %1144 = sbr.rel (%p1142) target = $region84
        $region83: #{decoder_layer_forward.5} parent=79 // pred_region
          %1146 = vsyncadd %s1134, 0
          %s1147 = smul.addr %s31, 8
          %s1148 = scalar_lea.hbm %s15, %s1147
          %s1150 = sshll.u32 %s1137, 4
          %s1151 = int_to_ptr.vmem [resolvable:$true] %s1150
          %s1152 = sshll.u32 %s1148, 4
          %s1153 = int_to_ptr.hbm [resolvable:$true] %s1152
          %1155 = dma.vmem_to_hbm [thread:$0]  %s1151, 128, %s1153, %s1134
        $region84: #{decoder_layer_forward.5} parent=79 // pred_fallthru
          _
        // Predicated region
        $region85: #{decoder_layer_forward.5} parent=79 // pred_check
          %p1156 = pneg %p415
        $region86: #{decoder_layer_forward.5} parent=79 // pred_check_branch
          %1158 = sbr.rel (%p1156) target = $region88
        $region87: #{decoder_layer_forward.5} parent=79 // pred_region
          _
        $region88: #{decoder_layer_forward.5} parent=79 // pred_fallthru
          _
      $region80: #{decoder_layer_forward.5} parent=5 // pred_fallthru
        _
      %p1159 = scmp.le.s32.totalorder 2, %s26
      // Predicated region
      $region89: #{decoder_layer_forward.5} parent=5 // pred_check
        %p1160 = pneg %p1159
      $region90: #{decoder_layer_forward.5} parent=5 // pred_check_branch
        %1162 = sbr.rel (%p1160) target = $region92
      $region91: #{decoder_layer_forward.5} parent=5 // pred_region
        %s1163 = ssub.s32 %s26, 2
        // Predicated region
        $region93: #{decoder_layer_forward.5} parent=91 // pred_check
          %p1164 = pneg %p395
        $region94: #{decoder_layer_forward.5} parent=91 // pred_check_branch
          %1166 = sbr.rel (%p1164) target = $region96
        $region95: #{decoder_layer_forward.5} parent=91 // pred_region
          %s1167 = sand.u32 %s380, 1
          %s1168 = scalar_lea.sflag [#allocation4], %s1167
          %s1169 = sand.u32 %s380, 1
          %s1170 = smul.addr %s1169, 8
          %s1171 = scalar_lea.vmem [#allocation3], %s1170
          %1173 = dma.done %s1168, 128
        $region96: #{decoder_layer_forward.5} parent=91 // pred_fallthru
          _
        // Predicated region
        $region97: #{decoder_layer_forward.5} parent=91 // pred_check
          %p1174 = pneg %p421
        $region98: #{decoder_layer_forward.5} parent=91 // pred_check_branch
          %1176 = sbr.rel (%p1174) target = $region100
        $region99: #{decoder_layer_forward.5} parent=91 // pred_region
          %p1177 = scmp.lt.s32.totalorder %s32, 1
          %s1178 = scalar_select %p1177, %s32, 1
          %s1179 = smul.addr %s1178, 8
          %s1180 = scalar_lea.vmem %s16, %s1179
        $region100: #{decoder_layer_forward.5} parent=91 // pred_fallthru
          _
      $region92: #{decoder_layer_forward.5} parent=5 // pred_fallthru
        _
    $region6: #{decoder_layer_forward.5} parent=1 // loop_footer
      %s30 = sadd.s32 1, %s26
    $region7: #{decoder_layer_forward.5} parent=1 // loop_footer_branch
      %25 = sbr.rel target = $region3
    $region8: #{decoder_layer_forward.5} parent=1 // loop_exit
      _
    %1181 = vsyncpa [#allocation4], 1
    %s1182 = scalar_lea.sflag [#allocation4], 1
    %1183 = vsyncpa %s1182, 1

</llo_original>
